<compile_context>
chip_gen: v6e
topology: v6e:2x2x1
jax: 0.10.0
libtpu: 0.0.40
codegen_flags: <defaults>
</compile_context>

<pallas_src>
import jax
import jax.numpy as jnp
from jax.experimental import pallas as pl
from jax.experimental.pallas import tpu as pltpu


# ---------------------------------------------------------------------------
# Pallas kernels
# ---------------------------------------------------------------------------
def _hard_xattn_kernel(q_ref, kt_ref, v_ref, o_ref, sel_ref):
    """Hard (arg-max) cross attention, one outer-batch element, Dv-tiled.

    q_ref  : (1, n, Dq)   query patch features (un-normalized: a positive
                          per-row scale cannot change the row arg-max)
    kt_ref : (1, Dq, n)   key patch features, feature-major (pre-transposed)
    v_ref  : (1, n, Tdv)  value patch-feature tile
    o_ref  : (1, n, Tdv)  gathered value tile
    sel_ref: (n, n)       VMEM scratch: one-hot selection matrix, computed at
                          dv==0 and reused across the Dv grid axis.
    """
    @pl.when(pl.program_id(1) == 0)
    def _():
        q = q_ref[0]
        kt = kt_ref[0]
        n = q.shape[0]
        # Scores up to a positive per-row factor:
        #   attn[i, j] = (q_i . k_j) / max(||k_j||, 1e-12)
        # MXU matmul in the input dtype, f32 accumulation.
        scores = jnp.dot(q, kt, preferred_element_type=jnp.float32)
        ktf = kt.astype(jnp.float32)                       # VPU math stays f32
        inv_knorm = jax.lax.rsqrt(
            jnp.maximum(jnp.sum(ktf * ktf, axis=0, keepdims=True), 1e-24))
        attn = scores * inv_knorm                          # (n, n)
        # First-index arg-max over keys (== torch.max tie-break semantics).
        col = jax.lax.broadcasted_iota(jnp.int32, attn.shape, 1)
        row_max = jnp.max(attn, axis=-1, keepdims=True)
        idx = jnp.min(jnp.where(attn >= row_max, col, n), axis=-1, keepdims=True)
        sel_ref[...] = (col == idx).astype(sel_ref.dtype)

    # Row gather of this Dv tile as a one-hot matmul (exact: one 1.0 per row,
    # f32 accumulation), value tile kept in its native dtype.
    o_ref[0] = jnp.dot(sel_ref[...], v_ref[0],
                       preferred_element_type=jnp.float32).astype(o_ref.dtype)


def _fuse_kernel(s1_ref, s2_ref, s3_ref, w1_ref, w2_ref, w3_ref, o_ref):
    """1x1 conv (3c -> 3) + per-pixel softmax + weighted sum, lane-dense.

    s*_ref : (Rt, g*c)     g pixels packed per row (NHWC channels contiguous)
    w*_ref : (g*c, 3*g*c)  per-scale block-diagonal weight: columns
                           [j*g*c : (j+1)*g*c] hold logit j of every pixel,
                           already broadcast across that pixel's c lanes.
    o_ref  : (Rt, g*c)
    """
    s1 = s1_ref[...]
    s2 = s2_ref[...]
    s3 = s3_ref[...]
    logits = jnp.dot(s1, w1_ref[...], preferred_element_type=jnp.float32)
    logits += jnp.dot(s2, w2_ref[...], preferred_element_type=jnp.float32)
    logits += jnp.dot(s3, w3_ref[...], preferred_element_type=jnp.float32)

    gc = s1.shape[-1]
    l0 = logits[:, :gc]
    l1 = logits[:, gc:2 * gc]
    l2 = logits[:, 2 * gc:]
    m = jnp.maximum(jnp.maximum(l0, l1), l2)
    e0 = jnp.exp(l0 - m)
    e1 = jnp.exp(l1 - m)
    e2 = jnp.exp(l2 - m)
    inv = 1.0 / (e0 + e1 + e2)

    out = ((e0 * inv) * s1.astype(jnp.float32)
           + (e1 * inv) * s2.astype(jnp.float32)
           + (e2 * inv) * s3.astype(jnp.float32))
    o_ref[...] = out.astype(o_ref.dtype)


# ---------------------------------------------------------------------------
# pallas_call wrappers
# ---------------------------------------------------------------------------
_TDV_MAX = 2048          # value/output feature tile (multiple of 128)
_FUSE_ROW_TILE = 2048    # packed rows per fuse grid step (each row = g pixels)


def _round_up(x, m):
    return ((x + m - 1) // m) * m


def _hard_xattn(q, kt, v):
    """q: (b, n, Dq); kt: (b, Dq, n); v: (b, n, Dv) -> (b, n, Dv)."""
    b, n, dq = q.shape
    dv = v.shape[-1]
    tdv = dv if dv <= _TDV_MAX else _TDV_MAX
    ndv = pl.cdiv(dv, tdv)

    itm_v = jnp.dtype(v.dtype).itemsize
    itm_q = jnp.dtype(q.dtype).itemsize
    blk_bytes = (2 * 2 * n * dq * itm_q          # q + kT, double-buffered
                 + 2 * 2 * n * tdv * itm_v       # v + o, double-buffered
                 + n * n * (itm_v + 4))          # sel scratch + attn temp
    vmem_limit = int(min(100 * 2**20, max(32 * 2**20, 3 * blk_bytes)))

    return pl.pallas_call(
        _hard_xattn_kernel,
        out_shape=jax.ShapeDtypeStruct((b, n, dv), v.dtype),
        grid_spec=pltpu.PrefetchScalarGridSpec(
            num_scalar_prefetch=0,
            grid=(b, ndv),
            in_specs=[
                pl.BlockSpec((1, n, dq), lambda i, j: (i, 0, 0)),
                pl.BlockSpec((1, dq, n), lambda i, j: (i, 0, 0)),
                pl.BlockSpec((1, n, tdv), lambda i, j: (i, 0, j)),
            ],
            out_specs=pl.BlockSpec((1, n, tdv), lambda i, j: (i, 0, j)),
            scratch_shapes=[pltpu.VMEM((n, n), v.dtype)],
        ),
        compiler_params=pltpu.CompilerParams(
            dimension_semantics=("parallel", "arbitrary"),
            vmem_limit_bytes=vmem_limit),
    )(q, kt, v)


def _build_fuse_weights(w2d, c, g):
    """w2d: (3, 3c) conv_attn weight -> three (g*c, 3*g*c) block-diag weights.

    W_s[p*c+ci, j*g*c + p*c + cj] = w2d[j, s*c+ci]  (broadcast over cj).
    """
    eye_g = jnp.eye(g, dtype=w2d.dtype)
    outs = []
    for s in range(3):
        ws = w2d[:, s * c:(s + 1) * c]                              # (3, c)
        a = jnp.broadcast_to(ws.T[:, :, None], (c, 3, c))           # (ci, j, cj)
        w = jnp.einsum('pq,cjk->pcjqk', eye_g, a)                   # (p,ci,j,q,cj)
        outs.append(w.reshape(g * c, 3 * g * c))
    return outs


def _fuse(s1, s2, s3, w2d):
    """s*: (rows, c) NHWC-flat scale outputs; w2d: (3, 3c) -> (rows, c)."""
    rows, c = s1.shape
    g = 128 // c if (c <= 128 and 128 % c == 0) else 1
    gc = g * c

    rows_p = pl.cdiv(rows, g)                      # packed rows
    rt = min(_FUSE_ROW_TILE, _round_up(rows_p, 8))
    rows_pp = _round_up(rows_p, rt)                # padded packed rows
    pad = rows_pp * g - rows

    def prep(s):
        return jnp.pad(s, ((0, pad), (0, 0))).reshape(rows_pp, gc)

    s1p, s2p, s3p = prep(s1), prep(s2), prep(s3)
    w1, w2, w3 = _build_fuse_weights(w2d, c, g)

    spec = pl.BlockSpec((rt, gc), lambda i: (i, 0))
    wspec = pl.BlockSpec((gc, 3 * gc), lambda i: (0, 0))
    out = pl.pallas_call(
        _fuse_kernel,
        out_shape=jax.ShapeDtypeStruct((rows_pp, gc), s1.dtype),
        grid_spec=pltpu.PrefetchScalarGridSpec(
            num_scalar_prefetch=0,
            grid=(rows_pp // rt,),
            in_specs=[spec, spec, spec, wspec, wspec, wspec],
            out_specs=spec,
        ),
        compiler_params=pltpu.CompilerParams(
            dimension_semantics=("parallel",)),
    )(s1p, s2p, s3p, w1, w2, w3)
    return out.reshape(rows_pp * g, c)[:rows]


# ---------------------------------------------------------------------------
# XLA glue: NHWC unfold / fold.  stride == patch -> pure reshape/transpose.
# ---------------------------------------------------------------------------
def _unfold_nhwc(x, ps, pad, stride):
    B, H, W, C = x.shape
    xp = jnp.pad(x, ((0, 0), (pad, pad), (pad, pad), (0, 0)))
    Hp, Wp = H + 2 * pad, W + 2 * pad
    nh = (Hp - ps) // stride + 1
    nw = (Wp - ps) // stride + 1
    xp = xp[:, :nh * ps, :nw * ps, :]
    t = xp.reshape(B, nh, ps, nw, ps, C).transpose(0, 1, 3, 2, 4, 5)
    return t.reshape(B, nh * nw, ps * ps * C)      # (B, n, ps*ps*C)


def _fold_nhwc(cols, hw, ps, pad, stride):
    B, n, P = cols.shape
    H, W = hw
    C = P // (ps * ps)
    Hp, Wp = H + 2 * pad, W + 2 * pad
    nh = (Hp - ps) // stride + 1
    nw = (Wp - ps) // stride + 1
    t = cols.reshape(B, nh, nw, ps, ps, C).transpose(0, 1, 3, 2, 4, 5)
    canvas = t.reshape(B, nh * ps, nw * ps, C)
    canvas = jnp.pad(canvas, ((0, 0), (0, Hp - nh * ps), (0, Wp - nw * ps), (0, 0)))
    return canvas[:, pad:pad + H, pad:pad + W, :]


# ---------------------------------------------------------------------------
# Module forward (Pallas path)
# ---------------------------------------------------------------------------
_SCALES = ((3, 1, 3), (5, 2, 5), (7, 3, 7))        # (patch, pad, stride)


def _cross_att_fa(x1n, x2n, x3n, wq, b, ah, aw, ps, pad, stride):
    """One CrossAttFA scale, NHWC internal layout. Returns (B, h, w, c)."""
    B, h, w, c = x1n.shape
    cq = wq.shape[0]
    wq2d = wq.reshape(cq, c)

    q_img = jnp.einsum('bhwc,oc->bhwo', x1n, wq2d)     # 1x1 conv (no bias)
    k_img = jnp.einsum('bhwc,oc->bhwo', x2n, wq2d)

    q_cols = _unfold_nhwc(q_img, ps, pad, stride)      # (B, n, ps*ps*cq)
    k_cols = _unfold_nhwc(k_img, ps, pad, stride)
    v_cols = _unfold_nhwc(x3n, ps, pad, stride)        # (B, n, ps*ps*c)
    n = v_cols.shape[1]

    def group(t):        # '(b ah aw) n p -> b n (ah aw p)'
        p = t.shape[-1]
        return jnp.transpose(t.reshape(b, ah * aw, n, p),
                             (0, 2, 1, 3)).reshape(b, n, ah * aw * p)

    def group_t(t):      # '(b ah aw) n p -> b (ah aw p) n'  (pre-transposed keys)
        p = t.shape[-1]
        return jnp.transpose(t.reshape(b, ah * aw, n, p),
                             (0, 1, 3, 2)).reshape(b, ah * aw * p, n)

    og = _hard_xattn(group(q_cols), group_t(k_cols), group(v_cols))

    p_v = v_cols.shape[-1]                             # 'b n (ah aw p) -> (b ah aw) n p'
    o_cols = jnp.transpose(og.reshape(b, n, ah * aw, p_v),
                           (0, 2, 1, 3)).reshape(B, n, p_v)
    return _fold_nhwc(o_cols, (h, w), ps, pad, stride)


def ms_cross_att_fa_pallas(x1, x2, x3, wq1, wq2, wq3, w_attn):
    """x*: (b, c, ah, aw, h, w); wq*: (c//8, c, 1, 1); w_attn: (3, 3c, 1, 1)."""
    b, c, ah, aw, h, w = x1.shape
    B = b * ah * aw

    def to_nhwc(x):      # 'b c ah aw h w -> (b ah aw) h w c'
        return jnp.transpose(x, (0, 2, 3, 4, 5, 1)).reshape(B, h, w, c)

    x1n, x2n, x3n = to_nhwc(x1), to_nhwc(x2), to_nhwc(x3)

    scale_outs = []
    for wq, (ps, pad, stride) in zip((wq1, wq2, wq3), _SCALES):
        scale_outs.append(_cross_att_fa(x1n, x2n, x3n, wq, b, ah, aw, ps, pad, stride))
    s1, s2, s3 = (s.reshape(B * h * w, c) for s in scale_outs)

    fused = _fuse(s1, s2, s3, w_attn.reshape(3, 3 * c))   # (B*h*w, c)

    out = fused.reshape(b, ah, aw, h, w, c)               # -> b c ah aw h w
    return jnp.transpose(out, (0, 5, 1, 2, 3, 4))


# ---------------------------------------------------------------------------
# Pure-JAX reference mirroring the PyTorch module exactly (NCHW / torch order)
# ---------------------------------------------------------------------------
def _unfold_nchw(x, ps, pad, stride):
    B, C, H, W = x.shape
    xp = jnp.pad(x, ((0, 0), (0, 0), (pad, pad), (pad, pad)))
    nh = (H + 2 * pad - ps) // stride + 1
    nw = (W + 2 * pad - ps) // stride + 1
    patches = []
    for i in range(nh):
        for j in range(nw):
            patches.append(
                xp[:, :, i * stride:i * stride + ps,
                   j * stride:j * stride + ps].reshape(B, C * ps * ps))
    return jnp.stack(patches, axis=2)                 # (B, C*ps*ps, n)


def _fold_nchw(cols, hw, ps, pad, stride):
    B, P, n = cols.shape
    H, W = hw
    C = P // (ps * ps)
    nh = (H + 2 * pad - ps) // stride + 1
    nw = (W + 2 * pad - ps) // stride + 1
    cols = cols.reshape(B, C, ps, ps, nh, nw)
    canvas = jnp.zeros((B, C, H + 2 * pad, W + 2 * pad), dtype=cols.dtype)
    for i in range(nh):
        for j in range(nw):
            canvas = canvas.at[:, :, i * stride:i * stride + ps,
                               j * stride:j * stride + ps].add(cols[:, :, :, :, i, j])
    return canvas[:, :, pad:pad + H, pad:pad + W]


def _cross_att_fa_ref(x1, x2, x3, wq, ps, pad, stride):
    b, c, ah, aw, h, w = x1.shape
    B = b * ah * aw
    flat = lambda x: jnp.transpose(x, (0, 2, 3, 1, 4, 5)).reshape(B, c, h, w)
    x1f, x2f, x3f = flat(x1), flat(x2), flat(x3)
    cq = wq.shape[0]
    conv = lambda x: jnp.einsum('bchw,oc->bohw', x, wq.reshape(cq, c))

    q = _unfold_nchw(conv(x1f), ps, pad, stride)
    k = _unfold_nchw(conv(x2f), ps, pad, stride)
    v = _unfold_nchw(x3f, ps, pad, stride)
    n = v.shape[-1]
    p_v = v.shape[1]

    def group(t):                                     # '(b ah aw) p n -> b n (ah aw p)'
        p = t.shape[1]
        return jnp.transpose(t.reshape(b, ah * aw, p, n),
                             (0, 3, 1, 2)).reshape(b, n, ah * aw * p)

    qg, kg, vg = group(q), group(k), group(v)
    qn = qg / jnp.maximum(jnp.linalg.norm(qg, axis=-1, keepdims=True), 1e-12)
    kn = kg / jnp.maximum(jnp.linalg.norm(kg, axis=-1, keepdims=True), 1e-12)
    attn = jnp.einsum('bnd,bmd->bnm', qn, kn)
    idx = jnp.argmax(attn, axis=-1)                   # first index on ties
    out = jnp.take_along_axis(vg, idx[:, :, None], axis=1)

    out = jnp.transpose(out.reshape(b, n, ah * aw, p_v),
                        (0, 2, 3, 1)).reshape(B, p_v, n)
    out = _fold_nchw(out, (h, w), ps, pad, stride)
    return out.reshape(b, ah, aw, c, h, w).transpose(0, 3, 1, 2, 4, 5)


def ms_cross_att_fa_reference(x1, x2, x3, wq1, wq2, wq3, w_attn):
    b, c, ah, aw, h, w = x1.shape
    B = b * ah * aw
    s1 = _cross_att_fa_ref(x1, x2, x3, wq1, *_SCALES[0])
    s2 = _cross_att_fa_ref(x1, x2, x3, wq2, *_SCALES[1])
    s3 = _cross_att_fa_ref(x1, x2, x3, wq3, *_SCALES[2])
    flat = lambda x: jnp.transpose(x, (0, 2, 3, 1, 4, 5)).reshape(B, c, h, w)
    s1f, s2f, s3f = flat(s1), flat(s2), flat(s3)
    cat = jnp.concatenate([s1f, s2f, s3f], axis=1)
    logits = jnp.einsum('bchw,oc->bohw', cat, w_attn.reshape(3, 3 * c))
    a = jax.nn.softmax(logits, axis=1)
    out = a[:, 0:1] * s1f + a[:, 1:2] * s2f + a[:, 2:3] * s3f
    return out.reshape(b, ah, aw, c, h, w).transpose(0, 3, 1, 2, 4, 5)


# ---------------------------------------------------------------------------
if __name__ == "__main__":
    # Small shapes consistent with the module (nChannels must divide by 8).
    b, c, ah, aw, h, w = 2, 8, 2, 2, 16, 16

    key = jax.random.PRNGKey(0)
    k1, k2, k3, kq1, kq2, kq3, ka = jax.random.split(key, 7)
    x1 = jax.random.normal(k1, (b, c, ah, aw, h, w), dtype=jnp.float32)
    x2 = jax.random.normal(k2, (b, c, ah, aw, h, w), dtype=jnp.float32)
    x3 = jax.random.normal(k3, (b, c, ah, aw, h, w), dtype=jnp.float32)

    # PyTorch-layout weights (out, in, 1, 1), bias-free as in the module.
    cq = c // 8
    wq1 = 0.3 * jax.random.normal(kq1, (cq, c, 1, 1), dtype=jnp.float32)
    wq2 = 0.3 * jax.random.normal(kq2, (cq, c, 1, 1), dtype=jnp.float32)
    wq3 = 0.3 * jax.random.normal(kq3, (cq, c, 1, 1), dtype=jnp.float32)
    w_attn = 0.3 * jax.random.normal(ka, (3, 3 * c, 1, 1), dtype=jnp.float32)

    fwd = jax.jit(ms_cross_att_fa_pallas)
    out = fwd(x1, x2, x3, wq1, wq2, wq3, w_attn)
    jax.block_until_ready(out)

    ref = ms_cross_att_fa_reference(x1, x2, x3, wq1, wq2, wq3, w_attn)
    jax.block_until_ready(ref)

    assert out.shape == (b, c, ah, aw, h, w), out.shape
    if not jnp.allclose(out, ref, atol=2e-3, rtol=2e-3):
        err = jnp.max(jnp.abs(out - ref))
        raise AssertionError(f"Pallas MS_CrossAttFA mismatch (max abs err {err})")

    print("KERNEL_OK")
</pallas_src>

<mosaic_0001>
module attributes {stable_mosaic.version = 11 : i64} {
  func.func @_hard_xattn_kernel(%arg0: i32, %arg1: i32, %arg2: memref<1x9x196xf32, #tpu.memory_space<vmem>>, %arg3: memref<1x196x9xf32, #tpu.memory_space<vmem>>, %arg4: memref<1x9x1568xf32, #tpu.memory_space<vmem>>, %arg5: memref<1x9x1568xf32, #tpu.memory_space<vmem>>, %arg6: memref<9x9xf32, #tpu.memory_space<vmem>>) attributes {dimension_semantics = [#tpu.dimension_semantics<parallel>, #tpu.dimension_semantics<arbitrary>], iteration_bounds = array<i64: 2, 1>, scalar_prefetch = 0 : i64, scratch_operands = 1 : i64, tpu.core_type = #tpu.core_type<tc>, window_params = [{transform_indices = @transform_0, window_bounds = array<i64: 1, 9, 196>}, {transform_indices = @transform_1, window_bounds = array<i64: 1, 196, 9>}, {transform_indices = @transform_2, window_bounds = array<i64: 1, 9, 1568>}, {transform_indices = @transform_3, window_bounds = array<i64: 1, 9, 1568>}]} {
    %c0_i32 = arith.constant 0 : i32
    %0 = arith.cmpi eq, %arg1, %c0_i32 : i32
    %1 = arith.extui %0 : i1 to i32
    %c0_i32_0 = arith.constant 0 : i32
    %2 = arith.cmpi ne, %1, %c0_i32_0 : i32
    scf.if %2 {
      %c0_8 = arith.constant 0 : index
      %c0_9 = arith.constant 0 : index
      %c0_10 = arith.constant 0 : index
      %10 = vector.load %arg2[%c0_8, %c0_9, %c0_10] : memref<1x9x196xf32, #tpu.memory_space<vmem>>, vector<1x9x196xf32>
      %11 = vector.shape_cast %10 : vector<1x9x196xf32> to vector<9x196xf32>
      %c0_11 = arith.constant 0 : index
      %c0_12 = arith.constant 0 : index
      %c0_13 = arith.constant 0 : index
      %12 = vector.load %arg3[%c0_11, %c0_12, %c0_13] : memref<1x196x9xf32, #tpu.memory_space<vmem>>, vector<1x196x9xf32>
      %13 = vector.shape_cast %12 : vector<1x196x9xf32> to vector<196x9xf32>
      %cst_14 = arith.constant dense<0.000000e+00> : vector<9x9xf32>
      %14 = tpu.matmul %11, %13, %cst_14 {dimension_numbers = #tpu.dot_dimension_numbers<[1], [0], [0], [1], [0, 0, 1, 1], [], []>} : vector<9x196xf32>, vector<196x9xf32>, vector<9x9xf32> -> vector<9x9xf32>
      %15 = arith.mulf %13, %13 : vector<196x9xf32>
      %cst_15 = arith.constant dense<0.000000e+00> : vector<9xf32>
      %16 = vector.multi_reduction <add>, %15, %cst_15 [0] : vector<196x9xf32> to vector<9xf32>
      %17 = vector.shape_cast %16 : vector<9xf32> to vector<1x9xf32>
      %cst_16 = arith.constant 1.000000e-24 : f32
      %18 = vector.broadcast %cst_16 : f32 to vector<1x9xf32>
      %19 = arith.maximumf %17, %18 : vector<1x9xf32>
      %20 = math.rsqrt %19 : vector<1x9xf32>
      %21 = vector.broadcast %20 : vector<1x9xf32> to vector<9x9xf32>
      %22 = arith.mulf %14, %21 : vector<9x9xf32>
      %23 = tpu.iota {dimensions = array<i32: 1>} : vector<9x9xi32>
      %cst_17 = arith.constant dense<0xFF800000> : vector<9xf32>
      %24 = vector.multi_reduction <maximumf>, %22, %cst_17 [1] : vector<9x9xf32> to vector<9xf32>
      %25 = vector.shape_cast %24 : vector<9xf32> to vector<9x1xf32>
      %26 = vector.broadcast %25 : vector<9x1xf32> to vector<9x9xf32>
      %27 = arith.cmpf oge, %22, %26 : vector<9x9xf32>
      %c9_i32 = arith.constant 9 : i32
      %28 = vector.broadcast %c9_i32 : i32 to vector<9x9xi32>
      %29 = arith.select %27, %23, %28 : vector<9x9xi1>, vector<9x9xi32>
      %cst_18 = arith.constant dense<2147483647> : vector<9xi32>
      %30 = vector.multi_reduction <minsi>, %29, %cst_18 [1] : vector<9x9xi32> to vector<9xi32>
      %31 = vector.shape_cast %30 : vector<9xi32> to vector<9x1xi32>
      %32 = vector.broadcast %31 : vector<9x1xi32> to vector<9x9xi32>
      %33 = arith.cmpi eq, %23, %32 : vector<9x9xi32>
      %34 = arith.extui %33 : vector<9x9xi1> to vector<9x9xi32>
      %35 = arith.sitofp %34 : vector<9x9xi32> to vector<9x9xf32>
      %c0_19 = arith.constant 0 : index
      %c0_20 = arith.constant 0 : index
      %36 = vector.load %arg6[%c0_19, %c0_20] : memref<9x9xf32, #tpu.memory_space<vmem>>, vector<9x9xf32>
      tpu.vector_store %arg6[%c0_19, %c0_20], %35 {strides = array<i32>} : memref<9x9xf32, #tpu.memory_space<vmem>>, vector<9x9xf32>,
    } else {
    }
    %c0 = arith.constant 0 : index
    %c0_1 = arith.constant 0 : index
    %3 = vector.load %arg6[%c0, %c0_1] : memref<9x9xf32, #tpu.memory_space<vmem>>, vector<9x9xf32>
    %c0_2 = arith.constant 0 : index
    %c0_3 = arith.constant 0 : index
    %c0_4 = arith.constant 0 : index
    %4 = vector.load %arg4[%c0_2, %c0_3, %c0_4] : memref<1x9x1568xf32, #tpu.memory_space<vmem>>, vector<1x9x1568xf32>
    %5 = vector.shape_cast %4 : vector<1x9x1568xf32> to vector<9x1568xf32>
    %cst = arith.constant dense<0.000000e+00> : vector<9x1568xf32>
    %6 = tpu.matmul %3, %5, %cst {dimension_numbers = #tpu.dot_dimension_numbers<[1], [0], [0], [1], [0, 0, 1, 1], [], []>} : vector<9x9xf32>, vector<9x1568xf32>, vector<9x1568xf32> -> vector<9x1568xf32>
    %c0_5 = arith.constant 0 : index
    %c0_6 = arith.constant 0 : index
    %c0_7 = arith.constant 0 : index
    %7 = vector.load %arg5[%c0_5, %c0_6, %c0_7] : memref<1x9x1568xf32, #tpu.memory_space<vmem>>, vector<1x9x1568xf32>
    %8 = vector.shape_cast %7 : vector<1x9x1568xf32> to vector<9x1568xf32>
    %9 = vector.shape_cast %6 : vector<9x1568xf32> to vector<1x9x1568xf32>
    tpu.vector_store %arg5[%c0_5, %c0_6, %c0_7], %9 {strides = array<i32>} : memref<1x9x1568xf32, #tpu.memory_space<vmem>>, vector<1x9x1568xf32>,
    return
  }
  func.func @transform_0(%arg0: i32, %arg1: i32) -> (i32, i32, i32) {
    %c0_i32 = arith.constant 0 : i32
    %c0_i32_0 = arith.constant 0 : i32
    %c0_i32_1 = arith.constant 0 : i32
    return %arg0, %c0_i32, %c0_i32_0 : i32, i32, i32
  }
  func.func @transform_1(%arg0: i32, %arg1: i32) -> (i32, i32, i32) {
    %c0_i32 = arith.constant 0 : i32
    %c0_i32_0 = arith.constant 0 : i32
    %c0_i32_1 = arith.constant 0 : i32
    return %arg0, %c0_i32, %c0_i32_0 : i32, i32, i32
  }
  func.func @transform_2(%arg0: i32, %arg1: i32) -> (i32, i32, i32) {
    %c0_i32 = arith.constant 0 : i32
    %c0_i32_0 = arith.constant 0 : i32
    return %arg0, %c0_i32, %arg1 : i32, i32, i32
  }
  func.func @transform_3(%arg0: i32, %arg1: i32) -> (i32, i32, i32) {
    %c0_i32 = arith.constant 0 : i32
    %c0_i32_0 = arith.constant 0 : i32
    return %arg0, %c0_i32, %arg1 : i32, i32, i32
  }
}

module attributes {stable_mosaic.version = 11 : i64} {
  func.func @_hard_xattn_kernel(%arg0: i32, %arg1: i32, %arg2: memref<1x36x36xf32, #tpu.memory_space<vmem>>, %arg3: memref<1x36x36xf32, #tpu.memory_space<vmem>>, %arg4: memref<1x36x288xf32, #tpu.memory_space<vmem>>, %arg5: memref<1x36x288xf32, #tpu.memory_space<vmem>>, %arg6: memref<36x36xf32, #tpu.memory_space<vmem>>) attributes {dimension_semantics = [#tpu.dimension_semantics<parallel>, #tpu.dimension_semantics<arbitrary>], iteration_bounds = array<i64: 2, 1>, scalar_prefetch = 0 : i64, scratch_operands = 1 : i64, tpu.core_type = #tpu.core_type<tc>, window_params = [{transform_indices = @transform_0, window_bounds = array<i64: 1, 36, 36>}, {transform_indices = @transform_1, window_bounds = array<i64: 1, 36, 36>}, {transform_indices = @transform_2, window_bounds = array<i64: 1, 36, 288>}, {transform_indices = @transform_3, window_bounds = array<i64: 1, 36, 288>}]} {
    %c0_i32 = arith.constant 0 : i32
    %0 = arith.cmpi eq, %arg1, %c0_i32 : i32
    %1 = arith.extui %0 : i1 to i32
    %c0_i32_0 = arith.constant 0 : i32
    %2 = arith.cmpi ne, %1, %c0_i32_0 : i32
    scf.if %2 {
      %c0_8 = arith.constant 0 : index
      %c0_9 = arith.constant 0 : index
      %c0_10 = arith.constant 0 : index
      %10 = vector.load %arg2[%c0_8, %c0_9, %c0_10] : memref<1x36x36xf32, #tpu.memory_space<vmem>>, vector<1x36x36xf32>
      %11 = vector.shape_cast %10 : vector<1x36x36xf32> to vector<36x36xf32>
      %c0_11 = arith.constant 0 : index
      %c0_12 = arith.constant 0 : index
      %c0_13 = arith.constant 0 : index
      %12 = vector.load %arg3[%c0_11, %c0_12, %c0_13] : memref<1x36x36xf32, #tpu.memory_space<vmem>>, vector<1x36x36xf32>
      %13 = vector.shape_cast %12 : vector<1x36x36xf32> to vector<36x36xf32>
      %cst_14 = arith.constant dense<0.000000e+00> : vector<36x36xf32>
      %14 = tpu.matmul %11, %13, %cst_14 {dimension_numbers = #tpu.dot_dimension_numbers<[1], [0], [0], [1], [0, 0, 1, 1], [], []>} : vector<36x36xf32>, vector<36x36xf32>, vector<36x36xf32> -> vector<36x36xf32>
      %15 = arith.mulf %13, %13 : vector<36x36xf32>
      %cst_15 = arith.constant dense<0.000000e+00> : vector<36xf32>
      %16 = vector.multi_reduction <add>, %15, %cst_15 [0] : vector<36x36xf32> to vector<36xf32>
      %17 = vector.shape_cast %16 : vector<36xf32> to vector<1x36xf32>
      %cst_16 = arith.constant 1.000000e-24 : f32
      %18 = vector.broadcast %cst_16 : f32 to vector<1x36xf32>
      %19 = arith.maximumf %17, %18 : vector<1x36xf32>
      %20 = math.rsqrt %19 : vector<1x36xf32>
      %21 = vector.broadcast %20 : vector<1x36xf32> to vector<36x36xf32>
      %22 = arith.mulf %14, %21 : vector<36x36xf32>
      %23 = tpu.iota {dimensions = array<i32: 1>} : vector<36x36xi32>
      %cst_17 = arith.constant dense<0xFF800000> : vector<36xf32>
      %24 = vector.multi_reduction <maximumf>, %22, %cst_17 [1] : vector<36x36xf32> to vector<36xf32>
      %25 = vector.shape_cast %24 : vector<36xf32> to vector<36x1xf32>
      %26 = vector.broadcast %25 : vector<36x1xf32> to vector<36x36xf32>
      %27 = arith.cmpf oge, %22, %26 : vector<36x36xf32>
      %c36_i32 = arith.constant 36 : i32
      %28 = vector.broadcast %c36_i32 : i32 to vector<36x36xi32>
      %29 = arith.select %27, %23, %28 : vector<36x36xi1>, vector<36x36xi32>
      %cst_18 = arith.constant dense<2147483647> : vector<36xi32>
      %30 = vector.multi_reduction <minsi>, %29, %cst_18 [1] : vector<36x36xi32> to vector<36xi32>
      %31 = vector.shape_cast %30 : vector<36xi32> to vector<36x1xi32>
      %32 = vector.broadcast %31 : vector<36x1xi32> to vector<36x36xi32>
      %33 = arith.cmpi eq, %23, %32 : vector<36x36xi32>
      %34 = arith.extui %33 : vector<36x36xi1> to vector<36x36xi32>
      %35 = arith.sitofp %34 : vector<36x36xi32> to vector<36x36xf32>
      %c0_19 = arith.constant 0 : index
      %c0_20 = arith.constant 0 : index
      %36 = vector.load %arg6[%c0_19, %c0_20] : memref<36x36xf32, #tpu.memory_space<vmem>>, vector<36x36xf32>
      tpu.vector_store %arg6[%c0_19, %c0_20], %35 {strides = array<i32>} : memref<36x36xf32, #tpu.memory_space<vmem>>, vector<36x36xf32>,
    } else {
    }
    %c0 = arith.constant 0 : index
    %c0_1 = arith.constant 0 : index
    %3 = vector.load %arg6[%c0, %c0_1] : memref<36x36xf32, #tpu.memory_space<vmem>>, vector<36x36xf32>
    %c0_2 = arith.constant 0 : index
    %c0_3 = arith.constant 0 : index
    %c0_4 = arith.constant 0 : index
    %4 = vector.load %arg4[%c0_2, %c0_3, %c0_4] : memref<1x36x288xf32, #tpu.memory_space<vmem>>, vector<1x36x288xf32>
    %5 = vector.shape_cast %4 : vector<1x36x288xf32> to vector<36x288xf32>
    %cst = arith.constant dense<0.000000e+00> : vector<36x288xf32>
    %6 = tpu.matmul %3, %5, %cst {dimension_numbers = #tpu.dot_dimension_numbers<[1], [0], [0], [1], [0, 0, 1, 1], [], []>} : vector<36x36xf32>, vector<36x288xf32>, vector<36x288xf32> -> vector<36x288xf32>
    %c0_5 = arith.constant 0 : index
    %c0_6 = arith.constant 0 : index
    %c0_7 = arith.constant 0 : index
    %7 = vector.load %arg5[%c0_5, %c0_6, %c0_7] : memref<1x36x288xf32, #tpu.memory_space<vmem>>, vector<1x36x288xf32>
    %8 = vector.shape_cast %7 : vector<1x36x288xf32> to vector<36x288xf32>
    %9 = vector.shape_cast %6 : vector<36x288xf32> to vector<1x36x288xf32>
    tpu.vector_store %arg5[%c0_5, %c0_6, %c0_7], %9 {strides = array<i32>} : memref<1x36x288xf32, #tpu.memory_space<vmem>>, vector<1x36x288xf32>,
    return
  }
  func.func @transform_0(%arg0: i32, %arg1: i32) -> (i32, i32, i32) {
    %c0_i32 = arith.constant 0 : i32
    %c0_i32_0 = arith.constant 0 : i32
    %c0_i32_1 = arith.constant 0 : i32
    return %arg0, %c0_i32, %c0_i32_0 : i32, i32, i32
  }
  func.func @transform_1(%arg0: i32, %arg1: i32) -> (i32, i32, i32) {
    %c0_i32 = arith.constant 0 : i32
    %c0_i32_0 = arith.constant 0 : i32
    %c0_i32_1 = arith.constant 0 : i32
    return %arg0, %c0_i32, %c0_i32_0 : i32, i32, i32
  }
  func.func @transform_2(%arg0: i32, %arg1: i32) -> (i32, i32, i32) {
    %c0_i32 = arith.constant 0 : i32
    %c0_i32_0 = arith.constant 0 : i32
    return %arg0, %c0_i32, %arg1 : i32, i32, i32
  }
  func.func @transform_3(%arg0: i32, %arg1: i32) -> (i32, i32, i32) {
    %c0_i32 = arith.constant 0 : i32
    %c0_i32_0 = arith.constant 0 : i32
    return %arg0, %c0_i32, %arg1 : i32, i32, i32
  }
}

module attributes {stable_mosaic.version = 11 : i64} {
  func.func @_hard_xattn_kernel(%arg0: i32, %arg1: i32, %arg2: memref<1x16x100xf32, #tpu.memory_space<vmem>>, %arg3: memref<1x100x16xf32, #tpu.memory_space<vmem>>, %arg4: memref<1x16x800xf32, #tpu.memory_space<vmem>>, %arg5: memref<1x16x800xf32, #tpu.memory_space<vmem>>, %arg6: memref<16x16xf32, #tpu.memory_space<vmem>>) attributes {dimension_semantics = [#tpu.dimension_semantics<parallel>, #tpu.dimension_semantics<arbitrary>], iteration_bounds = array<i64: 2, 1>, scalar_prefetch = 0 : i64, scratch_operands = 1 : i64, tpu.core_type = #tpu.core_type<tc>, window_params = [{transform_indices = @transform_0, window_bounds = array<i64: 1, 16, 100>}, {transform_indices = @transform_1, window_bounds = array<i64: 1, 100, 16>}, {transform_indices = @transform_2, window_bounds = array<i64: 1, 16, 800>}, {transform_indices = @transform_3, window_bounds = array<i64: 1, 16, 800>}]} {
    %c0_i32 = arith.constant 0 : i32
    %0 = arith.cmpi eq, %arg1, %c0_i32 : i32
    %1 = arith.extui %0 : i1 to i32
    %c0_i32_0 = arith.constant 0 : i32
    %2 = arith.cmpi ne, %1, %c0_i32_0 : i32
    scf.if %2 {
      %c0_8 = arith.constant 0 : index
      %c0_9 = arith.constant 0 : index
      %c0_10 = arith.constant 0 : index
      %10 = vector.load %arg2[%c0_8, %c0_9, %c0_10] : memref<1x16x100xf32, #tpu.memory_space<vmem>>, vector<1x16x100xf32>
      %11 = vector.shape_cast %10 : vector<1x16x100xf32> to vector<16x100xf32>
      %c0_11 = arith.constant 0 : index
      %c0_12 = arith.constant 0 : index
      %c0_13 = arith.constant 0 : index
      %12 = vector.load %arg3[%c0_11, %c0_12, %c0_13] : memref<1x100x16xf32, #tpu.memory_space<vmem>>, vector<1x100x16xf32>
      %13 = vector.shape_cast %12 : vector<1x100x16xf32> to vector<100x16xf32>
      %cst_14 = arith.constant dense<0.000000e+00> : vector<16x16xf32>
      %14 = tpu.matmul %11, %13, %cst_14 {dimension_numbers = #tpu.dot_dimension_numbers<[1], [0], [0], [1], [0, 0, 1, 1], [], []>} : vector<16x100xf32>, vector<100x16xf32>, vector<16x16xf32> -> vector<16x16xf32>
      %15 = arith.mulf %13, %13 : vector<100x16xf32>
      %cst_15 = arith.constant dense<0.000000e+00> : vector<16xf32>
      %16 = vector.multi_reduction <add>, %15, %cst_15 [0] : vector<100x16xf32> to vector<16xf32>
      %17 = vector.shape_cast %16 : vector<16xf32> to vector<1x16xf32>
      %cst_16 = arith.constant 1.000000e-24 : f32
      %18 = vector.broadcast %cst_16 : f32 to vector<1x16xf32>
      %19 = arith.maximumf %17, %18 : vector<1x16xf32>
      %20 = math.rsqrt %19 : vector<1x16xf32>
      %21 = vector.broadcast %20 : vector<1x16xf32> to vector<16x16xf32>
      %22 = arith.mulf %14, %21 : vector<16x16xf32>
      %23 = tpu.iota {dimensions = array<i32: 1>} : vector<16x16xi32>
      %cst_17 = arith.constant dense<0xFF800000> : vector<16xf32>
      %24 = vector.multi_reduction <maximumf>, %22, %cst_17 [1] : vector<16x16xf32> to vector<16xf32>
      %25 = vector.shape_cast %24 : vector<16xf32> to vector<16x1xf32>
      %26 = vector.broadcast %25 : vector<16x1xf32> to vector<16x16xf32>
      %27 = arith.cmpf oge, %22, %26 : vector<16x16xf32>
      %c16_i32 = arith.constant 16 : i32
      %28 = vector.broadcast %c16_i32 : i32 to vector<16x16xi32>
      %29 = arith.select %27, %23, %28 : vector<16x16xi1>, vector<16x16xi32>
      %cst_18 = arith.constant dense<2147483647> : vector<16xi32>
      %30 = vector.multi_reduction <minsi>, %29, %cst_18 [1] : vector<16x16xi32> to vector<16xi32>
      %31 = vector.shape_cast %30 : vector<16xi32> to vector<16x1xi32>
      %32 = vector.broadcast %31 : vector<16x1xi32> to vector<16x16xi32>
      %33 = arith.cmpi eq, %23, %32 : vector<16x16xi32>
      %34 = arith.extui %33 : vector<16x16xi1> to vector<16x16xi32>
      %35 = arith.sitofp %34 : vector<16x16xi32> to vector<16x16xf32>
      %c0_19 = arith.constant 0 : index
      %c0_20 = arith.constant 0 : index
      %36 = vector.load %arg6[%c0_19, %c0_20] : memref<16x16xf32, #tpu.memory_space<vmem>>, vector<16x16xf32>
      tpu.vector_store %arg6[%c0_19, %c0_20], %35 {strides = array<i32>} : memref<16x16xf32, #tpu.memory_space<vmem>>, vector<16x16xf32>,
    } else {
    }
    %c0 = arith.constant 0 : index
    %c0_1 = arith.constant 0 : index
    %3 = vector.load %arg6[%c0, %c0_1] : memref<16x16xf32, #tpu.memory_space<vmem>>, vector<16x16xf32>
    %c0_2 = arith.constant 0 : index
    %c0_3 = arith.constant 0 : index
    %c0_4 = arith.constant 0 : index
    %4 = vector.load %arg4[%c0_2, %c0_3, %c0_4] : memref<1x16x800xf32, #tpu.memory_space<vmem>>, vector<1x16x800xf32>
    %5 = vector.shape_cast %4 : vector<1x16x800xf32> to vector<16x800xf32>
    %cst = arith.constant dense<0.000000e+00> : vector<16x800xf32>
    %6 = tpu.matmul %3, %5, %cst {dimension_numbers = #tpu.dot_dimension_numbers<[1], [0], [0], [1], [0, 0, 1, 1], [], []>} : vector<16x16xf32>, vector<16x800xf32>, vector<16x800xf32> -> vector<16x800xf32>
    %c0_5 = arith.constant 0 : index
    %c0_6 = arith.constant 0 : index
    %c0_7 = arith.constant 0 : index
    %7 = vector.load %arg5[%c0_5, %c0_6, %c0_7] : memref<1x16x800xf32, #tpu.memory_space<vmem>>, vector<1x16x800xf32>
    %8 = vector.shape_cast %7 : vector<1x16x800xf32> to vector<16x800xf32>
    %9 = vector.shape_cast %6 : vector<16x800xf32> to vector<1x16x800xf32>
    tpu.vector_store %arg5[%c0_5, %c0_6, %c0_7], %9 {strides = array<i32>} : memref<1x16x800xf32, #tpu.memory_space<vmem>>, vector<1x16x800xf32>,
    return
  }
  func.func @transform_0(%arg0: i32, %arg1: i32) -> (i32, i32, i32) {
    %c0_i32 = arith.constant 0 : i32
    %c0_i32_0 = arith.constant 0 : i32
    %c0_i32_1 = arith.constant 0 : i32
    return %arg0, %c0_i32, %c0_i32_0 : i32, i32, i32
  }
  func.func @transform_1(%arg0: i32, %arg1: i32) -> (i32, i32, i32) {
    %c0_i32 = arith.constant 0 : i32
    %c0_i32_0 = arith.constant 0 : i32
    %c0_i32_1 = arith.constant 0 : i32
    return %arg0, %c0_i32, %c0_i32_0 : i32, i32, i32
  }
  func.func @transform_2(%arg0: i32, %arg1: i32) -> (i32, i32, i32) {
    %c0_i32 = arith.constant 0 : i32
    %c0_i32_0 = arith.constant 0 : i32
    return %arg0, %c0_i32, %arg1 : i32, i32, i32
  }
  func.func @transform_3(%arg0: i32, %arg1: i32) -> (i32, i32, i32) {
    %c0_i32 = arith.constant 0 : i32
    %c0_i32_0 = arith.constant 0 : i32
    return %arg0, %c0_i32, %arg1 : i32, i32, i32
  }
}

module attributes {stable_mosaic.version = 11 : i64} {
  func.func @_fuse_kernel(%arg0: i32, %arg1: memref<128x128xf32, #tpu.memory_space<vmem>>, %arg2: memref<128x128xf32, #tpu.memory_space<vmem>>, %arg3: memref<128x128xf32, #tpu.memory_space<vmem>>, %arg4: memref<128x384xf32, #tpu.memory_space<vmem>>, %arg5: memref<128x384xf32, #tpu.memory_space<vmem>>, %arg6: memref<128x384xf32, #tpu.memory_space<vmem>>, %arg7: memref<128x128xf32, #tpu.memory_space<vmem>>) attributes {dimension_semantics = [#tpu.dimension_semantics<parallel>], iteration_bounds = array<i64: 1>, scalar_prefetch = 0 : i64, scratch_operands = 0 : i64, tpu.core_type = #tpu.core_type<tc>, window_params = [{transform_indices = @transform_0, window_bounds = array<i64: 128, 128>}, {transform_indices = @transform_1, window_bounds = array<i64: 128, 128>}, {transform_indices = @transform_2, window_bounds = array<i64: 128, 128>}, {pipeline_mode = #tpu.pipeline_mode<synchronous>, transform_indices = @transform_3, window_bounds = array<i64: 128, 384>}, {pipeline_mode = #tpu.pipeline_mode<synchronous>, transform_indices = @transform_4, window_bounds = array<i64: 128, 384>}, {pipeline_mode = #tpu.pipeline_mode<synchronous>, transform_indices = @transform_5, window_bounds = array<i64: 128, 384>}, {transform_indices = @transform_6, window_bounds = array<i64: 128, 128>}]} {
    %c0 = arith.constant 0 : index
    %c0_0 = arith.constant 0 : index
    %0 = vector.load %arg1[%c0, %c0_0] : memref<128x128xf32, #tpu.memory_space<vmem>>, vector<128x128xf32>
    %c0_1 = arith.constant 0 : index
    %c0_2 = arith.constant 0 : index
    %1 = vector.load %arg2[%c0_1, %c0_2] : memref<128x128xf32, #tpu.memory_space<vmem>>, vector<128x128xf32>
    %c0_3 = arith.constant 0 : index
    %c0_4 = arith.constant 0 : index
    %2 = vector.load %arg3[%c0_3, %c0_4] : memref<128x128xf32, #tpu.memory_space<vmem>>, vector<128x128xf32>
    %c0_5 = arith.constant 0 : index
    %c0_6 = arith.constant 0 : index
    %3 = vector.load %arg4[%c0_5, %c0_6] : memref<128x384xf32, #tpu.memory_space<vmem>>, vector<128x384xf32>
    %cst = arith.constant dense<0.000000e+00> : vector<128x384xf32>
    %4 = tpu.matmul %0, %3, %cst {dimension_numbers = #tpu.dot_dimension_numbers<[1], [0], [0], [1], [0, 0, 1, 1], [], []>} : vector<128x128xf32>, vector<128x384xf32>, vector<128x384xf32> -> vector<128x384xf32>
    %c0_7 = arith.constant 0 : index
    %c0_8 = arith.constant 0 : index
    %5 = vector.load %arg5[%c0_7, %c0_8] : memref<128x384xf32, #tpu.memory_space<vmem>>, vector<128x384xf32>
    %cst_9 = arith.constant dense<0.000000e+00> : vector<128x384xf32>
    %6 = tpu.matmul %1, %5, %cst_9 {dimension_numbers = #tpu.dot_dimension_numbers<[1], [0], [0], [1], [0, 0, 1, 1], [], []>} : vector<128x128xf32>, vector<128x384xf32>, vector<128x384xf32> -> vector<128x384xf32>
    %7 = arith.addf %4, %6 : vector<128x384xf32>
    %c0_10 = arith.constant 0 : index
    %c0_11 = arith.constant 0 : index
    %8 = vector.load %arg6[%c0_10, %c0_11] : memref<128x384xf32, #tpu.memory_space<vmem>>, vector<128x384xf32>
    %cst_12 = arith.constant dense<0.000000e+00> : vector<128x384xf32>
    %9 = tpu.matmul %2, %8, %cst_12 {dimension_numbers = #tpu.dot_dimension_numbers<[1], [0], [0], [1], [0, 0, 1, 1], [], []>} : vector<128x128xf32>, vector<128x384xf32>, vector<128x384xf32> -> vector<128x384xf32>
    %10 = arith.addf %7, %9 : vector<128x384xf32>
    %11 = vector.extract_strided_slice %10 {offsets = [0, 0], sizes = [128, 128], strides = [1, 1]} : vector<128x384xf32> to vector<128x128xf32>
    %12 = vector.extract_strided_slice %10 {offsets = [0, 128], sizes = [128, 128], strides = [1, 1]} : vector<128x384xf32> to vector<128x128xf32>
    %13 = vector.extract_strided_slice %10 {offsets = [0, 256], sizes = [128, 128], strides = [1, 1]} : vector<128x384xf32> to vector<128x128xf32>
    %14 = arith.maximumf %11, %12 : vector<128x128xf32>
    %15 = arith.maximumf %14, %13 : vector<128x128xf32>
    %16 = arith.subf %11, %15 : vector<128x128xf32>
    %17 = math.exp %16 : vector<128x128xf32>
    %18 = arith.subf %12, %15 : vector<128x128xf32>
    %19 = math.exp %18 : vector<128x128xf32>
    %20 = arith.subf %13, %15 : vector<128x128xf32>
    %21 = math.exp %20 : vector<128x128xf32>
    %22 = arith.addf %17, %19 : vector<128x128xf32>
    %23 = arith.addf %22, %21 : vector<128x128xf32>
    %cst_13 = arith.constant 1.000000e+00 : f32
    %24 = vector.broadcast %cst_13 : f32 to vector<128x128xf32>
    %25 = arith.divf %24, %23 : vector<128x128xf32>
    %26 = arith.mulf %17, %25 : vector<128x128xf32>
    %27 = arith.mulf %26, %0 : vector<128x128xf32>
    %28 = arith.mulf %19, %25 : vector<128x128xf32>
    %29 = arith.mulf %28, %1 : vector<128x128xf32>
    %30 = arith.addf %27, %29 : vector<128x128xf32>
    %31 = arith.mulf %21, %25 : vector<128x128xf32>
    %32 = arith.mulf %31, %2 : vector<128x128xf32>
    %33 = arith.addf %30, %32 : vector<128x128xf32>
    %c0_14 = arith.constant 0 : index
    %c0_15 = arith.constant 0 : index
    %34 = vector.load %arg7[%c0_14, %c0_15] : memref<128x128xf32, #tpu.memory_space<vmem>>, vector<128x128xf32>
    tpu.vector_store %arg7[%c0_14, %c0_15], %33 {strides = array<i32>} : memref<128x128xf32, #tpu.memory_space<vmem>>, vector<128x128xf32>,
    return
  }
  func.func @transform_0(%arg0: i32) -> (i32, i32) {
    %c0_i32 = arith.constant 0 : i32
    %c0_i32_0 = arith.constant 0 : i32
    return %arg0, %c0_i32 : i32, i32
  }
  func.func @transform_1(%arg0: i32) -> (i32, i32) {
    %c0_i32 = arith.constant 0 : i32
    %c0_i32_0 = arith.constant 0 : i32
    return %arg0, %c0_i32 : i32, i32
  }
  func.func @transform_2(%arg0: i32) -> (i32, i32) {
    %c0_i32 = arith.constant 0 : i32
    %c0_i32_0 = arith.constant 0 : i32
    return %arg0, %c0_i32 : i32, i32
  }
  func.func @transform_3(%arg0: i32) -> (i32, i32) {
    %c0_i32 = arith.constant 0 : i32
    %c0_i32_0 = arith.constant 0 : i32
    %c0_i32_1 = arith.constant 0 : i32
    return %c0_i32, %c0_i32_0 : i32, i32
  }
  func.func @transform_4(%arg0: i32) -> (i32, i32) {
    %c0_i32 = arith.constant 0 : i32
    %c0_i32_0 = arith.constant 0 : i32
    %c0_i32_1 = arith.constant 0 : i32
    return %c0_i32, %c0_i32_0 : i32, i32
  }
  func.func @transform_5(%arg0: i32) -> (i32, i32) {
    %c0_i32 = arith.constant 0 : i32
    %c0_i32_0 = arith.constant 0 : i32
    %c0_i32_1 = arith.constant 0 : i32
    return %c0_i32, %c0_i32_0 : i32, i32
  }
  func.func @transform_6(%arg0: i32) -> (i32, i32) {
    %c0_i32 = arith.constant 0 : i32
    %c0_i32_0 = arith.constant 0 : i32
    return %arg0, %c0_i32 : i32, i32
  }
}

</mosaic_0001>

<llo_original>
// kernel: ms_cross_att_fa_pallas.6
$region0: #{ms_cross_att_fa_pallas.6}
  #allocation0 [shape = 'u32[]', space=smem, size = 0x4, offset = 0x4, fixed_abs, tag = 'smem constant byte address 0x4 - core index']
  #allocation1 [shape = 'u32[144,128]{1,0:T(1,128)}', space=vmem, size = 0x12000, scoped, tag = 'internal scratch']
  #allocation2 [shape = 'f32[9,9]{1,0:T(8,128)}', space=vmem, size = 0x2000, scoped, tag = 'scratch operand']
  %s0 = inlined_call_operand.vmem [shape: f32[2,9,196], index: 0, kind: input, shape index: {}]
  %s1 = inlined_call_operand.vmem [shape: f32[2,196,9], index: 1, kind: input, shape index: {}]
  %s2 = inlined_call_operand.vmem [shape: f32[2,9,1568], index: 2, kind: input, shape index: {}]
  %s3 = inlined_call_operand.vmem [shape: f32[2,9,1568], index: 3, kind: output, shape index: {}]
  %s4 = sld [smem:[#allocation0]]
  $region49: #{ms_cross_att_fa_pallas.6} parent=0
    _
  %s6 = ssub.s32 1, %s4
  %s7 = scalar_select 0, %s6, %s4
  loop: start=0, step=1, limit=4
  $region2: #{ms_cross_att_fa_pallas.6} parent=0 // loop_pre_header
    _
  $region3: #{ms_cross_att_fa_pallas.6} parent=0 // loop_header
    %s9 = sphi 0, %s13
    %p10 = scmp.ge.s32.totalorder %s9, 4
    %s16 = sphi 0, %s28
    %s17 = sphi 0, %s24
    %s18 = sphi 0, %s16
    %s19 = sphi 0, %s17
    %s20 = sphi 0, %s18
    %s21 = sphi 0, %s19
    %s31 = sphi 0, %s33
    %s34 = sphi 0, %s31
    %s35 = sphi 0, %s34
    %s51 = sphi 0, %s35
    %s57 = sphi 0, %s59
    %s60 = sphi 0, %s57
    %s61 = sphi 0, %s60
    %s77 = sphi 0, %s61
    %s85 = sphi 0, %s87
    %s88 = sphi 0, %s85
    %s89 = sphi 0, %s88
    %s105 = sphi 0, %s89
    %s113 = sphi 0, %s115
    %s116 = sphi 0, %s113
    %s117 = sphi 0, %s116
    %s133 = sphi 0, %s117
  $region4: #{ms_cross_att_fa_pallas.6} parent=0 // loop_header_branch
    %12 = sbr.rel (%p10) target = $region8
  $region5: #{ms_cross_att_fa_pallas.6} parent=0 // loop_body
    %s14 = ssub.s32 %s9, 1
    %s15 = ssub.s32 %s9, 2
    %s22 = sadd.s32 1, %s17
    %p23 = scmp.ge.s32.totalorder %s22, 1
    %s24 = scalar_select %p23, 0, %s22
    %s25 = sadd.s32 1, %s16
    %s26 = scalar_select %p23, %s25, %s16
    %p27 = scmp.ge.s32.totalorder %s26, 2
    %s28 = scalar_select %p27, 0, %s26
    %s29 = ssub.s32 %s16, %s28
    %p30 = scmp.eq.s32.totalorder %s29, 0
    %s32 = sadd.s32 %s31, 1
    %s33 = scalar_select %p30, %s31, %s32
    %p36 = pneg %p30
    %p37 = scmp.eq.s32.totalorder %s9, 1
    %p38 = por %p36, %p37
    %p39 = scmp.ne.s32.totalorder %s31, %s34
    %p40 = scmp.eq.s32.totalorder %s9, 0
    %p41 = por %p39, %p40
    %p42 = scmp.ne.s32.totalorder %s31, %s34
    %p43 = scmp.eq.s32.totalorder %s14, 1
    %p44 = por %p42, %p43
    %p45 = scmp.ne.s32.totalorder %s34, %s35
    %p46 = scmp.eq.s32.totalorder %s14, 0
    %p47 = por %p45, %p46
    %p48 = scmp.ne.s32.totalorder %s34, %s35
    %p49 = scmp.eq.s32.totalorder %s15, 1
    %p50 = por %p48, %p49
    %p52 = scmp.ne.s32.totalorder %s35, %s51
    %p53 = scmp.eq.s32.totalorder %s15, 0
    %p54 = por %p52, %p53
    %s55 = ssub.s32 %s16, %s28
    %p56 = scmp.eq.s32.totalorder %s55, 0
    %s58 = sadd.s32 %s57, 1
    %s59 = scalar_select %p56, %s57, %s58
    %p62 = pneg %p56
    %p63 = scmp.eq.s32.totalorder %s9, 1
    %p64 = por %p62, %p63
    %p65 = scmp.ne.s32.totalorder %s57, %s60
    %p66 = scmp.eq.s32.totalorder %s9, 0
    %p67 = por %p65, %p66
    %p68 = scmp.ne.s32.totalorder %s57, %s60
    %p69 = scmp.eq.s32.totalorder %s14, 1
    %p70 = por %p68, %p69
    %p71 = scmp.ne.s32.totalorder %s60, %s61
    %p72 = scmp.eq.s32.totalorder %s14, 0
    %p73 = por %p71, %p72
    %p74 = scmp.ne.s32.totalorder %s60, %s61
    %p75 = scmp.eq.s32.totalorder %s15, 1
    %p76 = por %p74, %p75
    %p78 = scmp.ne.s32.totalorder %s61, %s77
    %p79 = scmp.eq.s32.totalorder %s15, 0
    %p80 = por %p78, %p79
    %s81 = ssub.s32 %s16, %s28
    %s82 = ssub.s32 %s17, %s24
    %s83 = sor.u32 %s81, %s82
    %p84 = scmp.eq.s32.totalorder %s83, 0
    %s86 = sadd.s32 %s85, 1
    %s87 = scalar_select %p84, %s85, %s86
    %p90 = pneg %p84
    %p91 = scmp.eq.s32.totalorder %s9, 1
    %p92 = por %p90, %p91
    %p93 = scmp.ne.s32.totalorder %s85, %s88
    %p94 = scmp.eq.s32.totalorder %s9, 0
    %p95 = por %p93, %p94
    %p96 = scmp.ne.s32.totalorder %s85, %s88
    %p97 = scmp.eq.s32.totalorder %s14, 1
    %p98 = por %p96, %p97
    %p99 = scmp.ne.s32.totalorder %s88, %s89
    %p100 = scmp.eq.s32.totalorder %s14, 0
    %p101 = por %p99, %p100
    %p102 = scmp.ne.s32.totalorder %s88, %s89
    %p103 = scmp.eq.s32.totalorder %s15, 1
    %p104 = por %p102, %p103
    %p106 = scmp.ne.s32.totalorder %s89, %s105
    %p107 = scmp.eq.s32.totalorder %s15, 0
    %p108 = por %p106, %p107
    %s109 = ssub.s32 %s16, %s28
    %s110 = ssub.s32 %s17, %s24
    %s111 = sor.u32 %s109, %s110
    %p112 = scmp.eq.s32.totalorder %s111, 0
    %s114 = sadd.s32 %s113, 1
    %s115 = scalar_select %p112, %s113, %s114
    %p118 = pneg %p112
    %p119 = scmp.eq.s32.totalorder %s9, 1
    %p120 = por %p118, %p119
    %p121 = scmp.ne.s32.totalorder %s113, %s116
    %p122 = scmp.eq.s32.totalorder %s9, 0
    %p123 = por %p121, %p122
    %p124 = scmp.ne.s32.totalorder %s113, %s116
    %p125 = scmp.eq.s32.totalorder %s14, 1
    %p126 = por %p124, %p125
    %p127 = scmp.ne.s32.totalorder %s116, %s117
    %p128 = scmp.eq.s32.totalorder %s14, 0
    %p129 = por %p127, %p128
    %p130 = scmp.ne.s32.totalorder %s116, %s117
    %p131 = scmp.eq.s32.totalorder %s15, 1
    %p132 = por %p130, %p131
    %p134 = scmp.ne.s32.totalorder %s117, %s133
    %p135 = scmp.eq.s32.totalorder %s15, 0
    %p136 = por %p134, %p135
    %p137 = scmp.le.s32.totalorder 1, %s9
    %p138 = scmp.lt.s32.totalorder %s9, 3
    %p139 = pnand %p137, %p138
    %p140 = pneg %p139
    // Predicated region
    $region9: #{ms_cross_att_fa_pallas.6} parent=5 // pred_check
      _
    $region10: #{ms_cross_att_fa_pallas.6} parent=5 // pred_check_branch
      %142 = sbr.rel (%p139) target = $region12
    $region11: #{ms_cross_att_fa_pallas.6} parent=5 // pred_region
      %s143 = ssub.s32 %s9, 1
    $region12: #{ms_cross_att_fa_pallas.6} parent=5 // pred_fallthru
      _
    %p144 = scmp.lt.s32.totalorder %s9, 2
    // Predicated region
    $region13: #{ms_cross_att_fa_pallas.6} parent=5 // pred_check
      %p145 = pneg %p144
    $region14: #{ms_cross_att_fa_pallas.6} parent=5 // pred_check_branch
      %147 = sbr.rel (%p145) target = $region16
    $region15: #{ms_cross_att_fa_pallas.6} parent=5 // pred_region
      // Predicated region
      $region17: #{ms_cross_att_fa_pallas.6} parent=15 // pred_check
        %p148 = pneg %p41
      $region18: #{ms_cross_att_fa_pallas.6} parent=15 // pred_check_branch
        %150 = sbr.rel (%p148) target = $region20
      $region19: #{ms_cross_att_fa_pallas.6} parent=15 // pred_region
        %p151 = scmp.lt.s32.totalorder %s16, 1
        %s152 = scalar_select %p151, %s16, 1
        %s153 = smul.addr %s152, 4
        %s154 = smul.addr %s153, 8
        %s155 = scalar_lea.vmem %s0, %s154
      $region20: #{ms_cross_att_fa_pallas.6} parent=15 // pred_fallthru
        _
      // Predicated region
      $region21: #{ms_cross_att_fa_pallas.6} parent=15 // pred_check
        %p156 = pneg %p67
      $region22: #{ms_cross_att_fa_pallas.6} parent=15 // pred_check_branch
        %158 = sbr.rel (%p156) target = $region24
      $region23: #{ms_cross_att_fa_pallas.6} parent=15 // pred_region
        %p159 = scmp.lt.s32.totalorder %s16, 1
        %s160 = scalar_select %p159, %s16, 1
        %s161 = smul.addr %s160, 25
        %s162 = smul.addr %s161, 8
        %s163 = scalar_lea.vmem %s1, %s162
      $region24: #{ms_cross_att_fa_pallas.6} parent=15 // pred_fallthru
        _
      // Predicated region
      $region25: #{ms_cross_att_fa_pallas.6} parent=15 // pred_check
        %p164 = pneg %p95
      $region26: #{ms_cross_att_fa_pallas.6} parent=15 // pred_check_branch
        %166 = sbr.rel (%p164) target = $region28
      $region27: #{ms_cross_att_fa_pallas.6} parent=15 // pred_region
        %s167 = smul.u32 13, %s17
        %p168 = scmp.lt.s32.totalorder %s16, 1
        %s169 = scalar_select %p168, %s16, 1
        %p170 = scmp.lt.s32.totalorder %s167, 12
        %s171 = scalar_select %p170, %s167, 12
        %s172 = smul.addr %s169, 26
        %s173 = sadd.s32 %s171, %s172
        %s174 = smul.addr %s173, 8
        %s175 = scalar_lea.vmem %s2, %s174
        %s176 = smul.u32 13, %s17
      $region28: #{ms_cross_att_fa_pallas.6} parent=15 // pred_fallthru
        _
    $region16: #{ms_cross_att_fa_pallas.6} parent=5 // pred_fallthru
      _
    %p177 = scmp.le.s32.totalorder 1, %s9
    %p178 = scmp.lt.s32.totalorder %s9, 3
    %p179 = pnand %p177, %p178
    %p180 = pneg %p179
    // Predicated region
    $region29: #{ms_cross_att_fa_pallas.6} parent=5 // pred_check
      _
    $region30: #{ms_cross_att_fa_pallas.6} parent=5 // pred_check_branch
      %182 = sbr.rel (%p179) target = $region32
    $region31: #{ms_cross_att_fa_pallas.6} parent=5 // pred_region
      %s183 = ssub.s32 %s9, 1
      %p184 = scmp.lt.s32.totalorder %s18, 1
      %s185 = scalar_select %p184, %s18, 1
      %s186 = smul.addr %s185, 4
      %s187 = smul.addr %s186, 8
      %s188 = scalar_lea.vmem %s0, %s187
      %p189 = pneg %p47
      %p190 = pneg %p44
      %p191 = scmp.lt.s32.totalorder %s18, 1
      %s192 = scalar_select %p191, %s18, 1
      %s193 = smul.addr %s192, 25
      %s194 = smul.addr %s193, 8
      %s195 = scalar_lea.vmem %s1, %s194
      %p196 = pneg %p73
      %p197 = pneg %p70
      %s198 = smul.u32 13, %s19
      %p199 = scmp.lt.s32.totalorder %s18, 1
      %s200 = scalar_select %p199, %s18, 1
      %p201 = scmp.lt.s32.totalorder %s198, 12
      %s202 = scalar_select %p201, %s198, 12
      %s203 = smul.addr %s200, 26
      %s204 = sadd.s32 %s202, %s203
      %s205 = smul.addr %s204, 8
      %s206 = scalar_lea.vmem %s2, %s205
      %p207 = pneg %p101
      %p208 = pneg %p98
      %p209 = pneg %p129
      %p210 = pneg %p126
      %s211 = smul.u32 13, %s19
      %p212 = scmp.lt.s32.totalorder %s18, 1
      %s213 = scalar_select %p212, %s18, 1
      %p214 = scmp.lt.s32.totalorder %s211, 12
      %s215 = scalar_select %p214, %s211, 12
      %s216 = smul.addr %s213, 26
      %s217 = sadd.s32 %s215, %s216
      %s218 = smul.addr %s217, 8
      %s219 = scalar_lea.vmem %s3, %s218
      %p220 = scmp.lt.s32.totalorder %s18, 1
      %s221 = scalar_select %p220, %s18, 1
      %s222 = smul.addr %s221, 4
      %s223 = smul.addr %s222, 8
      %s224 = scalar_lea.vmem %s0, %s223
      %p225 = scmp.lt.s32.totalorder %s18, 1
      %s226 = scalar_select %p225, %s18, 1
      %s227 = smul.addr %s226, 25
      %s228 = smul.addr %s227, 8
      %s229 = scalar_lea.vmem %s1, %s228
      %s230 = smul.u32 13, %s19
      %p231 = scmp.lt.s32.totalorder %s18, 1
      %s232 = scalar_select %p231, %s18, 1
      %p233 = scmp.lt.s32.totalorder %s230, 12
      %s234 = scalar_select %p233, %s230, 12
      %s235 = smul.addr %s232, 26
      %s236 = sadd.s32 %s234, %s235
      %s237 = smul.addr %s236, 8
      %s238 = scalar_lea.vmem %s2, %s237
      %s239 = smul.u32 13, %s19
      %s240 = smul.u32 13, %s19
      %p241 = scmp.lt.s32.totalorder %s18, 1
      %s242 = scalar_select %p241, %s18, 1
      %p243 = scmp.lt.s32.totalorder %s240, 12
      %s244 = scalar_select %p243, %s240, 12
      %s245 = smul.addr %s242, 26
      %s246 = sadd.s32 %s244, %s245
      %s247 = smul.addr %s246, 8
      %s248 = scalar_lea.vmem %s3, %s247
      %s249 = smul.u32 13, %s19
      %p250 = scmp.eq.s32.totalorder %s19, 0
      // Predicated region
      $region33: #{ms_cross_att_fa_pallas.6} parent=31 // pred_check
        %p251 = pneg %p250
      $region34: #{ms_cross_att_fa_pallas.6} parent=31 // pred_check_branch
        %253 = sbr.rel (%p251) target = $region36
      $region35: #{ms_cross_att_fa_pallas.6} parent=31 // pred_region
        %v254 = vld [vmem:[%s224] sm:$0xff]
        %v255 = vld [vmem:[%s224 + $0x8] sm:$0xff]
        %v256 = vld [vmem:[%s224 + $0x10] sm:$0x1]
        %v257 = vld [vmem:[%s224 + $0x18] sm:$0x1]
        %v258 = vld [vmem:[%s229] sm:$0xff]
        %v259 = vld [vmem:[%s229 + $0x8] sm:$0xff]
        %v260 = vld [vmem:[%s229 + $0x10] sm:$0xff]
        %v261 = vld [vmem:[%s229 + $0x18] sm:$0xff]
        %v262 = vld [vmem:[%s229 + $0x20] sm:$0xff]
        %v263 = vld [vmem:[%s229 + $0x28] sm:$0xff]
        %v264 = vld [vmem:[%s229 + $0x30] sm:$0xff]
        %v265 = vld [vmem:[%s229 + $0x38] sm:$0xff]
        %v266 = vld [vmem:[%s229 + $0x40] sm:$0xff]
        %v267 = vld [vmem:[%s229 + $0x48] sm:$0xff]
        %v268 = vld [vmem:[%s229 + $0x50] sm:$0xff]
        %v269 = vld [vmem:[%s229 + $0x58] sm:$0xff]
        %v270 = vld [vmem:[%s229 + $0x60] sm:$0xff]
        %v271 = vld [vmem:[%s229 + $0x68] sm:$0xff]
        %v272 = vld [vmem:[%s229 + $0x70] sm:$0xff]
        %v273 = vld [vmem:[%s229 + $0x78] sm:$0xff]
        %v274 = vld [vmem:[%s229 + $0x80] sm:$0xff]
        %v275 = vld [vmem:[%s229 + $0x88] sm:$0xff]
        %v276 = vld [vmem:[%s229 + $0x90] sm:$0xff]
        %v277 = vld [vmem:[%s229 + $0x98] sm:$0xff]
        %v278 = vld [vmem:[%s229 + $0xa0] sm:$0xff]
        %v279 = vld [vmem:[%s229 + $0xa8] sm:$0xff]
        %v280 = vld [vmem:[%s229 + $0xb0] sm:$0xff]
        %v281 = vld [vmem:[%s229 + $0xb8] sm:$0xff]
        %v282 = vld [vmem:[%s229 + $0xc0] sm:$0xf]
        %vm283 = vcmask 556032
        %v285 = vsel %vm283, %v255, 0
        %v288 = vsel %vm283, %v257, 0
        %vm290 = vcmask 1043456
        %v292 = vsel %vm290, %v282, 0
        %294 = vmatprep.subr.mxu0 0.0
        %295 = vmatpush1.msra.mxu0 %v273
        %296 = vmatprep.subr.mxu0 0.0
        %297 = vmatpush1.msra.mxu0 %v272
        %298 = vmatprep.subr.mxu0 0.0
        %299 = vmatpush1.msra.mxu0 %v271
        %300 = vmatprep.subr.mxu0 0.0
        %301 = vmatpush1.msra.mxu0 %v270
        %302 = vmatprep.subr.mxu0 0.0
        %303 = vmatpush1.msra.mxu0 %v269
        %304 = vmatprep.subr.mxu0 0.0
        %305 = vmatpush1.msra.mxu0 %v268
        %306 = vmatprep.subr.mxu0 0.0
        %307 = vmatpush1.msra.mxu0 %v267
        %308 = vmatprep.subr.mxu0 0.0
        %309 = vmatpush1.msra.mxu0 %v266
        %310 = vmatprep.subr.mxu0 0.0
        %311 = vmatpush1.msra.mxu0 %v265
        %312 = vmatprep.subr.mxu0 0.0
        %313 = vmatpush1.msra.mxu0 %v264
        %314 = vmatprep.subr.mxu0 0.0
        %315 = vmatpush1.msra.mxu0 %v263
        %316 = vmatprep.subr.mxu0 0.0
        %317 = vmatpush1.msra.mxu0 %v262
        %318 = vmatprep.subr.mxu0 0.0
        %319 = vmatpush1.msra.mxu0 %v261
        %320 = vmatprep.subr.mxu0 0.0
        %321 = vmatpush1.msra.mxu0 %v260
        %322 = vmatprep.subr.mxu0 0.0
        %323 = vmatpush1.msra.mxu0 %v259
        %324 = vmatprep.subr.mxu0 0.0
        %325 = vmatpush1.msra.mxu0 %v258
        %326 = vmatprep.subr.mxu0 0.0
        %327 = vmatpush2.msra.mxu0 0.0
        %328 = vmatprep.subr.mxu0 0.0
        %329 = vmatpush2.msra.mxu0 0.0
        %330 = vmatprep.subr.mxu0 0.0
        %331 = vmatpush2.msra.mxu0 0.0
        %332 = vmatprep.subr.mxu0 0.0
        %333 = vmatpush2.msra.mxu0 0.0
        %334 = vmatprep.subr.mxu0 0.0
        %335 = vmatpush2.msra.mxu0 0.0
        %336 = vmatprep.subr.mxu0 0.0
        %337 = vmatpush2.msra.mxu0 0.0
        %338 = vmatprep.subr.mxu0 0.0
        %339 = vmatpush2.msra.mxu0 0.0
        %340 = vmatprep.subr.mxu0 0.0
        %341 = vmatpush2.msra.mxu0 %v292
        %342 = vmatprep.subr.mxu0 0.0
        %343 = vmatpush2.msra.mxu0 %v281
        %344 = vmatprep.subr.mxu0 0.0
        %345 = vmatpush2.msra.mxu0 %v280
        %346 = vmatprep.subr.mxu0 0.0
        %347 = vmatpush2.msra.mxu0 %v279
        %348 = vmatprep.subr.mxu0 0.0
        %349 = vmatpush2.msra.mxu0 %v278
        %350 = vmatprep.subr.mxu0 0.0
        %351 = vmatpush2.msra.mxu0 %v277
        %352 = vmatprep.subr.mxu0 0.0
        %353 = vmatpush2.msra.mxu0 %v276
        %354 = vmatprep.subr.mxu0 0.0
        %355 = vmatpush2.msra.mxu0 %v275
        %356 = vmatprep.subr.mxu0 0.0
        %357 = vmatpush2.msra.mxu0 %v274
        %358 = vmatprep.mubr.f32.mxu0 %v285
        %359 = vmatmul.mubr.f32.gmra.mxu0 %v254
        %v360 = vpop.f32.mrf.mxu0
        %v361 = vadd.f32 0.0, %v360
        %v362 = vpop.f32.mrf.mxu0
        %363 = vmatprep.mubr.f32.mxu0 %v288
        %364 = vmatmul.mubr.f32.gmra.mxu0 %v256
        %v365 = vpop.f32.mrf.mxu0
        %v366 = vadd.f32 0.0, %v365
        %v367 = vpop.f32.mrf.mxu0
        %368 = vdwg.mxu0
        %v369 = vmul.f32 %v258, %v258
        %v370 = vmul.f32 %v259, %v259
        %v371 = vmul.f32 %v260, %v260
        %v372 = vmul.f32 %v261, %v261
        %v373 = vmul.f32 %v262, %v262
        %v374 = vmul.f32 %v263, %v263
        %v375 = vmul.f32 %v264, %v264
        %v376 = vmul.f32 %v265, %v265
        %v377 = vmul.f32 %v266, %v266
        %v378 = vmul.f32 %v267, %v267
        %v379 = vmul.f32 %v268, %v268
        %v380 = vmul.f32 %v269, %v269
        %v381 = vmul.f32 %v270, %v270
        %v382 = vmul.f32 %v271, %v271
        %v383 = vmul.f32 %v272, %v272
        %v384 = vmul.f32 %v273, %v273
        %v385 = vmul.f32 %v274, %v274
        %v386 = vmul.f32 %v275, %v275
        %v387 = vmul.f32 %v276, %v276
        %v388 = vmul.f32 %v277, %v277
        %v389 = vmul.f32 %v278, %v278
        %v390 = vmul.f32 %v279, %v279
        %v391 = vmul.f32 %v280, %v280
        %v392 = vmul.f32 %v281, %v281
        %v393 = vmul.f32 %v282, %v282
        %vm394 = vcmask 72704
        %v395 = vsel %vm394, %v369, 0.0
        %v396 = vsel %vm394, %v370, 0.0
        %v397 = vadd.f32 %v395, %v396
        %v398 = vsel %vm394, %v371, 0.0
        %v399 = vadd.f32 %v397, %v398
        %v400 = vsel %vm394, %v372, 0.0
        %v401 = vadd.f32 %v399, %v400
        %v402 = vsel %vm394, %v373, 0.0
        %v403 = vadd.f32 %v401, %v402
        %v404 = vsel %vm394, %v374, 0.0
        %v405 = vadd.f32 %v403, %v404
        %v406 = vsel %vm394, %v375, 0.0
        %v407 = vadd.f32 %v405, %v406
        %v408 = vsel %vm394, %v376, 0.0
        %v409 = vadd.f32 %v407, %v408
        %v410 = vsel %vm394, %v377, 0.0
        %v411 = vadd.f32 %v409, %v410
        %v412 = vsel %vm394, %v378, 0.0
        %v413 = vadd.f32 %v411, %v412
        %v414 = vsel %vm394, %v379, 0.0
        %v415 = vadd.f32 %v413, %v414
        %v416 = vsel %vm394, %v380, 0.0
        %v417 = vadd.f32 %v415, %v416
        %v418 = vsel %vm394, %v381, 0.0
        %v419 = vadd.f32 %v417, %v418
        %v420 = vsel %vm394, %v382, 0.0
        %v421 = vadd.f32 %v419, %v420
        %v422 = vsel %vm394, %v383, 0.0
        %v423 = vadd.f32 %v421, %v422
        %v424 = vsel %vm394, %v384, 0.0
        %v425 = vadd.f32 %v423, %v424
        %v426 = vsel %vm394, %v385, 0.0
        %v427 = vadd.f32 %v425, %v426
        %v428 = vsel %vm394, %v386, 0.0
        %v429 = vadd.f32 %v427, %v428
        %v430 = vsel %vm394, %v387, 0.0
        %v431 = vadd.f32 %v429, %v430
        %v432 = vsel %vm394, %v388, 0.0
        %v433 = vadd.f32 %v431, %v432
        %v434 = vsel %vm394, %v389, 0.0
        %v435 = vadd.f32 %v433, %v434
        %v436 = vsel %vm394, %v390, 0.0
        %v437 = vadd.f32 %v435, %v436
        %v438 = vsel %vm394, %v391, 0.0
        %v439 = vadd.f32 %v437, %v438
        %v440 = vsel %vm394, %v392, 0.0
        %v441 = vadd.f32 %v439, %v440
        %vm442 = vcmask 68608
        %v443 = vsel %vm442, %v393, 0.0
        %v444 = vadd.f32 %v441, %v443
        %v445 = vrot.slane %v444, 4
        %v446 = vadd.f32 %v444, %v445
        %v447 = vrot.slane %v446, 2
        %v448 = vadd.f32 %v446, %v447
        %v449 = vrot.slane %v448, 1
        %v450 = vadd.f32 %v448, %v449
        %v451 = vmax.f32 %v450, 1e-24
        %v452 = vrsqrt.pop %v451
        %v453 = vmul.f32 %v361, %v452
        %v454 = vmul.f32 %v366, %v452
        %v455 = vlaneseq
        %v456 = vand.u32 %v455, 127
        %v457 = vsel %vm394, %v453, -inf
        %458 = vmax.xlane.f32.xlu0 %v457
        %v459 = vpop.xlane.xlu0 %458
        %vm460 = vcmask 65536
        %v461 = vsel %vm460, %v454, -inf
        %462 = vmax.xlane.f32.xlu0 %v461
        %v463 = vpop.xlane.xlu0 %462
        %vm464 = vcmp.ge.f32.partialorder %v453, %v459
        %vm465 = vcmp.ge.f32.partialorder %v454, %v463
        %v466 = vsel %vm464, %v456, 9
        %v467 = vsel %vm465, %v456, 9
        %v468 = vsel %vm394, %v466, 2147483647
        %v469 = vand.u32 %v468, 65535
        %v470 = vshra.s32 %v468, 16
        %v471 = vcvt.s32.f32 %v469
        %v472 = vcvt.s32.f32 %v470
        %473 = vmin.xlane.f32.xlu0 %v472
        %v474 = vpop.xlane.xlu0 %473
        %vm475 = vcmp.eq.f32.partialorder %v472, %v474
        %v476 = vsel %vm475, %v471, inf
        %477 = vmin.xlane.f32.xlu0 %v476
        %v478 = vpop.xlane.xlu0 %477
        %v479 = vcvt.f32.s32 %v478
        %v480 = vcvt.f32.s32 %v474
        %v481 = vshll.u32 %v480, 16
        %v482 = vadd.s32 %v481, %v479
        %v483 = vsel %vm460, %v467, 2147483647
        %v484 = vand.u32 %v483, 65535
        %v485 = vshra.s32 %v483, 16
        %v486 = vcvt.s32.f32 %v484
        %v487 = vcvt.s32.f32 %v485
        %488 = vmin.xlane.f32.xlu0 %v487
        %v489 = vpop.xlane.xlu0 %488
        %vm490 = vcmp.eq.f32.partialorder %v487, %v489
        %v491 = vsel %vm490, %v486, inf
        %492 = vmin.xlane.f32.xlu0 %v491
        %v493 = vpop.xlane.xlu0 %492
        %v494 = vcvt.f32.s32 %v493
        %v495 = vcvt.f32.s32 %v489
        %v496 = vshll.u32 %v495, 16
        %v497 = vadd.s32 %v496, %v494
        %vm498 = vcmp.eq.s32.totalorder %v456, %v482
        %vm499 = vcmp.eq.s32.totalorder %v456, %v497
        %v500 = vsel %vm498, 1, 0
        %v501 = vsel %vm499, 1, 0
        %v502 = vcvt.s32.f32 %v500
        %v503 = vcvt.s32.f32 %v501
        %504 = vst.msk [vmem:[#allocation2] sm:$0xff] %vm394, %v502
        %505 = vst.msk [vmem:[#allocation2 + $0x8] sm:$0x1] %vm460, %v503
      $region36: #{ms_cross_att_fa_pallas.6} parent=31 // pred_fallthru
        _
      %v506 = vld [vmem:[#allocation2] sm:$0xff]
      %v507 = vld [vmem:[#allocation2 + $0x8] sm:$0x1]
      %v508 = vld [vmem:[%s238] sm:$0xff]
      %v509 = vld [vmem:[%s238 + $0x8] sm:$0xff]
      %v510 = vld [vmem:[%s238 + $0x10] sm:$0xff]
      %v511 = vld [vmem:[%s238 + $0x18] sm:$0xff]
      %v512 = vld [vmem:[%s238 + $0x20] sm:$0xff]
      %v513 = vld [vmem:[%s238 + $0x28] sm:$0xff]
      %v514 = vld [vmem:[%s238 + $0x30] sm:$0xff]
      %v515 = vld [vmem:[%s238 + $0x38] sm:$0xff]
      %v516 = vld [vmem:[%s238 + $0x40] sm:$0xff]
      %v517 = vld [vmem:[%s238 + $0x48] sm:$0xff]
      %v518 = vld [vmem:[%s238 + $0x50] sm:$0xff]
      %v519 = vld [vmem:[%s238 + $0x58] sm:$0xff]
      %v520 = vld [vmem:[%s238 + $0x60] sm:$0xff]
      %v521 = vld [vmem:[%s238 + $0x68] sm:$0x1]
      %v522 = vld [vmem:[%s238 + $0x70] sm:$0x1]
      %v523 = vld [vmem:[%s238 + $0x78] sm:$0x1]
      %v524 = vld [vmem:[%s238 + $0x80] sm:$0x1]
      %v525 = vld [vmem:[%s238 + $0x88] sm:$0x1]
      %v526 = vld [vmem:[%s238 + $0x90] sm:$0x1]
      %v527 = vld [vmem:[%s238 + $0x98] sm:$0x1]
      %v528 = vld [vmem:[%s238 + $0xa0] sm:$0x1]
      %v529 = vld [vmem:[%s238 + $0xa8] sm:$0x1]
      %v530 = vld [vmem:[%s238 + $0xb0] sm:$0x1]
      %v531 = vld [vmem:[%s238 + $0xb8] sm:$0x1]
      %v532 = vld [vmem:[%s238 + $0xc0] sm:$0x1]
      %v533 = vld [vmem:[%s238 + $0xc8] sm:$0x1]
      %vm534 = vcmask 72704
      %v536 = vsel %vm534, %v506, 0
      %v539 = vsel %vm534, %v507, 0
      %vm541 = vcmask 1040384
      %v543 = vsel %vm541, %v521, 0
      %v546 = vsel %vm541, %v522, 0
      %v549 = vsel %vm541, %v523, 0
      %v552 = vsel %vm541, %v524, 0
      %v555 = vsel %vm541, %v525, 0
      %v558 = vsel %vm541, %v526, 0
      %v561 = vsel %vm541, %v527, 0
      %v564 = vsel %vm541, %v528, 0
      %v567 = vsel %vm541, %v529, 0
      %v570 = vsel %vm541, %v530, 0
      %v573 = vsel %vm541, %v531, 0
      %v576 = vsel %vm541, %v532, 0
      %v579 = vsel %vm541, %v533, 0
      %581 = vmatprep.subr.mxu0 0.0
      %582 = vmatpush1.msra.mxu0 0.0
      %583 = vmatprep.subr.mxu0 0.0
      %584 = vmatpush1.msra.mxu0 0.0
      %585 = vmatprep.subr.mxu0 0.0
      %586 = vmatpush1.msra.mxu0 0.0
      %587 = vmatprep.subr.mxu0 0.0
      %588 = vmatpush1.msra.mxu0 0.0
      %589 = vmatprep.subr.mxu0 0.0
      %590 = vmatpush1.msra.mxu0 0.0
      %591 = vmatprep.subr.mxu0 0.0
      %592 = vmatpush1.msra.mxu0 0.0
      %593 = vmatprep.subr.mxu0 0.0
      %594 = vmatpush1.msra.mxu0 0.0
      %595 = vmatprep.subr.mxu0 0.0
      %596 = vmatpush1.msra.mxu0 0.0
      %597 = vmatprep.subr.mxu0 0.0
      %598 = vmatpush1.msra.mxu0 0.0
      %599 = vmatprep.subr.mxu0 0.0
      %600 = vmatpush1.msra.mxu0 0.0
      %601 = vmatprep.subr.mxu0 0.0
      %602 = vmatpush1.msra.mxu0 0.0
      %603 = vmatprep.subr.mxu0 0.0
      %604 = vmatpush1.msra.mxu0 0.0
      %605 = vmatprep.subr.mxu0 0.0
      %606 = vmatpush1.msra.mxu0 0.0
      %607 = vmatprep.subr.mxu0 0.0
      %608 = vmatpush1.msra.mxu0 0.0
      %609 = vmatprep.subr.mxu0 %v546
      %610 = vmatpush1.msra.mxu0 %v543
      %611 = vmatprep.subr.mxu0 %v509
      %612 = vmatpush1.msra.mxu0 %v508
      %613 = vmatprep.subr.mxu0 0.0
      %614 = vmatpush2.msra.mxu0 0.0
      %615 = vmatprep.subr.mxu0 0.0
      %616 = vmatpush2.msra.mxu0 0.0
      %617 = vmatprep.subr.mxu0 0.0
      %618 = vmatpush2.msra.mxu0 0.0
      %619 = vmatprep.subr.mxu0 0.0
      %620 = vmatpush2.msra.mxu0 0.0
      %621 = vmatprep.subr.mxu0 0.0
      %622 = vmatpush2.msra.mxu0 0.0
      %623 = vmatprep.subr.mxu0 0.0
      %624 = vmatpush2.msra.mxu0 0.0
      %625 = vmatprep.subr.mxu0 0.0
      %626 = vmatpush2.msra.mxu0 0.0
      %627 = vmatprep.subr.mxu0 0.0
      %628 = vmatpush2.msra.mxu0 0.0
      %629 = vmatprep.subr.mxu0 0.0
      %630 = vmatpush2.msra.mxu0 0.0
      %631 = vmatprep.subr.mxu0 0.0
      %632 = vmatpush2.msra.mxu0 0.0
      %633 = vmatprep.subr.mxu0 0.0
      %634 = vmatpush2.msra.mxu0 0.0
      %635 = vmatprep.subr.mxu0 0.0
      %636 = vmatpush2.msra.mxu0 0.0
      %637 = vmatprep.subr.mxu0 0.0
      %638 = vmatpush2.msra.mxu0 0.0
      %639 = vmatprep.subr.mxu0 0.0
      %640 = vmatpush2.msra.mxu0 0.0
      %641 = vmatprep.subr.mxu0 0.0
      %642 = vmatpush2.msra.mxu0 0.0
      %643 = vmatprep.subr.mxu0 0.0
      %644 = vmatpush2.msra.mxu0 0.0
      %645 = vmatprep.mubr.f32.mxu0 0.0
      %646 = vmatmul.mubr.f32.gmra.mxu0 %v536
      %v647 = vpop.f32.mrf.mxu0
      %v648 = vadd.f32 0.0, %v647
      %v649 = vpop.f32.mrf.mxu0
      %v650 = vadd.f32 0.0, %v649
      %651 = vmatprep.mubr.f32.mxu0 0.0
      %652 = vmatmul.mubr.f32.gmra.mxu0 %v539
      %v653 = vpop.f32.mrf.mxu0
      %v654 = vadd.f32 0.0, %v653
      %v655 = vpop.f32.mrf.mxu0
      %v656 = vadd.f32 0.0, %v655
      %657 = vdwg.mxu0
      %658 = vmatprep.subr.mxu0 0.0
      %659 = vmatpush1.msra.mxu0 0.0
      %660 = vmatprep.subr.mxu0 0.0
      %661 = vmatpush1.msra.mxu0 0.0
      %662 = vmatprep.subr.mxu0 0.0
      %663 = vmatpush1.msra.mxu0 0.0
      %664 = vmatprep.subr.mxu0 0.0
      %665 = vmatpush1.msra.mxu0 0.0
      %666 = vmatprep.subr.mxu0 0.0
      %667 = vmatpush1.msra.mxu0 0.0
      %668 = vmatprep.subr.mxu0 0.0
      %669 = vmatpush1.msra.mxu0 0.0
      %670 = vmatprep.subr.mxu0 0.0
      %671 = vmatpush1.msra.mxu0 0.0
      %672 = vmatprep.subr.mxu0 0.0
      %673 = vmatpush1.msra.mxu0 0.0
      %674 = vmatprep.subr.mxu0 0.0
      %675 = vmatpush1.msra.mxu0 0.0
      %676 = vmatprep.subr.mxu0 0.0
      %677 = vmatpush1.msra.mxu0 0.0
      %678 = vmatprep.subr.mxu0 0.0
      %679 = vmatpush1.msra.mxu0 0.0
      %680 = vmatprep.subr.mxu0 0.0
      %681 = vmatpush1.msra.mxu0 0.0
      %682 = vmatprep.subr.mxu0 0.0
      %683 = vmatpush1.msra.mxu0 0.0
      %684 = vmatprep.subr.mxu0 0.0
      %685 = vmatpush1.msra.mxu0 0.0
      %686 = vmatprep.subr.mxu0 %v552
      %687 = vmatpush1.msra.mxu0 %v549
      %688 = vmatprep.subr.mxu0 %v511
      %689 = vmatpush1.msra.mxu0 %v510
      %690 = vmatprep.subr.mxu0 0.0
      %691 = vmatpush2.msra.mxu0 0.0
      %692 = vmatprep.subr.mxu0 0.0
      %693 = vmatpush2.msra.mxu0 0.0
      %694 = vmatprep.subr.mxu0 0.0
      %695 = vmatpush2.msra.mxu0 0.0
      %696 = vmatprep.subr.mxu0 0.0
      %697 = vmatpush2.msra.mxu0 0.0
      %698 = vmatprep.subr.mxu0 0.0
      %699 = vmatpush2.msra.mxu0 0.0
      %700 = vmatprep.subr.mxu0 0.0
      %701 = vmatpush2.msra.mxu0 0.0
      %702 = vmatprep.subr.mxu0 0.0
      %703 = vmatpush2.msra.mxu0 0.0
      %704 = vmatprep.subr.mxu0 0.0
      %705 = vmatpush2.msra.mxu0 0.0
      %706 = vmatprep.subr.mxu0 0.0
      %707 = vmatpush2.msra.mxu0 0.0
      %708 = vmatprep.subr.mxu0 0.0
      %709 = vmatpush2.msra.mxu0 0.0
      %710 = vmatprep.subr.mxu0 0.0
      %711 = vmatpush2.msra.mxu0 0.0
      %712 = vmatprep.subr.mxu0 0.0
      %713 = vmatpush2.msra.mxu0 0.0
      %714 = vmatprep.subr.mxu0 0.0
      %715 = vmatpush2.msra.mxu0 0.0
      %716 = vmatprep.subr.mxu0 0.0
      %717 = vmatpush2.msra.mxu0 0.0
      %718 = vmatprep.subr.mxu0 0.0
      %719 = vmatpush2.msra.mxu0 0.0
      %720 = vmatprep.subr.mxu0 0.0
      %721 = vmatpush2.msra.mxu0 0.0
      %722 = vmatprep.mubr.f32.mxu0 0.0
      %723 = vmatmul.mubr.f32.gmra.mxu0 %v536
      %v724 = vpop.f32.mrf.mxu0
      %v725 = vadd.f32 0.0, %v724
      %v726 = vpop.f32.mrf.mxu0
      %v727 = vadd.f32 0.0, %v726
      %728 = vmatprep.mubr.f32.mxu0 0.0
      %729 = vmatmul.mubr.f32.gmra.mxu0 %v539
      %v730 = vpop.f32.mrf.mxu0
      %v731 = vadd.f32 0.0, %v730
      %v732 = vpop.f32.mrf.mxu0
      %v733 = vadd.f32 0.0, %v732
      %734 = vdwg.mxu0
      %735 = vmatprep.subr.mxu0 0.0
      %736 = vmatpush1.msra.mxu0 0.0
      %737 = vmatprep.subr.mxu0 0.0
      %738 = vmatpush1.msra.mxu0 0.0
      %739 = vmatprep.subr.mxu0 0.0
      %740 = vmatpush1.msra.mxu0 0.0
      %741 = vmatprep.subr.mxu0 0.0
      %742 = vmatpush1.msra.mxu0 0.0
      %743 = vmatprep.subr.mxu0 0.0
      %744 = vmatpush1.msra.mxu0 0.0
      %745 = vmatprep.subr.mxu0 0.0
      %746 = vmatpush1.msra.mxu0 0.0
      %747 = vmatprep.subr.mxu0 0.0
      %748 = vmatpush1.msra.mxu0 0.0
      %749 = vmatprep.subr.mxu0 0.0
      %750 = vmatpush1.msra.mxu0 0.0
      %751 = vmatprep.subr.mxu0 0.0
      %752 = vmatpush1.msra.mxu0 0.0
      %753 = vmatprep.subr.mxu0 0.0
      %754 = vmatpush1.msra.mxu0 0.0
      %755 = vmatprep.subr.mxu0 0.0
      %756 = vmatpush1.msra.mxu0 0.0
      %757 = vmatprep.subr.mxu0 0.0
      %758 = vmatpush1.msra.mxu0 0.0
      %759 = vmatprep.subr.mxu0 0.0
      %760 = vmatpush1.msra.mxu0 0.0
      %761 = vmatprep.subr.mxu0 0.0
      %762 = vmatpush1.msra.mxu0 0.0
      %763 = vmatprep.subr.mxu0 %v558
      %764 = vmatpush1.msra.mxu0 %v555
      %765 = vmatprep.subr.mxu0 %v513
      %766 = vmatpush1.msra.mxu0 %v512
      %767 = vmatprep.subr.mxu0 0.0
      %768 = vmatpush2.msra.mxu0 0.0
      %769 = vmatprep.subr.mxu0 0.0
      %770 = vmatpush2.msra.mxu0 0.0
      %771 = vmatprep.subr.mxu0 0.0
      %772 = vmatpush2.msra.mxu0 0.0
      %773 = vmatprep.subr.mxu0 0.0
      %774 = vmatpush2.msra.mxu0 0.0
      %775 = vmatprep.subr.mxu0 0.0
      %776 = vmatpush2.msra.mxu0 0.0
      %777 = vmatprep.subr.mxu0 0.0
      %778 = vmatpush2.msra.mxu0 0.0
      %779 = vmatprep.subr.mxu0 0.0
      %780 = vmatpush2.msra.mxu0 0.0
      %781 = vmatprep.subr.mxu0 0.0
      %782 = vmatpush2.msra.mxu0 0.0
      %783 = vmatprep.subr.mxu0 0.0
      %784 = vmatpush2.msra.mxu0 0.0
      %785 = vmatprep.subr.mxu0 0.0
      %786 = vmatpush2.msra.mxu0 0.0
      %787 = vmatprep.subr.mxu0 0.0
      %788 = vmatpush2.msra.mxu0 0.0
      %789 = vmatprep.subr.mxu0 0.0
      %790 = vmatpush2.msra.mxu0 0.0
      %791 = vmatprep.subr.mxu0 0.0
      %792 = vmatpush2.msra.mxu0 0.0
      %793 = vmatprep.subr.mxu0 0.0
      %794 = vmatpush2.msra.mxu0 0.0
      %795 = vmatprep.subr.mxu0 0.0
      %796 = vmatpush2.msra.mxu0 0.0
      %797 = vmatprep.subr.mxu0 0.0
      %798 = vmatpush2.msra.mxu0 0.0
      %799 = vmatprep.mubr.f32.mxu0 0.0
      %800 = vmatmul.mubr.f32.gmra.mxu0 %v536
      %v801 = vpop.f32.mrf.mxu0
      %v802 = vadd.f32 0.0, %v801
      %v803 = vpop.f32.mrf.mxu0
      %v804 = vadd.f32 0.0, %v803
      %805 = vmatprep.mubr.f32.mxu0 0.0
      %806 = vmatmul.mubr.f32.gmra.mxu0 %v539
      %v807 = vpop.f32.mrf.mxu0
      %v808 = vadd.f32 0.0, %v807
      %v809 = vpop.f32.mrf.mxu0
      %v810 = vadd.f32 0.0, %v809
      %811 = vdwg.mxu0
      %812 = vmatprep.subr.mxu0 0.0
      %813 = vmatpush1.msra.mxu0 0.0
      %814 = vmatprep.subr.mxu0 0.0
      %815 = vmatpush1.msra.mxu0 0.0
      %816 = vmatprep.subr.mxu0 0.0
      %817 = vmatpush1.msra.mxu0 0.0
      %818 = vmatprep.subr.mxu0 0.0
      %819 = vmatpush1.msra.mxu0 0.0
      %820 = vmatprep.subr.mxu0 0.0
      %821 = vmatpush1.msra.mxu0 0.0
      %822 = vmatprep.subr.mxu0 0.0
      %823 = vmatpush1.msra.mxu0 0.0
      %824 = vmatprep.subr.mxu0 0.0
      %825 = vmatpush1.msra.mxu0 0.0
      %826 = vmatprep.subr.mxu0 0.0
      %827 = vmatpush1.msra.mxu0 0.0
      %828 = vmatprep.subr.mxu0 0.0
      %829 = vmatpush1.msra.mxu0 0.0
      %830 = vmatprep.subr.mxu0 0.0
      %831 = vmatpush1.msra.mxu0 0.0
      %832 = vmatprep.subr.mxu0 0.0
      %833 = vmatpush1.msra.mxu0 0.0
      %834 = vmatprep.subr.mxu0 0.0
      %835 = vmatpush1.msra.mxu0 0.0
      %836 = vmatprep.subr.mxu0 0.0
      %837 = vmatpush1.msra.mxu0 0.0
      %838 = vmatprep.subr.mxu0 0.0
      %839 = vmatpush1.msra.mxu0 0.0
      %840 = vmatprep.subr.mxu0 %v564
      %841 = vmatpush1.msra.mxu0 %v561
      %842 = vmatprep.subr.mxu0 %v515
      %843 = vmatpush1.msra.mxu0 %v514
      %844 = vmatprep.subr.mxu0 0.0
      %845 = vmatpush2.msra.mxu0 0.0
      %846 = vmatprep.subr.mxu0 0.0
      %847 = vmatpush2.msra.mxu0 0.0
      %848 = vmatprep.subr.mxu0 0.0
      %849 = vmatpush2.msra.mxu0 0.0
      %850 = vmatprep.subr.mxu0 0.0
      %851 = vmatpush2.msra.mxu0 0.0
      %852 = vmatprep.subr.mxu0 0.0
      %853 = vmatpush2.msra.mxu0 0.0
      %854 = vmatprep.subr.mxu0 0.0
      %855 = vmatpush2.msra.mxu0 0.0
      %856 = vmatprep.subr.mxu0 0.0
      %857 = vmatpush2.msra.mxu0 0.0
      %858 = vmatprep.subr.mxu0 0.0
      %859 = vmatpush2.msra.mxu0 0.0
      %860 = vmatprep.subr.mxu0 0.0
      %861 = vmatpush2.msra.mxu0 0.0
      %862 = vmatprep.subr.mxu0 0.0
      %863 = vmatpush2.msra.mxu0 0.0
      %864 = vmatprep.subr.mxu0 0.0
      %865 = vmatpush2.msra.mxu0 0.0
      %866 = vmatprep.subr.mxu0 0.0
      %867 = vmatpush2.msra.mxu0 0.0
      %868 = vmatprep.subr.mxu0 0.0
      %869 = vmatpush2.msra.mxu0 0.0
      %870 = vmatprep.subr.mxu0 0.0
      %871 = vmatpush2.msra.mxu0 0.0
      %872 = vmatprep.subr.mxu0 0.0
      %873 = vmatpush2.msra.mxu0 0.0
      %874 = vmatprep.subr.mxu0 0.0
      %875 = vmatpush2.msra.mxu0 0.0
      %876 = vmatprep.mubr.f32.mxu0 0.0
      %877 = vmatmul.mubr.f32.gmra.mxu0 %v536
      %v878 = vpop.f32.mrf.mxu0
      %v879 = vadd.f32 0.0, %v878
      %v880 = vpop.f32.mrf.mxu0
      %v881 = vadd.f32 0.0, %v880
      %882 = vmatprep.mubr.f32.mxu0 0.0
      %883 = vmatmul.mubr.f32.gmra.mxu0 %v539
      %v884 = vpop.f32.mrf.mxu0
      %v885 = vadd.f32 0.0, %v884
      %v886 = vpop.f32.mrf.mxu0
      %v887 = vadd.f32 0.0, %v886
      %888 = vdwg.mxu0
      %889 = vmatprep.subr.mxu0 0.0
      %890 = vmatpush1.msra.mxu0 0.0
      %891 = vmatprep.subr.mxu0 0.0
      %892 = vmatpush1.msra.mxu0 0.0
      %893 = vmatprep.subr.mxu0 0.0
      %894 = vmatpush1.msra.mxu0 0.0
      %895 = vmatprep.subr.mxu0 0.0
      %896 = vmatpush1.msra.mxu0 0.0
      %897 = vmatprep.subr.mxu0 0.0
      %898 = vmatpush1.msra.mxu0 0.0
      %899 = vmatprep.subr.mxu0 0.0
      %900 = vmatpush1.msra.mxu0 0.0
      %901 = vmatprep.subr.mxu0 0.0
      %902 = vmatpush1.msra.mxu0 0.0
      %903 = vmatprep.subr.mxu0 0.0
      %904 = vmatpush1.msra.mxu0 0.0
      %905 = vmatprep.subr.mxu0 0.0
      %906 = vmatpush1.msra.mxu0 0.0
      %907 = vmatprep.subr.mxu0 0.0
      %908 = vmatpush1.msra.mxu0 0.0
      %909 = vmatprep.subr.mxu0 0.0
      %910 = vmatpush1.msra.mxu0 0.0
      %911 = vmatprep.subr.mxu0 0.0
      %912 = vmatpush1.msra.mxu0 0.0
      %913 = vmatprep.subr.mxu0 0.0
      %914 = vmatpush1.msra.mxu0 0.0
      %915 = vmatprep.subr.mxu0 0.0
      %916 = vmatpush1.msra.mxu0 0.0
      %917 = vmatprep.subr.mxu0 %v570
      %918 = vmatpush1.msra.mxu0 %v567
      %919 = vmatprep.subr.mxu0 %v517
      %920 = vmatpush1.msra.mxu0 %v516
      %921 = vmatprep.subr.mxu0 0.0
      %922 = vmatpush2.msra.mxu0 0.0
      %923 = vmatprep.subr.mxu0 0.0
      %924 = vmatpush2.msra.mxu0 0.0
      %925 = vmatprep.subr.mxu0 0.0
      %926 = vmatpush2.msra.mxu0 0.0
      %927 = vmatprep.subr.mxu0 0.0
      %928 = vmatpush2.msra.mxu0 0.0
      %929 = vmatprep.subr.mxu0 0.0
      %930 = vmatpush2.msra.mxu0 0.0
      %931 = vmatprep.subr.mxu0 0.0
      %932 = vmatpush2.msra.mxu0 0.0
      %933 = vmatprep.subr.mxu0 0.0
      %934 = vmatpush2.msra.mxu0 0.0
      %935 = vmatprep.subr.mxu0 0.0
      %936 = vmatpush2.msra.mxu0 0.0
      %937 = vmatprep.subr.mxu0 0.0
      %938 = vmatpush2.msra.mxu0 0.0
      %939 = vmatprep.subr.mxu0 0.0
      %940 = vmatpush2.msra.mxu0 0.0
      %941 = vmatprep.subr.mxu0 0.0
      %942 = vmatpush2.msra.mxu0 0.0
      %943 = vmatprep.subr.mxu0 0.0
      %944 = vmatpush2.msra.mxu0 0.0
      %945 = vmatprep.subr.mxu0 0.0
      %946 = vmatpush2.msra.mxu0 0.0
      %947 = vmatprep.subr.mxu0 0.0
      %948 = vmatpush2.msra.mxu0 0.0
      %949 = vmatprep.subr.mxu0 0.0
      %950 = vmatpush2.msra.mxu0 0.0
      %951 = vmatprep.subr.mxu0 0.0
      %952 = vmatpush2.msra.mxu0 0.0
      %953 = vmatprep.mubr.f32.mxu0 0.0
      %954 = vmatmul.mubr.f32.gmra.mxu0 %v536
      %v955 = vpop.f32.mrf.mxu0
      %v956 = vadd.f32 0.0, %v955
      %v957 = vpop.f32.mrf.mxu0
      %v958 = vadd.f32 0.0, %v957
      %959 = vmatprep.mubr.f32.mxu0 0.0
      %960 = vmatmul.mubr.f32.gmra.mxu0 %v539
      %v961 = vpop.f32.mrf.mxu0
      %v962 = vadd.f32 0.0, %v961
      %v963 = vpop.f32.mrf.mxu0
      %v964 = vadd.f32 0.0, %v963
      %965 = vdwg.mxu0
      %966 = vmatprep.subr.mxu0 0.0
      %967 = vmatpush1.msra.mxu0 0.0
      %968 = vmatprep.subr.mxu0 0.0
      %969 = vmatpush1.msra.mxu0 0.0
      %970 = vmatprep.subr.mxu0 0.0
      %971 = vmatpush1.msra.mxu0 0.0
      %972 = vmatprep.subr.mxu0 0.0
      %973 = vmatpush1.msra.mxu0 0.0
      %974 = vmatprep.subr.mxu0 0.0
      %975 = vmatpush1.msra.mxu0 0.0
      %976 = vmatprep.subr.mxu0 0.0
      %977 = vmatpush1.msra.mxu0 0.0
      %978 = vmatprep.subr.mxu0 0.0
      %979 = vmatpush1.msra.mxu0 0.0
      %980 = vmatprep.subr.mxu0 0.0
      %981 = vmatpush1.msra.mxu0 0.0
      %982 = vmatprep.subr.mxu0 0.0
      %983 = vmatpush1.msra.mxu0 0.0
      %984 = vmatprep.subr.mxu0 0.0
      %985 = vmatpush1.msra.mxu0 0.0
      %986 = vmatprep.subr.mxu0 0.0
      %987 = vmatpush1.msra.mxu0 0.0
      %988 = vmatprep.subr.mxu0 0.0
      %989 = vmatpush1.msra.mxu0 0.0
      %990 = vmatprep.subr.mxu0 0.0
      %991 = vmatpush1.msra.mxu0 0.0
      %992 = vmatprep.subr.mxu0 0.0
      %993 = vmatpush1.msra.mxu0 0.0
      %994 = vmatprep.subr.mxu0 %v576
      %995 = vmatpush1.msra.mxu0 %v573
      %996 = vmatprep.subr.mxu0 %v519
      %997 = vmatpush1.msra.mxu0 %v518
      %998 = vmatprep.subr.mxu0 0.0
      %999 = vmatpush2.msra.mxu0 0.0
      %1000 = vmatprep.subr.mxu0 0.0
      %1001 = vmatpush2.msra.mxu0 0.0
      %1002 = vmatprep.subr.mxu0 0.0
      %1003 = vmatpush2.msra.mxu0 0.0
      %1004 = vmatprep.subr.mxu0 0.0
      %1005 = vmatpush2.msra.mxu0 0.0
      %1006 = vmatprep.subr.mxu0 0.0
      %1007 = vmatpush2.msra.mxu0 0.0
      %1008 = vmatprep.subr.mxu0 0.0
      %1009 = vmatpush2.msra.mxu0 0.0
      %1010 = vmatprep.subr.mxu0 0.0
      %1011 = vmatpush2.msra.mxu0 0.0
      %1012 = vmatprep.subr.mxu0 0.0
      %1013 = vmatpush2.msra.mxu0 0.0
      %1014 = vmatprep.subr.mxu0 0.0
      %1015 = vmatpush2.msra.mxu0 0.0
      %1016 = vmatprep.subr.mxu0 0.0
      %1017 = vmatpush2.msra.mxu0 0.0
      %1018 = vmatprep.subr.mxu0 0.0
      %1019 = vmatpush2.msra.mxu0 0.0
      %1020 = vmatprep.subr.mxu0 0.0
      %1021 = vmatpush2.msra.mxu0 0.0
      %1022 = vmatprep.subr.mxu0 0.0
      %1023 = vmatpush2.msra.mxu0 0.0
      %1024 = vmatprep.subr.mxu0 0.0
      %1025 = vmatpush2.msra.mxu0 0.0
      %1026 = vmatprep.subr.mxu0 0.0
      %1027 = vmatpush2.msra.mxu0 0.0
      %1028 = vmatprep.subr.mxu0 0.0
      %1029 = vmatpush2.msra.mxu0 0.0
      %1030 = vmatprep.mubr.f32.mxu0 0.0
      %1031 = vmatmul.mubr.f32.gmra.mxu0 %v536
      %v1032 = vpop.f32.mrf.mxu0
      %v1033 = vadd.f32 0.0, %v1032
      %v1034 = vpop.f32.mrf.mxu0
      %v1035 = vadd.f32 0.0, %v1034
      %1036 = vmatprep.mubr.f32.mxu0 0.0
      %1037 = vmatmul.mubr.f32.gmra.mxu0 %v539
      %v1038 = vpop.f32.mrf.mxu0
      %v1039 = vadd.f32 0.0, %v1038
      %v1040 = vpop.f32.mrf.mxu0
      %v1041 = vadd.f32 0.0, %v1040
      %1042 = vdwg.mxu0
      %1043 = vmatprep.subr.mxu0 0.0
      %1044 = vmatpush1.msra.mxu0 0.0
      %1045 = vmatprep.subr.mxu0 0.0
      %1046 = vmatpush1.msra.mxu0 0.0
      %1047 = vmatprep.subr.mxu0 0.0
      %1048 = vmatpush1.msra.mxu0 0.0
      %1049 = vmatprep.subr.mxu0 0.0
      %1050 = vmatpush1.msra.mxu0 0.0
      %1051 = vmatprep.subr.mxu0 0.0
      %1052 = vmatpush1.msra.mxu0 0.0
      %1053 = vmatprep.subr.mxu0 0.0
      %1054 = vmatpush1.msra.mxu0 0.0
      %1055 = vmatprep.subr.mxu0 0.0
      %1056 = vmatpush1.msra.mxu0 0.0
      %1057 = vmatprep.subr.mxu0 0.0
      %1058 = vmatpush1.msra.mxu0 0.0
      %1059 = vmatprep.subr.mxu0 0.0
      %1060 = vmatpush1.msra.mxu0 0.0
      %1061 = vmatprep.subr.mxu0 0.0
      %1062 = vmatpush1.msra.mxu0 0.0
      %1063 = vmatprep.subr.mxu0 0.0
      %1064 = vmatpush1.msra.mxu0 0.0
      %1065 = vmatprep.subr.mxu0 0.0
      %1066 = vmatpush1.msra.mxu0 0.0
      %1067 = vmatprep.subr.mxu0 0.0
      %1068 = vmatpush1.msra.mxu0 0.0
      %1069 = vmatprep.subr.mxu0 0.0
      %1070 = vmatpush1.msra.mxu0 0.0
      %1071 = vmatprep.subr.mxu0 0.0
      %1072 = vmatpush1.msra.mxu0 %v579
      %1073 = vmatprep.subr.mxu0 0.0
      %1074 = vmatpush1.msra.mxu0 %v520
      %1075 = vmatprep.subr.mxu0 0.0
      %1076 = vmatpush2.msra.mxu0 0.0
      %1077 = vmatprep.subr.mxu0 0.0
      %1078 = vmatpush2.msra.mxu0 0.0
      %1079 = vmatprep.subr.mxu0 0.0
      %1080 = vmatpush2.msra.mxu0 0.0
      %1081 = vmatprep.subr.mxu0 0.0
      %1082 = vmatpush2.msra.mxu0 0.0
      %1083 = vmatprep.subr.mxu0 0.0
      %1084 = vmatpush2.msra.mxu0 0.0
      %1085 = vmatprep.subr.mxu0 0.0
      %1086 = vmatpush2.msra.mxu0 0.0
      %1087 = vmatprep.subr.mxu0 0.0
      %1088 = vmatpush2.msra.mxu0 0.0
      %1089 = vmatprep.subr.mxu0 0.0
      %1090 = vmatpush2.msra.mxu0 0.0
      %1091 = vmatprep.subr.mxu0 0.0
      %1092 = vmatpush2.msra.mxu0 0.0
      %1093 = vmatprep.subr.mxu0 0.0
      %1094 = vmatpush2.msra.mxu0 0.0
      %1095 = vmatprep.subr.mxu0 0.0
      %1096 = vmatpush2.msra.mxu0 0.0
      %1097 = vmatprep.subr.mxu0 0.0
      %1098 = vmatpush2.msra.mxu0 0.0
      %1099 = vmatprep.subr.mxu0 0.0
      %1100 = vmatpush2.msra.mxu0 0.0
      %1101 = vmatprep.subr.mxu0 0.0
      %1102 = vmatpush2.msra.mxu0 0.0
      %1103 = vmatprep.subr.mxu0 0.0
      %1104 = vmatpush2.msra.mxu0 0.0
      %1105 = vmatprep.subr.mxu0 0.0
      %1106 = vmatpush2.msra.mxu0 0.0
      %1107 = vmatprep.mubr.f32.mxu0 0.0
      %1108 = vmatmul.mubr.f32.gmra.mxu0 %v536
      %v1109 = vpop.f32.mrf.mxu0
      %v1110 = vadd.f32 0.0, %v1109
      %v1111 = vpop.f32.mrf.mxu0
      %1112 = vmatprep.mubr.f32.mxu0 0.0
      %1113 = vmatmul.mubr.f32.gmra.mxu0 %v539
      %v1114 = vpop.f32.mrf.mxu0
      %v1115 = vadd.f32 0.0, %v1114
      %v1116 = vpop.f32.mrf.mxu0
      %1117 = vdwg.mxu0
      %1118 = vst [vmem:[%s248] sm:$0xff] %v648
      %1119 = vst [vmem:[%s248 + $0x8] sm:$0xff] %v650
      %1120 = vst [vmem:[%s248 + $0x10] sm:$0xff] %v725
      %1121 = vst [vmem:[%s248 + $0x18] sm:$0xff] %v727
      %1122 = vst [vmem:[%s248 + $0x20] sm:$0xff] %v802
      %1123 = vst [vmem:[%s248 + $0x28] sm:$0xff] %v804
      %1124 = vst [vmem:[%s248 + $0x30] sm:$0xff] %v879
      %1125 = vst [vmem:[%s248 + $0x38] sm:$0xff] %v881
      %1126 = vst [vmem:[%s248 + $0x40] sm:$0xff] %v956
      %1127 = vst [vmem:[%s248 + $0x48] sm:$0xff] %v958
      %1128 = vst [vmem:[%s248 + $0x50] sm:$0xff] %v1033
      %1129 = vst [vmem:[%s248 + $0x58] sm:$0xff] %v1035
      %vm1130 = vcmask 261120
      %1131 = vst.msk [vmem:[%s248 + $0x60] sm:$0xff] %vm1130, %v1110
      %1132 = vst [vmem:[%s248 + $0x68] sm:$0x1] %v654
      %1133 = vst [vmem:[%s248 + $0x70] sm:$0x1] %v656
      %1134 = vst [vmem:[%s248 + $0x78] sm:$0x1] %v731
      %1135 = vst [vmem:[%s248 + $0x80] sm:$0x1] %v733
      %1136 = vst [vmem:[%s248 + $0x88] sm:$0x1] %v808
      %1137 = vst [vmem:[%s248 + $0x90] sm:$0x1] %v810
      %1138 = vst [vmem:[%s248 + $0x98] sm:$0x1] %v885
      %1139 = vst [vmem:[%s248 + $0xa0] sm:$0x1] %v887
      %1140 = vst [vmem:[%s248 + $0xa8] sm:$0x1] %v962
      %1141 = vst [vmem:[%s248 + $0xb0] sm:$0x1] %v964
      %1142 = vst [vmem:[%s248 + $0xb8] sm:$0x1] %v1039
      %1143 = vst [vmem:[%s248 + $0xc0] sm:$0x1] %v1041
      %vm1144 = vcmask 253952
      %1145 = vst.msk [vmem:[%s248 + $0xc8] sm:$0x1] %vm1144, %v1115
      %s1146 = smul.u32 13, %s19
      %p1147 = scmp.lt.s32.totalorder %s18, 1
      %s1148 = scalar_select %p1147, %s18, 1
      %p1149 = scmp.lt.s32.totalorder %s1146, 12
      %s1150 = scalar_select %p1149, %s1146, 12
      %s1151 = smul.addr %s1148, 26
      %s1152 = sadd.s32 %s1150, %s1151
      %s1153 = smul.addr %s1152, 8
      %s1154 = scalar_lea.vmem %s3, %s1153
      // Predicated region
      $region37: #{ms_cross_att_fa_pallas.6} parent=31 // pred_check
        %p1155 = pneg %p126
      $region38: #{ms_cross_att_fa_pallas.6} parent=31 // pred_check_branch
        %1157 = sbr.rel (%p1155) target = $region40
      $region39: #{ms_cross_att_fa_pallas.6} parent=31 // pred_region
        %s1158 = smul.u32 13, %s19
      $region40: #{ms_cross_att_fa_pallas.6} parent=31 // pred_fallthru
        _
    $region32: #{ms_cross_att_fa_pallas.6} parent=5 // pred_fallthru
      _
    %p1159 = scmp.le.s32.totalorder 2, %s9
    // Predicated region
    $region41: #{ms_cross_att_fa_pallas.6} parent=5 // pred_check
      %p1160 = pneg %p1159
    $region42: #{ms_cross_att_fa_pallas.6} parent=5 // pred_check_branch
      %1162 = sbr.rel (%p1160) target = $region44
    $region43: #{ms_cross_att_fa_pallas.6} parent=5 // pred_region
      %s1163 = ssub.s32 %s9, 2
      // Predicated region
      $region45: #{ms_cross_att_fa_pallas.6} parent=43 // pred_check
        %p1164 = pneg %p132
      $region46: #{ms_cross_att_fa_pallas.6} parent=43 // pred_check_branch
        %1166 = sbr.rel (%p1164) target = $region48
      $region47: #{ms_cross_att_fa_pallas.6} parent=43 // pred_region
        %s1167 = smul.u32 13, %s21
        %p1168 = scmp.lt.s32.totalorder %s20, 1
        %s1169 = scalar_select %p1168, %s20, 1
        %p1170 = scmp.lt.s32.totalorder %s1167, 12
        %s1171 = scalar_select %p1170, %s1167, 12
        %s1172 = smul.addr %s1169, 26
        %s1173 = sadd.s32 %s1171, %s1172
        %s1174 = smul.addr %s1173, 8
        %s1175 = scalar_lea.vmem %s3, %s1174
      $region48: #{ms_cross_att_fa_pallas.6} parent=43 // pred_fallthru
        _
    $region44: #{ms_cross_att_fa_pallas.6} parent=5 // pred_fallthru
      _
  $region6: #{ms_cross_att_fa_pallas.6} parent=0 // loop_footer
    %s13 = sadd.s32 1, %s9
  $region7: #{ms_cross_att_fa_pallas.6} parent=0 // loop_footer_branch
    %8 = sbr.rel target = $region3
  $region8: #{ms_cross_att_fa_pallas.6} parent=0 // loop_exit
    _

// kernel: ms_cross_att_fa_pallas.4
$region0: #{ms_cross_att_fa_pallas.4}
  #allocation0 [shape = 'u32[]', space=smem, size = 0x4, offset = 0x4, fixed_abs, tag = 'smem constant byte address 0x4 - core index']
  #allocation1 [shape = 'u32[144,128]{1,0:T(1,128)}', space=vmem, size = 0x12000, scoped, tag = 'internal scratch']
  #allocation2 [shape = 'f32[36,36]{1,0:T(8,128)}', space=vmem, size = 0x5000, scoped, tag = 'scratch operand']
  %s0 = inlined_call_operand.vmem [shape: f32[2,36,36], index: 0, kind: input, shape index: {}]
  %s1 = inlined_call_operand.vmem [shape: f32[2,36,36], index: 1, kind: input, shape index: {}]
  %s2 = inlined_call_operand.vmem [shape: f32[2,36,288], index: 2, kind: input, shape index: {}]
  %s3 = inlined_call_operand.vmem [shape: f32[2,36,288], index: 3, kind: output, shape index: {}]
  %s4 = sld [smem:[#allocation0]]
  $region49: #{ms_cross_att_fa_pallas.4} parent=0
    _
  %s6 = ssub.s32 1, %s4
  %s7 = scalar_select 0, %s6, %s4
  loop: start=0, step=1, limit=4
  $region2: #{ms_cross_att_fa_pallas.4} parent=0 // loop_pre_header
    _
  $region3: #{ms_cross_att_fa_pallas.4} parent=0 // loop_header
    %s9 = sphi 0, %s13
    %p10 = scmp.ge.s32.totalorder %s9, 4
    %s16 = sphi 0, %s28
    %s17 = sphi 0, %s24
    %s18 = sphi 0, %s16
    %s19 = sphi 0, %s17
    %s20 = sphi 0, %s18
    %s21 = sphi 0, %s19
    %s31 = sphi 0, %s33
    %s34 = sphi 0, %s31
    %s35 = sphi 0, %s34
    %s51 = sphi 0, %s35
    %s57 = sphi 0, %s59
    %s60 = sphi 0, %s57
    %s61 = sphi 0, %s60
    %s77 = sphi 0, %s61
    %s85 = sphi 0, %s87
    %s88 = sphi 0, %s85
    %s89 = sphi 0, %s88
    %s105 = sphi 0, %s89
    %s113 = sphi 0, %s115
    %s116 = sphi 0, %s113
    %s117 = sphi 0, %s116
    %s133 = sphi 0, %s117
  $region4: #{ms_cross_att_fa_pallas.4} parent=0 // loop_header_branch
    %12 = sbr.rel (%p10) target = $region8
  $region5: #{ms_cross_att_fa_pallas.4} parent=0 // loop_body
    %s14 = ssub.s32 %s9, 1
    %s15 = ssub.s32 %s9, 2
    %s22 = sadd.s32 1, %s17
    %p23 = scmp.ge.s32.totalorder %s22, 1
    %s24 = scalar_select %p23, 0, %s22
    %s25 = sadd.s32 1, %s16
    %s26 = scalar_select %p23, %s25, %s16
    %p27 = scmp.ge.s32.totalorder %s26, 2
    %s28 = scalar_select %p27, 0, %s26
    %s29 = ssub.s32 %s16, %s28
    %p30 = scmp.eq.s32.totalorder %s29, 0
    %s32 = sadd.s32 %s31, 1
    %s33 = scalar_select %p30, %s31, %s32
    %p36 = pneg %p30
    %p37 = scmp.eq.s32.totalorder %s9, 1
    %p38 = por %p36, %p37
    %p39 = scmp.ne.s32.totalorder %s31, %s34
    %p40 = scmp.eq.s32.totalorder %s9, 0
    %p41 = por %p39, %p40
    %p42 = scmp.ne.s32.totalorder %s31, %s34
    %p43 = scmp.eq.s32.totalorder %s14, 1
    %p44 = por %p42, %p43
    %p45 = scmp.ne.s32.totalorder %s34, %s35
    %p46 = scmp.eq.s32.totalorder %s14, 0
    %p47 = por %p45, %p46
    %p48 = scmp.ne.s32.totalorder %s34, %s35
    %p49 = scmp.eq.s32.totalorder %s15, 1
    %p50 = por %p48, %p49
    %p52 = scmp.ne.s32.totalorder %s35, %s51
    %p53 = scmp.eq.s32.totalorder %s15, 0
    %p54 = por %p52, %p53
    %s55 = ssub.s32 %s16, %s28
    %p56 = scmp.eq.s32.totalorder %s55, 0
    %s58 = sadd.s32 %s57, 1
    %s59 = scalar_select %p56, %s57, %s58
    %p62 = pneg %p56
    %p63 = scmp.eq.s32.totalorder %s9, 1
    %p64 = por %p62, %p63
    %p65 = scmp.ne.s32.totalorder %s57, %s60
    %p66 = scmp.eq.s32.totalorder %s9, 0
    %p67 = por %p65, %p66
    %p68 = scmp.ne.s32.totalorder %s57, %s60
    %p69 = scmp.eq.s32.totalorder %s14, 1
    %p70 = por %p68, %p69
    %p71 = scmp.ne.s32.totalorder %s60, %s61
    %p72 = scmp.eq.s32.totalorder %s14, 0
    %p73 = por %p71, %p72
    %p74 = scmp.ne.s32.totalorder %s60, %s61
    %p75 = scmp.eq.s32.totalorder %s15, 1
    %p76 = por %p74, %p75
    %p78 = scmp.ne.s32.totalorder %s61, %s77
    %p79 = scmp.eq.s32.totalorder %s15, 0
    %p80 = por %p78, %p79
    %s81 = ssub.s32 %s16, %s28
    %s82 = ssub.s32 %s17, %s24
    %s83 = sor.u32 %s81, %s82
    %p84 = scmp.eq.s32.totalorder %s83, 0
    %s86 = sadd.s32 %s85, 1
    %s87 = scalar_select %p84, %s85, %s86
    %p90 = pneg %p84
    %p91 = scmp.eq.s32.totalorder %s9, 1
    %p92 = por %p90, %p91
    %p93 = scmp.ne.s32.totalorder %s85, %s88
    %p94 = scmp.eq.s32.totalorder %s9, 0
    %p95 = por %p93, %p94
    %p96 = scmp.ne.s32.totalorder %s85, %s88
    %p97 = scmp.eq.s32.totalorder %s14, 1
    %p98 = por %p96, %p97
    %p99 = scmp.ne.s32.totalorder %s88, %s89
    %p100 = scmp.eq.s32.totalorder %s14, 0
    %p101 = por %p99, %p100
    %p102 = scmp.ne.s32.totalorder %s88, %s89
    %p103 = scmp.eq.s32.totalorder %s15, 1
    %p104 = por %p102, %p103
    %p106 = scmp.ne.s32.totalorder %s89, %s105
    %p107 = scmp.eq.s32.totalorder %s15, 0
    %p108 = por %p106, %p107
    %s109 = ssub.s32 %s16, %s28
    %s110 = ssub.s32 %s17, %s24
    %s111 = sor.u32 %s109, %s110
    %p112 = scmp.eq.s32.totalorder %s111, 0
    %s114 = sadd.s32 %s113, 1
    %s115 = scalar_select %p112, %s113, %s114
    %p118 = pneg %p112
    %p119 = scmp.eq.s32.totalorder %s9, 1
    %p120 = por %p118, %p119
    %p121 = scmp.ne.s32.totalorder %s113, %s116
    %p122 = scmp.eq.s32.totalorder %s9, 0
    %p123 = por %p121, %p122
    %p124 = scmp.ne.s32.totalorder %s113, %s116
    %p125 = scmp.eq.s32.totalorder %s14, 1
    %p126 = por %p124, %p125
    %p127 = scmp.ne.s32.totalorder %s116, %s117
    %p128 = scmp.eq.s32.totalorder %s14, 0
    %p129 = por %p127, %p128
    %p130 = scmp.ne.s32.totalorder %s116, %s117
    %p131 = scmp.eq.s32.totalorder %s15, 1
    %p132 = por %p130, %p131
    %p134 = scmp.ne.s32.totalorder %s117, %s133
    %p135 = scmp.eq.s32.totalorder %s15, 0
    %p136 = por %p134, %p135
    %p137 = scmp.le.s32.totalorder 1, %s9
    %p138 = scmp.lt.s32.totalorder %s9, 3
    %p139 = pnand %p137, %p138
    %p140 = pneg %p139
    // Predicated region
    $region9: #{ms_cross_att_fa_pallas.4} parent=5 // pred_check
      _
    $region10: #{ms_cross_att_fa_pallas.4} parent=5 // pred_check_branch
      %142 = sbr.rel (%p139) target = $region12
    $region11: #{ms_cross_att_fa_pallas.4} parent=5 // pred_region
      %s143 = ssub.s32 %s9, 1
    $region12: #{ms_cross_att_fa_pallas.4} parent=5 // pred_fallthru
      _
    %p144 = scmp.lt.s32.totalorder %s9, 2
    // Predicated region
    $region13: #{ms_cross_att_fa_pallas.4} parent=5 // pred_check
      %p145 = pneg %p144
    $region14: #{ms_cross_att_fa_pallas.4} parent=5 // pred_check_branch
      %147 = sbr.rel (%p145) target = $region16
    $region15: #{ms_cross_att_fa_pallas.4} parent=5 // pred_region
      // Predicated region
      $region17: #{ms_cross_att_fa_pallas.4} parent=15 // pred_check
        %p148 = pneg %p41
      $region18: #{ms_cross_att_fa_pallas.4} parent=15 // pred_check_branch
        %150 = sbr.rel (%p148) target = $region20
      $region19: #{ms_cross_att_fa_pallas.4} parent=15 // pred_region
        %p151 = scmp.lt.s32.totalorder %s16, 1
        %s152 = scalar_select %p151, %s16, 1
        %s153 = smul.addr %s152, 5
        %s154 = smul.addr %s153, 8
        %s155 = scalar_lea.vmem %s0, %s154
      $region20: #{ms_cross_att_fa_pallas.4} parent=15 // pred_fallthru
        _
      // Predicated region
      $region21: #{ms_cross_att_fa_pallas.4} parent=15 // pred_check
        %p156 = pneg %p67
      $region22: #{ms_cross_att_fa_pallas.4} parent=15 // pred_check_branch
        %158 = sbr.rel (%p156) target = $region24
      $region23: #{ms_cross_att_fa_pallas.4} parent=15 // pred_region
        %p159 = scmp.lt.s32.totalorder %s16, 1
        %s160 = scalar_select %p159, %s16, 1
        %s161 = smul.addr %s160, 5
        %s162 = smul.addr %s161, 8
        %s163 = scalar_lea.vmem %s1, %s162
      $region24: #{ms_cross_att_fa_pallas.4} parent=15 // pred_fallthru
        _
      // Predicated region
      $region25: #{ms_cross_att_fa_pallas.4} parent=15 // pred_check
        %p164 = pneg %p95
      $region26: #{ms_cross_att_fa_pallas.4} parent=15 // pred_check_branch
        %166 = sbr.rel (%p164) target = $region28
      $region27: #{ms_cross_att_fa_pallas.4} parent=15 // pred_region
        %s167 = smul.u32 3, %s17
        %p168 = scmp.lt.s32.totalorder %s16, 1
        %s169 = scalar_select %p168, %s16, 1
        %p170 = scmp.lt.s32.totalorder %s167, 2
        %s171 = scalar_select %p170, %s167, 2
        %s172 = smul.addr %s169, 15
        %s173 = sadd.s32 %s171, %s172
        %s174 = smul.addr %s173, 8
        %s175 = scalar_lea.vmem %s2, %s174
        %s176 = smul.u32 3, %s17
      $region28: #{ms_cross_att_fa_pallas.4} parent=15 // pred_fallthru
        _
    $region16: #{ms_cross_att_fa_pallas.4} parent=5 // pred_fallthru
      _
    %p177 = scmp.le.s32.totalorder 1, %s9
    %p178 = scmp.lt.s32.totalorder %s9, 3
    %p179 = pnand %p177, %p178
    %p180 = pneg %p179
    // Predicated region
    $region29: #{ms_cross_att_fa_pallas.4} parent=5 // pred_check
      _
    $region30: #{ms_cross_att_fa_pallas.4} parent=5 // pred_check_branch
      %182 = sbr.rel (%p179) target = $region32
    $region31: #{ms_cross_att_fa_pallas.4} parent=5 // pred_region
      %s183 = ssub.s32 %s9, 1
      %p184 = scmp.lt.s32.totalorder %s18, 1
      %s185 = scalar_select %p184, %s18, 1
      %s186 = smul.addr %s185, 5
      %s187 = smul.addr %s186, 8
      %s188 = scalar_lea.vmem %s0, %s187
      %p189 = pneg %p47
      %p190 = pneg %p44
      %p191 = scmp.lt.s32.totalorder %s18, 1
      %s192 = scalar_select %p191, %s18, 1
      %s193 = smul.addr %s192, 5
      %s194 = smul.addr %s193, 8
      %s195 = scalar_lea.vmem %s1, %s194
      %p196 = pneg %p73
      %p197 = pneg %p70
      %s198 = smul.u32 3, %s19
      %p199 = scmp.lt.s32.totalorder %s18, 1
      %s200 = scalar_select %p199, %s18, 1
      %p201 = scmp.lt.s32.totalorder %s198, 2
      %s202 = scalar_select %p201, %s198, 2
      %s203 = smul.addr %s200, 15
      %s204 = sadd.s32 %s202, %s203
      %s205 = smul.addr %s204, 8
      %s206 = scalar_lea.vmem %s2, %s205
      %p207 = pneg %p101
      %p208 = pneg %p98
      %p209 = pneg %p129
      %p210 = pneg %p126
      %s211 = smul.u32 3, %s19
      %p212 = scmp.lt.s32.totalorder %s18, 1
      %s213 = scalar_select %p212, %s18, 1
      %p214 = scmp.lt.s32.totalorder %s211, 2
      %s215 = scalar_select %p214, %s211, 2
      %s216 = smul.addr %s213, 15
      %s217 = sadd.s32 %s215, %s216
      %s218 = smul.addr %s217, 8
      %s219 = scalar_lea.vmem %s3, %s218
      %p220 = scmp.lt.s32.totalorder %s18, 1
      %s221 = scalar_select %p220, %s18, 1
      %s222 = smul.addr %s221, 5
      %s223 = smul.addr %s222, 8
      %s224 = scalar_lea.vmem %s0, %s223
      %p225 = scmp.lt.s32.totalorder %s18, 1
      %s226 = scalar_select %p225, %s18, 1
      %s227 = smul.addr %s226, 5
      %s228 = smul.addr %s227, 8
      %s229 = scalar_lea.vmem %s1, %s228
      %s230 = smul.u32 3, %s19
      %p231 = scmp.lt.s32.totalorder %s18, 1
      %s232 = scalar_select %p231, %s18, 1
      %p233 = scmp.lt.s32.totalorder %s230, 2
      %s234 = scalar_select %p233, %s230, 2
      %s235 = smul.addr %s232, 15
      %s236 = sadd.s32 %s234, %s235
      %s237 = smul.addr %s236, 8
      %s238 = scalar_lea.vmem %s2, %s237
      %s239 = smul.u32 3, %s19
      %s240 = smul.u32 3, %s19
      %p241 = scmp.lt.s32.totalorder %s18, 1
      %s242 = scalar_select %p241, %s18, 1
      %p243 = scmp.lt.s32.totalorder %s240, 2
      %s244 = scalar_select %p243, %s240, 2
      %s245 = smul.addr %s242, 15
      %s246 = sadd.s32 %s244, %s245
      %s247 = smul.addr %s246, 8
      %s248 = scalar_lea.vmem %s3, %s247
      %s249 = smul.u32 3, %s19
      %p250 = scmp.eq.s32.totalorder %s19, 0
      // Predicated region
      $region33: #{ms_cross_att_fa_pallas.4} parent=31 // pred_check
        %p251 = pneg %p250
      $region34: #{ms_cross_att_fa_pallas.4} parent=31 // pred_check_branch
        %253 = sbr.rel (%p251) target = $region36
      $region35: #{ms_cross_att_fa_pallas.4} parent=31 // pred_region
        %v254 = vld [vmem:[%s224] sm:$0xff]
        %v255 = vld [vmem:[%s224 + $0x8] sm:$0xff]
        %v256 = vld [vmem:[%s224 + $0x10] sm:$0xff]
        %v257 = vld [vmem:[%s224 + $0x18] sm:$0xff]
        %v258 = vld [vmem:[%s224 + $0x20] sm:$0xf]
        %v259 = vld [vmem:[%s229] sm:$0xff]
        %v260 = vld [vmem:[%s229 + $0x8] sm:$0xff]
        %v261 = vld [vmem:[%s229 + $0x10] sm:$0xff]
        %v262 = vld [vmem:[%s229 + $0x18] sm:$0xff]
        %v263 = vld [vmem:[%s229 + $0x20] sm:$0xf]
        %vm264 = vcmask 293888
        %v266 = vsel %vm264, %v254, 0
        %v269 = vsel %vm264, %v255, 0
        %v272 = vsel %vm264, %v256, 0
        %v275 = vsel %vm264, %v257, 0
        %v278 = vsel %vm264, %v258, 0
        %vm280 = vcmask 1043456
        %v282 = vsel %vm280, %v263, 0
        %284 = vmatprep.subr.mxu0 0.0
        %285 = vmatpush1.msra.mxu0 0.0
        %286 = vmatprep.subr.mxu0 0.0
        %287 = vmatpush1.msra.mxu0 0.0
        %288 = vmatprep.subr.mxu0 0.0
        %289 = vmatpush1.msra.mxu0 0.0
        %290 = vmatprep.subr.mxu0 0.0
        %291 = vmatpush1.msra.mxu0 0.0
        %292 = vmatprep.subr.mxu0 0.0
        %293 = vmatpush1.msra.mxu0 0.0
        %294 = vmatprep.subr.mxu0 0.0
        %295 = vmatpush1.msra.mxu0 0.0
        %296 = vmatprep.subr.mxu0 0.0
        %297 = vmatpush1.msra.mxu0 0.0
        %298 = vmatprep.subr.mxu0 0.0
        %299 = vmatpush1.msra.mxu0 0.0
        %300 = vmatprep.subr.mxu0 0.0
        %301 = vmatpush1.msra.mxu0 0.0
        %302 = vmatprep.subr.mxu0 0.0
        %303 = vmatpush1.msra.mxu0 0.0
        %304 = vmatprep.subr.mxu0 0.0
        %305 = vmatpush1.msra.mxu0 0.0
        %306 = vmatprep.subr.mxu0 0.0
        %307 = vmatpush1.msra.mxu0 %v282
        %308 = vmatprep.subr.mxu0 0.0
        %309 = vmatpush1.msra.mxu0 %v262
        %310 = vmatprep.subr.mxu0 0.0
        %311 = vmatpush1.msra.mxu0 %v261
        %312 = vmatprep.subr.mxu0 0.0
        %313 = vmatpush1.msra.mxu0 %v260
        %314 = vmatprep.subr.mxu0 0.0
        %315 = vmatpush1.msra.mxu0 %v259
        %316 = vmatprep.subr.mxu0 0.0
        %317 = vmatpush2.msra.mxu0 0.0
        %318 = vmatprep.subr.mxu0 0.0
        %319 = vmatpush2.msra.mxu0 0.0
        %320 = vmatprep.subr.mxu0 0.0
        %321 = vmatpush2.msra.mxu0 0.0
        %322 = vmatprep.subr.mxu0 0.0
        %323 = vmatpush2.msra.mxu0 0.0
        %324 = vmatprep.subr.mxu0 0.0
        %325 = vmatpush2.msra.mxu0 0.0
        %326 = vmatprep.subr.mxu0 0.0
        %327 = vmatpush2.msra.mxu0 0.0
        %328 = vmatprep.subr.mxu0 0.0
        %329 = vmatpush2.msra.mxu0 0.0
        %330 = vmatprep.subr.mxu0 0.0
        %331 = vmatpush2.msra.mxu0 0.0
        %332 = vmatprep.subr.mxu0 0.0
        %333 = vmatpush2.msra.mxu0 0.0
        %334 = vmatprep.subr.mxu0 0.0
        %335 = vmatpush2.msra.mxu0 0.0
        %336 = vmatprep.subr.mxu0 0.0
        %337 = vmatpush2.msra.mxu0 0.0
        %338 = vmatprep.subr.mxu0 0.0
        %339 = vmatpush2.msra.mxu0 0.0
        %340 = vmatprep.subr.mxu0 0.0
        %341 = vmatpush2.msra.mxu0 0.0
        %342 = vmatprep.subr.mxu0 0.0
        %343 = vmatpush2.msra.mxu0 0.0
        %344 = vmatprep.subr.mxu0 0.0
        %345 = vmatpush2.msra.mxu0 0.0
        %346 = vmatprep.subr.mxu0 0.0
        %347 = vmatpush2.msra.mxu0 0.0
        %348 = vmatprep.mubr.f32.mxu0 0.0
        %349 = vmatmul.mubr.f32.gmra.mxu0 %v266
        %v350 = vpop.f32.mrf.mxu0
        %v351 = vadd.f32 0.0, %v350
        %v352 = vpop.f32.mrf.mxu0
        %353 = vmatprep.mubr.f32.mxu0 0.0
        %354 = vmatmul.mubr.f32.gmra.mxu0 %v269
        %v355 = vpop.f32.mrf.mxu0
        %v356 = vadd.f32 0.0, %v355
        %v357 = vpop.f32.mrf.mxu0
        %358 = vmatprep.mubr.f32.mxu0 0.0
        %359 = vmatmul.mubr.f32.gmra.mxu0 %v272
        %v360 = vpop.f32.mrf.mxu0
        %v361 = vadd.f32 0.0, %v360
        %v362 = vpop.f32.mrf.mxu0
        %363 = vmatprep.mubr.f32.mxu0 0.0
        %364 = vmatmul.mubr.f32.gmra.mxu0 %v275
        %v365 = vpop.f32.mrf.mxu0
        %v366 = vadd.f32 0.0, %v365
        %v367 = vpop.f32.mrf.mxu0
        %368 = vmatprep.mubr.f32.mxu0 0.0
        %369 = vmatmul.mubr.f32.gmra.mxu0 %v278
        %v370 = vpop.f32.mrf.mxu0
        %v371 = vadd.f32 0.0, %v370
        %v372 = vpop.f32.mrf.mxu0
        %373 = vdwg.mxu0
        %v374 = vmul.f32 %v259, %v259
        %v375 = vmul.f32 %v260, %v260
        %v376 = vmul.f32 %v261, %v261
        %v377 = vmul.f32 %v262, %v262
        %v378 = vmul.f32 %v263, %v263
        %v379 = vsel %vm264, %v374, 0.0
        %v380 = vsel %vm264, %v375, 0.0
        %v381 = vadd.f32 %v379, %v380
        %v382 = vsel %vm264, %v376, 0.0
        %v383 = vadd.f32 %v381, %v382
        %v384 = vsel %vm264, %v377, 0.0
        %v385 = vadd.f32 %v383, %v384
        %vm386 = vcmask 289792
        %v387 = vsel %vm386, %v378, 0.0
        %v388 = vadd.f32 %v385, %v387
        %v389 = vrot.slane %v388, 4
        %v390 = vadd.f32 %v388, %v389
        %v391 = vrot.slane %v390, 2
        %v392 = vadd.f32 %v390, %v391
        %v393 = vrot.slane %v392, 1
        %v394 = vadd.f32 %v392, %v393
        %v395 = vmax.f32 %v394, 1e-24
        %v396 = vrsqrt.pop %v395
        %v397 = vmul.f32 %v351, %v396
        %v398 = vmul.f32 %v356, %v396
        %v399 = vmul.f32 %v361, %v396
        %v400 = vmul.f32 %v366, %v396
        %v401 = vmul.f32 %v371, %v396
        %v402 = vlaneseq
        %v403 = vand.u32 %v402, 127
        %v404 = vsel %vm264, %v397, -inf
        %405 = vmax.xlane.f32.xlu0 %v404
        %v406 = vpop.xlane.xlu0 %405
        %v407 = vsel %vm264, %v398, -inf
        %408 = vmax.xlane.f32.xlu0 %v407
        %v409 = vpop.xlane.xlu0 %408
        %v410 = vsel %vm264, %v399, -inf
        %411 = vmax.xlane.f32.xlu0 %v410
        %v412 = vpop.xlane.xlu0 %411
        %v413 = vsel %vm264, %v400, -inf
        %414 = vmax.xlane.f32.xlu0 %v413
        %v415 = vpop.xlane.xlu0 %414
        %v416 = vsel %vm386, %v401, -inf
        %417 = vmax.xlane.f32.xlu0 %v416
        %v418 = vpop.xlane.xlu0 %417
        %vm419 = vcmp.ge.f32.partialorder %v397, %v406
        %vm420 = vcmp.ge.f32.partialorder %v398, %v409
        %vm421 = vcmp.ge.f32.partialorder %v399, %v412
        %vm422 = vcmp.ge.f32.partialorder %v400, %v415
        %vm423 = vcmp.ge.f32.partialorder %v401, %v418
        %v424 = vsel %vm419, %v403, 36
        %v425 = vsel %vm420, %v403, 36
        %v426 = vsel %vm421, %v403, 36
        %v427 = vsel %vm422, %v403, 36
        %v428 = vsel %vm423, %v403, 36
        %v429 = vsel %vm264, %v424, 2147483647
        %v430 = vand.u32 %v429, 65535
        %v431 = vshra.s32 %v429, 16
        %v432 = vcvt.s32.f32 %v430
        %v433 = vcvt.s32.f32 %v431
        %434 = vmin.xlane.f32.xlu0 %v433
        %v435 = vpop.xlane.xlu0 %434
        %vm436 = vcmp.eq.f32.partialorder %v433, %v435
        %v437 = vsel %vm436, %v432, inf
        %438 = vmin.xlane.f32.xlu0 %v437
        %v439 = vpop.xlane.xlu0 %438
        %v440 = vcvt.f32.s32 %v439
        %v441 = vcvt.f32.s32 %v435
        %v442 = vshll.u32 %v441, 16
        %v443 = vadd.s32 %v442, %v440
        %v444 = vsel %vm264, %v425, 2147483647
        %v445 = vand.u32 %v444, 65535
        %v446 = vshra.s32 %v444, 16
        %v447 = vcvt.s32.f32 %v445
        %v448 = vcvt.s32.f32 %v446
        %449 = vmin.xlane.f32.xlu0 %v448
        %v450 = vpop.xlane.xlu0 %449
        %vm451 = vcmp.eq.f32.partialorder %v448, %v450
        %v452 = vsel %vm451, %v447, inf
        %453 = vmin.xlane.f32.xlu0 %v452
        %v454 = vpop.xlane.xlu0 %453
        %v455 = vcvt.f32.s32 %v454
        %v456 = vcvt.f32.s32 %v450
        %v457 = vshll.u32 %v456, 16
        %v458 = vadd.s32 %v457, %v455
        %v459 = vsel %vm264, %v426, 2147483647
        %v460 = vand.u32 %v459, 65535
        %v461 = vshra.s32 %v459, 16
        %v462 = vcvt.s32.f32 %v460
        %v463 = vcvt.s32.f32 %v461
        %464 = vmin.xlane.f32.xlu0 %v463
        %v465 = vpop.xlane.xlu0 %464
        %vm466 = vcmp.eq.f32.partialorder %v463, %v465
        %v467 = vsel %vm466, %v462, inf
        %468 = vmin.xlane.f32.xlu0 %v467
        %v469 = vpop.xlane.xlu0 %468
        %v470 = vcvt.f32.s32 %v469
        %v471 = vcvt.f32.s32 %v465
        %v472 = vshll.u32 %v471, 16
        %v473 = vadd.s32 %v472, %v470
        %v474 = vsel %vm264, %v427, 2147483647
        %v475 = vand.u32 %v474, 65535
        %v476 = vshra.s32 %v474, 16
        %v477 = vcvt.s32.f32 %v475
        %v478 = vcvt.s32.f32 %v476
        %479 = vmin.xlane.f32.xlu0 %v478
        %v480 = vpop.xlane.xlu0 %479
        %vm481 = vcmp.eq.f32.partialorder %v478, %v480
        %v482 = vsel %vm481, %v477, inf
        %483 = vmin.xlane.f32.xlu0 %v482
        %v484 = vpop.xlane.xlu0 %483
        %v485 = vcvt.f32.s32 %v484
        %v486 = vcvt.f32.s32 %v480
        %v487 = vshll.u32 %v486, 16
        %v488 = vadd.s32 %v487, %v485
        %v489 = vsel %vm386, %v428, 2147483647
        %v490 = vand.u32 %v489, 65535
        %v491 = vshra.s32 %v489, 16
        %v492 = vcvt.s32.f32 %v490
        %v493 = vcvt.s32.f32 %v491
        %494 = vmin.xlane.f32.xlu0 %v493
        %v495 = vpop.xlane.xlu0 %494
        %vm496 = vcmp.eq.f32.partialorder %v493, %v495
        %v497 = vsel %vm496, %v492, inf
        %498 = vmin.xlane.f32.xlu0 %v497
        %v499 = vpop.xlane.xlu0 %498
        %v500 = vcvt.f32.s32 %v499
        %v501 = vcvt.f32.s32 %v495
        %v502 = vshll.u32 %v501, 16
        %v503 = vadd.s32 %v502, %v500
        %vm504 = vcmp.eq.s32.totalorder %v403, %v443
        %vm505 = vcmp.eq.s32.totalorder %v403, %v458
        %vm506 = vcmp.eq.s32.totalorder %v403, %v473
        %vm507 = vcmp.eq.s32.totalorder %v403, %v488
        %vm508 = vcmp.eq.s32.totalorder %v403, %v503
        %v509 = vsel %vm504, 1, 0
        %v510 = vsel %vm505, 1, 0
        %v511 = vsel %vm506, 1, 0
        %v512 = vsel %vm507, 1, 0
        %v513 = vsel %vm508, 1, 0
        %v514 = vcvt.s32.f32 %v509
        %v515 = vcvt.s32.f32 %v510
        %v516 = vcvt.s32.f32 %v511
        %v517 = vcvt.s32.f32 %v512
        %v518 = vcvt.s32.f32 %v513
        %519 = vst.msk [vmem:[#allocation2] sm:$0xff] %vm264, %v514
        %520 = vst.msk [vmem:[#allocation2 + $0x8] sm:$0xff] %vm264, %v515
        %521 = vst.msk [vmem:[#allocation2 + $0x10] sm:$0xff] %vm264, %v516
        %522 = vst.msk [vmem:[#allocation2 + $0x18] sm:$0xff] %vm264, %v517
        %523 = vst.msk [vmem:[#allocation2 + $0x20] sm:$0xf] %vm386, %v518
      $region36: #{ms_cross_att_fa_pallas.4} parent=31 // pred_fallthru
        _
      %v524 = vld [vmem:[#allocation2] sm:$0xff]
      %v525 = vld [vmem:[#allocation2 + $0x8] sm:$0xff]
      %v526 = vld [vmem:[#allocation2 + $0x10] sm:$0xff]
      %v527 = vld [vmem:[#allocation2 + $0x18] sm:$0xff]
      %v528 = vld [vmem:[#allocation2 + $0x20] sm:$0xf]
      %v529 = vld [vmem:[%s238] sm:$0xff]
      %v530 = vld [vmem:[%s238 + $0x8] sm:$0xff]
      %v531 = vld [vmem:[%s238 + $0x10] sm:$0xff]
      %v532 = vld [vmem:[%s238 + $0x18] sm:$0xff]
      %v533 = vld [vmem:[%s238 + $0x20] sm:$0xff]
      %v534 = vld [vmem:[%s238 + $0x28] sm:$0xff]
      %v535 = vld [vmem:[%s238 + $0x30] sm:$0xff]
      %v536 = vld [vmem:[%s238 + $0x38] sm:$0xff]
      %v537 = vld [vmem:[%s238 + $0x40] sm:$0xff]
      %v538 = vld [vmem:[%s238 + $0x48] sm:$0xff]
      %v539 = vld [vmem:[%s238 + $0x50] sm:$0xff]
      %v540 = vld [vmem:[%s238 + $0x58] sm:$0xff]
      %v541 = vld [vmem:[%s238 + $0x60] sm:$0xf]
      %v542 = vld [vmem:[%s238 + $0x68] sm:$0xf]
      %v543 = vld [vmem:[%s238 + $0x70] sm:$0xf]
      %vm544 = vcmask 293888
      %v546 = vsel %vm544, %v524, 0
      %v549 = vsel %vm544, %v525, 0
      %v552 = vsel %vm544, %v526, 0
      %v555 = vsel %vm544, %v527, 0
      %v558 = vsel %vm544, %v528, 0
      %vm560 = vcmask 1043456
      %v562 = vsel %vm560, %v541, 0
      %v565 = vsel %vm560, %v542, 0
      %v568 = vsel %vm560, %v543, 0
      %570 = vmatprep.subr.mxu0 0.0
      %571 = vmatpush1.msra.mxu0 0.0
      %572 = vmatprep.subr.mxu0 0.0
      %573 = vmatpush1.msra.mxu0 0.0
      %574 = vmatprep.subr.mxu0 0.0
      %575 = vmatpush1.msra.mxu0 0.0
      %576 = vmatprep.subr.mxu0 0.0
      %577 = vmatpush1.msra.mxu0 0.0
      %578 = vmatprep.subr.mxu0 0.0
      %579 = vmatpush1.msra.mxu0 0.0
      %580 = vmatprep.subr.mxu0 0.0
      %581 = vmatpush1.msra.mxu0 0.0
      %582 = vmatprep.subr.mxu0 0.0
      %583 = vmatpush1.msra.mxu0 0.0
      %584 = vmatprep.subr.mxu0 0.0
      %585 = vmatpush1.msra.mxu0 0.0
      %586 = vmatprep.subr.mxu0 0.0
      %587 = vmatpush1.msra.mxu0 0.0
      %588 = vmatprep.subr.mxu0 0.0
      %589 = vmatpush1.msra.mxu0 0.0
      %590 = vmatprep.subr.mxu0 0.0
      %591 = vmatpush1.msra.mxu0 0.0
      %592 = vmatprep.subr.mxu0 %v565
      %593 = vmatpush1.msra.mxu0 %v562
      %594 = vmatprep.subr.mxu0 %v539
      %595 = vmatpush1.msra.mxu0 %v538
      %596 = vmatprep.subr.mxu0 %v536
      %597 = vmatpush1.msra.mxu0 %v535
      %598 = vmatprep.subr.mxu0 %v533
      %599 = vmatpush1.msra.mxu0 %v532
      %600 = vmatprep.subr.mxu0 %v530
      %601 = vmatpush1.msra.mxu0 %v529
      %602 = vmatprep.subr.mxu0 0.0
      %603 = vmatpush2.msra.mxu0 0.0
      %604 = vmatprep.subr.mxu0 0.0
      %605 = vmatpush2.msra.mxu0 0.0
      %606 = vmatprep.subr.mxu0 0.0
      %607 = vmatpush2.msra.mxu0 0.0
      %608 = vmatprep.subr.mxu0 0.0
      %609 = vmatpush2.msra.mxu0 0.0
      %610 = vmatprep.subr.mxu0 0.0
      %611 = vmatpush2.msra.mxu0 0.0
      %612 = vmatprep.subr.mxu0 0.0
      %613 = vmatpush2.msra.mxu0 0.0
      %614 = vmatprep.subr.mxu0 0.0
      %615 = vmatpush2.msra.mxu0 0.0
      %616 = vmatprep.subr.mxu0 0.0
      %617 = vmatpush2.msra.mxu0 0.0
      %618 = vmatprep.subr.mxu0 0.0
      %619 = vmatpush2.msra.mxu0 0.0
      %620 = vmatprep.subr.mxu0 0.0
      %621 = vmatpush2.msra.mxu0 0.0
      %622 = vmatprep.subr.mxu0 0.0
      %623 = vmatpush2.msra.mxu0 0.0
      %624 = vmatprep.subr.mxu0 0.0
      %625 = vmatpush2.msra.mxu0 0.0
      %626 = vmatprep.subr.mxu0 0.0
      %627 = vmatpush2.msra.mxu0 0.0
      %628 = vmatprep.subr.mxu0 0.0
      %629 = vmatpush2.msra.mxu0 0.0
      %630 = vmatprep.subr.mxu0 0.0
      %631 = vmatpush2.msra.mxu0 0.0
      %632 = vmatprep.subr.mxu0 0.0
      %633 = vmatpush2.msra.mxu0 0.0
      %634 = vmatprep.mubr.f32.mxu0 0.0
      %635 = vmatmul.mubr.f32.gmra.mxu0 %v546
      %v636 = vpop.f32.mrf.mxu0
      %v637 = vadd.f32 0.0, %v636
      %v638 = vpop.f32.mrf.mxu0
      %v639 = vadd.f32 0.0, %v638
      %640 = vmatprep.mubr.f32.mxu0 0.0
      %641 = vmatmul.mubr.f32.gmra.mxu0 %v549
      %v642 = vpop.f32.mrf.mxu0
      %v643 = vadd.f32 0.0, %v642
      %v644 = vpop.f32.mrf.mxu0
      %v645 = vadd.f32 0.0, %v644
      %646 = vmatprep.mubr.f32.mxu0 0.0
      %647 = vmatmul.mubr.f32.gmra.mxu0 %v552
      %v648 = vpop.f32.mrf.mxu0
      %v649 = vadd.f32 0.0, %v648
      %v650 = vpop.f32.mrf.mxu0
      %v651 = vadd.f32 0.0, %v650
      %652 = vmatprep.mubr.f32.mxu0 0.0
      %653 = vmatmul.mubr.f32.gmra.mxu0 %v555
      %v654 = vpop.f32.mrf.mxu0
      %v655 = vadd.f32 0.0, %v654
      %v656 = vpop.f32.mrf.mxu0
      %v657 = vadd.f32 0.0, %v656
      %658 = vmatprep.mubr.f32.mxu0 0.0
      %659 = vmatmul.mubr.f32.gmra.mxu0 %v558
      %v660 = vpop.f32.mrf.mxu0
      %v661 = vadd.f32 0.0, %v660
      %v662 = vpop.f32.mrf.mxu0
      %v663 = vadd.f32 0.0, %v662
      %664 = vdwg.mxu0
      %665 = vmatprep.subr.mxu0 0.0
      %666 = vmatpush1.msra.mxu0 0.0
      %667 = vmatprep.subr.mxu0 0.0
      %668 = vmatpush1.msra.mxu0 0.0
      %669 = vmatprep.subr.mxu0 0.0
      %670 = vmatpush1.msra.mxu0 0.0
      %671 = vmatprep.subr.mxu0 0.0
      %672 = vmatpush1.msra.mxu0 0.0
      %673 = vmatprep.subr.mxu0 0.0
      %674 = vmatpush1.msra.mxu0 0.0
      %675 = vmatprep.subr.mxu0 0.0
      %676 = vmatpush1.msra.mxu0 0.0
      %677 = vmatprep.subr.mxu0 0.0
      %678 = vmatpush1.msra.mxu0 0.0
      %679 = vmatprep.subr.mxu0 0.0
      %680 = vmatpush1.msra.mxu0 0.0
      %681 = vmatprep.subr.mxu0 0.0
      %682 = vmatpush1.msra.mxu0 0.0
      %683 = vmatprep.subr.mxu0 0.0
      %684 = vmatpush1.msra.mxu0 0.0
      %685 = vmatprep.subr.mxu0 0.0
      %686 = vmatpush1.msra.mxu0 0.0
      %687 = vmatprep.subr.mxu0 0.0
      %688 = vmatpush1.msra.mxu0 %v568
      %689 = vmatprep.subr.mxu0 0.0
      %690 = vmatpush1.msra.mxu0 %v540
      %691 = vmatprep.subr.mxu0 0.0
      %692 = vmatpush1.msra.mxu0 %v537
      %693 = vmatprep.subr.mxu0 0.0
      %694 = vmatpush1.msra.mxu0 %v534
      %695 = vmatprep.subr.mxu0 0.0
      %696 = vmatpush1.msra.mxu0 %v531
      %697 = vmatprep.subr.mxu0 0.0
      %698 = vmatpush2.msra.mxu0 0.0
      %699 = vmatprep.subr.mxu0 0.0
      %700 = vmatpush2.msra.mxu0 0.0
      %701 = vmatprep.subr.mxu0 0.0
      %702 = vmatpush2.msra.mxu0 0.0
      %703 = vmatprep.subr.mxu0 0.0
      %704 = vmatpush2.msra.mxu0 0.0
      %705 = vmatprep.subr.mxu0 0.0
      %706 = vmatpush2.msra.mxu0 0.0
      %707 = vmatprep.subr.mxu0 0.0
      %708 = vmatpush2.msra.mxu0 0.0
      %709 = vmatprep.subr.mxu0 0.0
      %710 = vmatpush2.msra.mxu0 0.0
      %711 = vmatprep.subr.mxu0 0.0
      %712 = vmatpush2.msra.mxu0 0.0
      %713 = vmatprep.subr.mxu0 0.0
      %714 = vmatpush2.msra.mxu0 0.0
      %715 = vmatprep.subr.mxu0 0.0
      %716 = vmatpush2.msra.mxu0 0.0
      %717 = vmatprep.subr.mxu0 0.0
      %718 = vmatpush2.msra.mxu0 0.0
      %719 = vmatprep.subr.mxu0 0.0
      %720 = vmatpush2.msra.mxu0 0.0
      %721 = vmatprep.subr.mxu0 0.0
      %722 = vmatpush2.msra.mxu0 0.0
      %723 = vmatprep.subr.mxu0 0.0
      %724 = vmatpush2.msra.mxu0 0.0
      %725 = vmatprep.subr.mxu0 0.0
      %726 = vmatpush2.msra.mxu0 0.0
      %727 = vmatprep.subr.mxu0 0.0
      %728 = vmatpush2.msra.mxu0 0.0
      %729 = vmatprep.mubr.f32.mxu0 0.0
      %730 = vmatmul.mubr.f32.gmra.mxu0 %v546
      %v731 = vpop.f32.mrf.mxu0
      %v732 = vadd.f32 0.0, %v731
      %v733 = vpop.f32.mrf.mxu0
      %734 = vmatprep.mubr.f32.mxu0 0.0
      %735 = vmatmul.mubr.f32.gmra.mxu0 %v549
      %v736 = vpop.f32.mrf.mxu0
      %v737 = vadd.f32 0.0, %v736
      %v738 = vpop.f32.mrf.mxu0
      %739 = vmatprep.mubr.f32.mxu0 0.0
      %740 = vmatmul.mubr.f32.gmra.mxu0 %v552
      %v741 = vpop.f32.mrf.mxu0
      %v742 = vadd.f32 0.0, %v741
      %v743 = vpop.f32.mrf.mxu0
      %744 = vmatprep.mubr.f32.mxu0 0.0
      %745 = vmatmul.mubr.f32.gmra.mxu0 %v555
      %v746 = vpop.f32.mrf.mxu0
      %v747 = vadd.f32 0.0, %v746
      %v748 = vpop.f32.mrf.mxu0
      %749 = vmatprep.mubr.f32.mxu0 0.0
      %750 = vmatmul.mubr.f32.gmra.mxu0 %v558
      %v751 = vpop.f32.mrf.mxu0
      %v752 = vadd.f32 0.0, %v751
      %v753 = vpop.f32.mrf.mxu0
      %754 = vdwg.mxu0
      %755 = vst [vmem:[%s248] sm:$0xff] %v637
      %756 = vst [vmem:[%s248 + $0x8] sm:$0xff] %v639
      %vm757 = vcmask 261120
      %758 = vst.msk [vmem:[%s248 + $0x10] sm:$0xff] %vm757, %v732
      %759 = vst [vmem:[%s248 + $0x18] sm:$0xff] %v643
      %760 = vst [vmem:[%s248 + $0x20] sm:$0xff] %v645
      %761 = vst.msk [vmem:[%s248 + $0x28] sm:$0xff] %vm757, %v737
      %762 = vst [vmem:[%s248 + $0x30] sm:$0xff] %v649
      %763 = vst [vmem:[%s248 + $0x38] sm:$0xff] %v651
      %764 = vst.msk [vmem:[%s248 + $0x40] sm:$0xff] %vm757, %v742
      %765 = vst [vmem:[%s248 + $0x48] sm:$0xff] %v655
      %766 = vst [vmem:[%s248 + $0x50] sm:$0xff] %v657
      %767 = vst.msk [vmem:[%s248 + $0x58] sm:$0xff] %vm757, %v747
      %768 = vst [vmem:[%s248 + $0x60] sm:$0xf] %v661
      %769 = vst [vmem:[%s248 + $0x68] sm:$0xf] %v663
      %vm770 = vcmask 257024
      %771 = vst.msk [vmem:[%s248 + $0x70] sm:$0xf] %vm770, %v752
      %s772 = smul.u32 3, %s19
      %p773 = scmp.lt.s32.totalorder %s18, 1
      %s774 = scalar_select %p773, %s18, 1
      %p775 = scmp.lt.s32.totalorder %s772, 2
      %s776 = scalar_select %p775, %s772, 2
      %s777 = smul.addr %s774, 15
      %s778 = sadd.s32 %s776, %s777
      %s779 = smul.addr %s778, 8
      %s780 = scalar_lea.vmem %s3, %s779
      // Predicated region
      $region37: #{ms_cross_att_fa_pallas.4} parent=31 // pred_check
        %p781 = pneg %p126
      $region38: #{ms_cross_att_fa_pallas.4} parent=31 // pred_check_branch
        %783 = sbr.rel (%p781) target = $region40
      $region39: #{ms_cross_att_fa_pallas.4} parent=31 // pred_region
        %s784 = smul.u32 3, %s19
      $region40: #{ms_cross_att_fa_pallas.4} parent=31 // pred_fallthru
        _
    $region32: #{ms_cross_att_fa_pallas.4} parent=5 // pred_fallthru
      _
    %p785 = scmp.le.s32.totalorder 2, %s9
    // Predicated region
    $region41: #{ms_cross_att_fa_pallas.4} parent=5 // pred_check
      %p786 = pneg %p785
    $region42: #{ms_cross_att_fa_pallas.4} parent=5 // pred_check_branch
      %788 = sbr.rel (%p786) target = $region44
    $region43: #{ms_cross_att_fa_pallas.4} parent=5 // pred_region
      %s789 = ssub.s32 %s9, 2
      // Predicated region
      $region45: #{ms_cross_att_fa_pallas.4} parent=43 // pred_check
        %p790 = pneg %p132
      $region46: #{ms_cross_att_fa_pallas.4} parent=43 // pred_check_branch
        %792 = sbr.rel (%p790) target = $region48
      $region47: #{ms_cross_att_fa_pallas.4} parent=43 // pred_region
        %s793 = smul.u32 3, %s21
        %p794 = scmp.lt.s32.totalorder %s20, 1
        %s795 = scalar_select %p794, %s20, 1
        %p796 = scmp.lt.s32.totalorder %s793, 2
        %s797 = scalar_select %p796, %s793, 2
        %s798 = smul.addr %s795, 15
        %s799 = sadd.s32 %s797, %s798
        %s800 = smul.addr %s799, 8
        %s801 = scalar_lea.vmem %s3, %s800
      $region48: #{ms_cross_att_fa_pallas.4} parent=43 // pred_fallthru
        _
    $region44: #{ms_cross_att_fa_pallas.4} parent=5 // pred_fallthru
      _
  $region6: #{ms_cross_att_fa_pallas.4} parent=0 // loop_footer
    %s13 = sadd.s32 1, %s9
  $region7: #{ms_cross_att_fa_pallas.4} parent=0 // loop_footer_branch
    %8 = sbr.rel target = $region3
  $region8: #{ms_cross_att_fa_pallas.4} parent=0 // loop_exit
    _

// kernel: ms_cross_att_fa_pallas.5
$region0: #{ms_cross_att_fa_pallas.5}
  #allocation0 [shape = 'u32[]', space=smem, size = 0x4, offset = 0x4, fixed_abs, tag = 'smem constant byte address 0x4 - core index']
  #allocation1 [shape = 'u32[144,128]{1,0:T(1,128)}', space=vmem, size = 0x12000, scoped, tag = 'internal scratch']
  #allocation2 [shape = 'f32[16,16]{1,0:T(8,128)}', space=vmem, size = 0x2000, scoped, tag = 'scratch operand']
  %s0 = inlined_call_operand.vmem [shape: f32[2,16,100], index: 0, kind: input, shape index: {}]
  %s1 = inlined_call_operand.vmem [shape: f32[2,100,16], index: 1, kind: input, shape index: {}]
  %s2 = inlined_call_operand.vmem [shape: f32[2,16,800], index: 2, kind: input, shape index: {}]
  %s3 = inlined_call_operand.vmem [shape: f32[2,16,800], index: 3, kind: output, shape index: {}]
  %s4 = sld [smem:[#allocation0]]
  $region49: #{ms_cross_att_fa_pallas.5} parent=0
    _
  %s6 = ssub.s32 1, %s4
  %s7 = scalar_select 0, %s6, %s4
  loop: start=0, step=1, limit=4
  $region2: #{ms_cross_att_fa_pallas.5} parent=0 // loop_pre_header
    _
  $region3: #{ms_cross_att_fa_pallas.5} parent=0 // loop_header
    %s9 = sphi 0, %s13
    %p10 = scmp.ge.s32.totalorder %s9, 4
    %s16 = sphi 0, %s28
    %s17 = sphi 0, %s24
    %s18 = sphi 0, %s16
    %s19 = sphi 0, %s17
    %s20 = sphi 0, %s18
    %s21 = sphi 0, %s19
    %s31 = sphi 0, %s33
    %s34 = sphi 0, %s31
    %s35 = sphi 0, %s34
    %s51 = sphi 0, %s35
    %s57 = sphi 0, %s59
    %s60 = sphi 0, %s57
    %s61 = sphi 0, %s60
    %s77 = sphi 0, %s61
    %s85 = sphi 0, %s87
    %s88 = sphi 0, %s85
    %s89 = sphi 0, %s88
    %s105 = sphi 0, %s89
    %s113 = sphi 0, %s115
    %s116 = sphi 0, %s113
    %s117 = sphi 0, %s116
    %s133 = sphi 0, %s117
  $region4: #{ms_cross_att_fa_pallas.5} parent=0 // loop_header_branch
    %12 = sbr.rel (%p10) target = $region8
  $region5: #{ms_cross_att_fa_pallas.5} parent=0 // loop_body
    %s14 = ssub.s32 %s9, 1
    %s15 = ssub.s32 %s9, 2
    %s22 = sadd.s32 1, %s17
    %p23 = scmp.ge.s32.totalorder %s22, 1
    %s24 = scalar_select %p23, 0, %s22
    %s25 = sadd.s32 1, %s16
    %s26 = scalar_select %p23, %s25, %s16
    %p27 = scmp.ge.s32.totalorder %s26, 2
    %s28 = scalar_select %p27, 0, %s26
    %s29 = ssub.s32 %s16, %s28
    %p30 = scmp.eq.s32.totalorder %s29, 0
    %s32 = sadd.s32 %s31, 1
    %s33 = scalar_select %p30, %s31, %s32
    %p36 = pneg %p30
    %p37 = scmp.eq.s32.totalorder %s9, 1
    %p38 = por %p36, %p37
    %p39 = scmp.ne.s32.totalorder %s31, %s34
    %p40 = scmp.eq.s32.totalorder %s9, 0
    %p41 = por %p39, %p40
    %p42 = scmp.ne.s32.totalorder %s31, %s34
    %p43 = scmp.eq.s32.totalorder %s14, 1
    %p44 = por %p42, %p43
    %p45 = scmp.ne.s32.totalorder %s34, %s35
    %p46 = scmp.eq.s32.totalorder %s14, 0
    %p47 = por %p45, %p46
    %p48 = scmp.ne.s32.totalorder %s34, %s35
    %p49 = scmp.eq.s32.totalorder %s15, 1
    %p50 = por %p48, %p49
    %p52 = scmp.ne.s32.totalorder %s35, %s51
    %p53 = scmp.eq.s32.totalorder %s15, 0
    %p54 = por %p52, %p53
    %s55 = ssub.s32 %s16, %s28
    %p56 = scmp.eq.s32.totalorder %s55, 0
    %s58 = sadd.s32 %s57, 1
    %s59 = scalar_select %p56, %s57, %s58
    %p62 = pneg %p56
    %p63 = scmp.eq.s32.totalorder %s9, 1
    %p64 = por %p62, %p63
    %p65 = scmp.ne.s32.totalorder %s57, %s60
    %p66 = scmp.eq.s32.totalorder %s9, 0
    %p67 = por %p65, %p66
    %p68 = scmp.ne.s32.totalorder %s57, %s60
    %p69 = scmp.eq.s32.totalorder %s14, 1
    %p70 = por %p68, %p69
    %p71 = scmp.ne.s32.totalorder %s60, %s61
    %p72 = scmp.eq.s32.totalorder %s14, 0
    %p73 = por %p71, %p72
    %p74 = scmp.ne.s32.totalorder %s60, %s61
    %p75 = scmp.eq.s32.totalorder %s15, 1
    %p76 = por %p74, %p75
    %p78 = scmp.ne.s32.totalorder %s61, %s77
    %p79 = scmp.eq.s32.totalorder %s15, 0
    %p80 = por %p78, %p79
    %s81 = ssub.s32 %s16, %s28
    %s82 = ssub.s32 %s17, %s24
    %s83 = sor.u32 %s81, %s82
    %p84 = scmp.eq.s32.totalorder %s83, 0
    %s86 = sadd.s32 %s85, 1
    %s87 = scalar_select %p84, %s85, %s86
    %p90 = pneg %p84
    %p91 = scmp.eq.s32.totalorder %s9, 1
    %p92 = por %p90, %p91
    %p93 = scmp.ne.s32.totalorder %s85, %s88
    %p94 = scmp.eq.s32.totalorder %s9, 0
    %p95 = por %p93, %p94
    %p96 = scmp.ne.s32.totalorder %s85, %s88
    %p97 = scmp.eq.s32.totalorder %s14, 1
    %p98 = por %p96, %p97
    %p99 = scmp.ne.s32.totalorder %s88, %s89
    %p100 = scmp.eq.s32.totalorder %s14, 0
    %p101 = por %p99, %p100
    %p102 = scmp.ne.s32.totalorder %s88, %s89
    %p103 = scmp.eq.s32.totalorder %s15, 1
    %p104 = por %p102, %p103
    %p106 = scmp.ne.s32.totalorder %s89, %s105
    %p107 = scmp.eq.s32.totalorder %s15, 0
    %p108 = por %p106, %p107
    %s109 = ssub.s32 %s16, %s28
    %s110 = ssub.s32 %s17, %s24
    %s111 = sor.u32 %s109, %s110
    %p112 = scmp.eq.s32.totalorder %s111, 0
    %s114 = sadd.s32 %s113, 1
    %s115 = scalar_select %p112, %s113, %s114
    %p118 = pneg %p112
    %p119 = scmp.eq.s32.totalorder %s9, 1
    %p120 = por %p118, %p119
    %p121 = scmp.ne.s32.totalorder %s113, %s116
    %p122 = scmp.eq.s32.totalorder %s9, 0
    %p123 = por %p121, %p122
    %p124 = scmp.ne.s32.totalorder %s113, %s116
    %p125 = scmp.eq.s32.totalorder %s14, 1
    %p126 = por %p124, %p125
    %p127 = scmp.ne.s32.totalorder %s116, %s117
    %p128 = scmp.eq.s32.totalorder %s14, 0
    %p129 = por %p127, %p128
    %p130 = scmp.ne.s32.totalorder %s116, %s117
    %p131 = scmp.eq.s32.totalorder %s15, 1
    %p132 = por %p130, %p131
    %p134 = scmp.ne.s32.totalorder %s117, %s133
    %p135 = scmp.eq.s32.totalorder %s15, 0
    %p136 = por %p134, %p135
    %p137 = scmp.le.s32.totalorder 1, %s9
    %p138 = scmp.lt.s32.totalorder %s9, 3
    %p139 = pnand %p137, %p138
    %p140 = pneg %p139
    // Predicated region
    $region9: #{ms_cross_att_fa_pallas.5} parent=5 // pred_check
      _
    $region10: #{ms_cross_att_fa_pallas.5} parent=5 // pred_check_branch
      %142 = sbr.rel (%p139) target = $region12
    $region11: #{ms_cross_att_fa_pallas.5} parent=5 // pred_region
      %s143 = ssub.s32 %s9, 1
    $region12: #{ms_cross_att_fa_pallas.5} parent=5 // pred_fallthru
      _
    %p144 = scmp.lt.s32.totalorder %s9, 2
    // Predicated region
    $region13: #{ms_cross_att_fa_pallas.5} parent=5 // pred_check
      %p145 = pneg %p144
    $region14: #{ms_cross_att_fa_pallas.5} parent=5 // pred_check_branch
      %147 = sbr.rel (%p145) target = $region16
    $region15: #{ms_cross_att_fa_pallas.5} parent=5 // pred_region
      // Predicated region
      $region17: #{ms_cross_att_fa_pallas.5} parent=15 // pred_check
        %p148 = pneg %p41
      $region18: #{ms_cross_att_fa_pallas.5} parent=15 // pred_check_branch
        %150 = sbr.rel (%p148) target = $region20
      $region19: #{ms_cross_att_fa_pallas.5} parent=15 // pred_region
        %p151 = scmp.lt.s32.totalorder %s16, 1
        %s152 = scalar_select %p151, %s16, 1
        %s153 = smul.addr %s152, 2
        %s154 = smul.addr %s153, 8
        %s155 = scalar_lea.vmem %s0, %s154
      $region20: #{ms_cross_att_fa_pallas.5} parent=15 // pred_fallthru
        _
      // Predicated region
      $region21: #{ms_cross_att_fa_pallas.5} parent=15 // pred_check
        %p156 = pneg %p67
      $region22: #{ms_cross_att_fa_pallas.5} parent=15 // pred_check_branch
        %158 = sbr.rel (%p156) target = $region24
      $region23: #{ms_cross_att_fa_pallas.5} parent=15 // pred_region
        %p159 = scmp.lt.s32.totalorder %s16, 1
        %s160 = scalar_select %p159, %s16, 1
        %s161 = smul.addr %s160, 13
        %s162 = smul.addr %s161, 8
        %s163 = scalar_lea.vmem %s1, %s162
      $region24: #{ms_cross_att_fa_pallas.5} parent=15 // pred_fallthru
        _
      // Predicated region
      $region25: #{ms_cross_att_fa_pallas.5} parent=15 // pred_check
        %p164 = pneg %p95
      $region26: #{ms_cross_att_fa_pallas.5} parent=15 // pred_check_branch
        %166 = sbr.rel (%p164) target = $region28
      $region27: #{ms_cross_att_fa_pallas.5} parent=15 // pred_region
        %s167 = smul.u32 7, %s17
        %p168 = scmp.lt.s32.totalorder %s16, 1
        %s169 = scalar_select %p168, %s16, 1
        %p170 = scmp.lt.s32.totalorder %s167, 6
        %s171 = scalar_select %p170, %s167, 6
        %s172 = smul.addr %s169, 14
        %s173 = sadd.s32 %s171, %s172
        %s174 = smul.addr %s173, 8
        %s175 = scalar_lea.vmem %s2, %s174
        %s176 = smul.u32 7, %s17
      $region28: #{ms_cross_att_fa_pallas.5} parent=15 // pred_fallthru
        _
    $region16: #{ms_cross_att_fa_pallas.5} parent=5 // pred_fallthru
      _
    %p177 = scmp.le.s32.totalorder 1, %s9
    %p178 = scmp.lt.s32.totalorder %s9, 3
    %p179 = pnand %p177, %p178
    %p180 = pneg %p179
    // Predicated region
    $region29: #{ms_cross_att_fa_pallas.5} parent=5 // pred_check
      _
    $region30: #{ms_cross_att_fa_pallas.5} parent=5 // pred_check_branch
      %182 = sbr.rel (%p179) target = $region32
    $region31: #{ms_cross_att_fa_pallas.5} parent=5 // pred_region
      %s183 = ssub.s32 %s9, 1
      %p184 = scmp.lt.s32.totalorder %s18, 1
      %s185 = scalar_select %p184, %s18, 1
      %s186 = smul.addr %s185, 2
      %s187 = smul.addr %s186, 8
      %s188 = scalar_lea.vmem %s0, %s187
      %p189 = pneg %p47
      %p190 = pneg %p44
      %p191 = scmp.lt.s32.totalorder %s18, 1
      %s192 = scalar_select %p191, %s18, 1
      %s193 = smul.addr %s192, 13
      %s194 = smul.addr %s193, 8
      %s195 = scalar_lea.vmem %s1, %s194
      %p196 = pneg %p73
      %p197 = pneg %p70
      %s198 = smul.u32 7, %s19
      %p199 = scmp.lt.s32.totalorder %s18, 1
      %s200 = scalar_select %p199, %s18, 1
      %p201 = scmp.lt.s32.totalorder %s198, 6
      %s202 = scalar_select %p201, %s198, 6
      %s203 = smul.addr %s200, 14
      %s204 = sadd.s32 %s202, %s203
      %s205 = smul.addr %s204, 8
      %s206 = scalar_lea.vmem %s2, %s205
      %p207 = pneg %p101
      %p208 = pneg %p98
      %p209 = pneg %p129
      %p210 = pneg %p126
      %s211 = smul.u32 7, %s19
      %p212 = scmp.lt.s32.totalorder %s18, 1
      %s213 = scalar_select %p212, %s18, 1
      %p214 = scmp.lt.s32.totalorder %s211, 6
      %s215 = scalar_select %p214, %s211, 6
      %s216 = smul.addr %s213, 14
      %s217 = sadd.s32 %s215, %s216
      %s218 = smul.addr %s217, 8
      %s219 = scalar_lea.vmem %s3, %s218
      %p220 = scmp.lt.s32.totalorder %s18, 1
      %s221 = scalar_select %p220, %s18, 1
      %s222 = smul.addr %s221, 2
      %s223 = smul.addr %s222, 8
      %s224 = scalar_lea.vmem %s0, %s223
      %p225 = scmp.lt.s32.totalorder %s18, 1
      %s226 = scalar_select %p225, %s18, 1
      %s227 = smul.addr %s226, 13
      %s228 = smul.addr %s227, 8
      %s229 = scalar_lea.vmem %s1, %s228
      %s230 = smul.u32 7, %s19
      %p231 = scmp.lt.s32.totalorder %s18, 1
      %s232 = scalar_select %p231, %s18, 1
      %p233 = scmp.lt.s32.totalorder %s230, 6
      %s234 = scalar_select %p233, %s230, 6
      %s235 = smul.addr %s232, 14
      %s236 = sadd.s32 %s234, %s235
      %s237 = smul.addr %s236, 8
      %s238 = scalar_lea.vmem %s2, %s237
      %s239 = smul.u32 7, %s19
      %s240 = smul.u32 7, %s19
      %p241 = scmp.lt.s32.totalorder %s18, 1
      %s242 = scalar_select %p241, %s18, 1
      %p243 = scmp.lt.s32.totalorder %s240, 6
      %s244 = scalar_select %p243, %s240, 6
      %s245 = smul.addr %s242, 14
      %s246 = sadd.s32 %s244, %s245
      %s247 = smul.addr %s246, 8
      %s248 = scalar_lea.vmem %s3, %s247
      %s249 = smul.u32 7, %s19
      %p250 = scmp.eq.s32.totalorder %s19, 0
      // Predicated region
      $region33: #{ms_cross_att_fa_pallas.5} parent=31 // pred_check
        %p251 = pneg %p250
      $region34: #{ms_cross_att_fa_pallas.5} parent=31 // pred_check_branch
        %253 = sbr.rel (%p251) target = $region36
      $region35: #{ms_cross_att_fa_pallas.5} parent=31 // pred_region
        %v254 = vld [vmem:[%s224] sm:$0xff]
        %v255 = vld [vmem:[%s224 + $0x8] sm:$0xff]
        %v256 = vld [vmem:[%s229] sm:$0xff]
        %v257 = vld [vmem:[%s229 + $0x8] sm:$0xff]
        %v258 = vld [vmem:[%s229 + $0x10] sm:$0xff]
        %v259 = vld [vmem:[%s229 + $0x18] sm:$0xff]
        %v260 = vld [vmem:[%s229 + $0x20] sm:$0xff]
        %v261 = vld [vmem:[%s229 + $0x28] sm:$0xff]
        %v262 = vld [vmem:[%s229 + $0x30] sm:$0xff]
        %v263 = vld [vmem:[%s229 + $0x38] sm:$0xff]
        %v264 = vld [vmem:[%s229 + $0x40] sm:$0xff]
        %v265 = vld [vmem:[%s229 + $0x48] sm:$0xff]
        %v266 = vld [vmem:[%s229 + $0x50] sm:$0xff]
        %v267 = vld [vmem:[%s229 + $0x58] sm:$0xff]
        %v268 = vld [vmem:[%s229 + $0x60] sm:$0xf]
        %vm269 = vcmask 818176
        %v271 = vsel %vm269, %v254, 0
        %v274 = vsel %vm269, %v255, 0
        %vm276 = vcmask 1043456
        %v278 = vsel %vm276, %v268, 0
        %280 = vmatprep.subr.mxu0 0.0
        %281 = vmatpush1.msra.mxu0 0.0
        %282 = vmatprep.subr.mxu0 0.0
        %283 = vmatpush1.msra.mxu0 0.0
        %284 = vmatprep.subr.mxu0 0.0
        %285 = vmatpush1.msra.mxu0 0.0
        %286 = vmatprep.subr.mxu0 0.0
        %287 = vmatpush1.msra.mxu0 %v278
        %288 = vmatprep.subr.mxu0 0.0
        %289 = vmatpush1.msra.mxu0 %v267
        %290 = vmatprep.subr.mxu0 0.0
        %291 = vmatpush1.msra.mxu0 %v266
        %292 = vmatprep.subr.mxu0 0.0
        %293 = vmatpush1.msra.mxu0 %v265
        %294 = vmatprep.subr.mxu0 0.0
        %295 = vmatpush1.msra.mxu0 %v264
        %296 = vmatprep.subr.mxu0 0.0
        %297 = vmatpush1.msra.mxu0 %v263
        %298 = vmatprep.subr.mxu0 0.0
        %299 = vmatpush1.msra.mxu0 %v262
        %300 = vmatprep.subr.mxu0 0.0
        %301 = vmatpush1.msra.mxu0 %v261
        %302 = vmatprep.subr.mxu0 0.0
        %303 = vmatpush1.msra.mxu0 %v260
        %304 = vmatprep.subr.mxu0 0.0
        %305 = vmatpush1.msra.mxu0 %v259
        %306 = vmatprep.subr.mxu0 0.0
        %307 = vmatpush1.msra.mxu0 %v258
        %308 = vmatprep.subr.mxu0 0.0
        %309 = vmatpush1.msra.mxu0 %v257
        %310 = vmatprep.subr.mxu0 0.0
        %311 = vmatpush1.msra.mxu0 %v256
        %312 = vmatprep.subr.mxu0 0.0
        %313 = vmatpush2.msra.mxu0 0.0
        %314 = vmatprep.subr.mxu0 0.0
        %315 = vmatpush2.msra.mxu0 0.0
        %316 = vmatprep.subr.mxu0 0.0
        %317 = vmatpush2.msra.mxu0 0.0
        %318 = vmatprep.subr.mxu0 0.0
        %319 = vmatpush2.msra.mxu0 0.0
        %320 = vmatprep.subr.mxu0 0.0
        %321 = vmatpush2.msra.mxu0 0.0
        %322 = vmatprep.subr.mxu0 0.0
        %323 = vmatpush2.msra.mxu0 0.0
        %324 = vmatprep.subr.mxu0 0.0
        %325 = vmatpush2.msra.mxu0 0.0
        %326 = vmatprep.subr.mxu0 0.0
        %327 = vmatpush2.msra.mxu0 0.0
        %328 = vmatprep.subr.mxu0 0.0
        %329 = vmatpush2.msra.mxu0 0.0
        %330 = vmatprep.subr.mxu0 0.0
        %331 = vmatpush2.msra.mxu0 0.0
        %332 = vmatprep.subr.mxu0 0.0
        %333 = vmatpush2.msra.mxu0 0.0
        %334 = vmatprep.subr.mxu0 0.0
        %335 = vmatpush2.msra.mxu0 0.0
        %336 = vmatprep.subr.mxu0 0.0
        %337 = vmatpush2.msra.mxu0 0.0
        %338 = vmatprep.subr.mxu0 0.0
        %339 = vmatpush2.msra.mxu0 0.0
        %340 = vmatprep.subr.mxu0 0.0
        %341 = vmatpush2.msra.mxu0 0.0
        %342 = vmatprep.subr.mxu0 0.0
        %343 = vmatpush2.msra.mxu0 0.0
        %344 = vmatprep.mubr.f32.mxu0 0.0
        %345 = vmatmul.mubr.f32.gmra.mxu0 %v271
        %v346 = vpop.f32.mrf.mxu0
        %v347 = vadd.f32 0.0, %v346
        %v348 = vpop.f32.mrf.mxu0
        %349 = vmatprep.mubr.f32.mxu0 0.0
        %350 = vmatmul.mubr.f32.gmra.mxu0 %v274
        %v351 = vpop.f32.mrf.mxu0
        %v352 = vadd.f32 0.0, %v351
        %v353 = vpop.f32.mrf.mxu0
        %354 = vdwg.mxu0
        %v355 = vmul.f32 %v256, %v256
        %v356 = vmul.f32 %v257, %v257
        %v357 = vmul.f32 %v258, %v258
        %v358 = vmul.f32 %v259, %v259
        %v359 = vmul.f32 %v260, %v260
        %v360 = vmul.f32 %v261, %v261
        %v361 = vmul.f32 %v262, %v262
        %v362 = vmul.f32 %v263, %v263
        %v363 = vmul.f32 %v264, %v264
        %v364 = vmul.f32 %v265, %v265
        %v365 = vmul.f32 %v266, %v266
        %v366 = vmul.f32 %v267, %v267
        %v367 = vmul.f32 %v268, %v268
        %vm368 = vcmask 130048
        %v369 = vsel %vm368, %v355, 0.0
        %v370 = vsel %vm368, %v356, 0.0
        %v371 = vadd.f32 %v369, %v370
        %v372 = vsel %vm368, %v357, 0.0
        %v373 = vadd.f32 %v371, %v372
        %v374 = vsel %vm368, %v358, 0.0
        %v375 = vadd.f32 %v373, %v374
        %v376 = vsel %vm368, %v359, 0.0
        %v377 = vadd.f32 %v375, %v376
        %v378 = vsel %vm368, %v360, 0.0
        %v379 = vadd.f32 %v377, %v378
        %v380 = vsel %vm368, %v361, 0.0
        %v381 = vadd.f32 %v379, %v380
        %v382 = vsel %vm368, %v362, 0.0
        %v383 = vadd.f32 %v381, %v382
        %v384 = vsel %vm368, %v363, 0.0
        %v385 = vadd.f32 %v383, %v384
        %v386 = vsel %vm368, %v364, 0.0
        %v387 = vadd.f32 %v385, %v386
        %v388 = vsel %vm368, %v365, 0.0
        %v389 = vadd.f32 %v387, %v388
        %v390 = vsel %vm368, %v366, 0.0
        %v391 = vadd.f32 %v389, %v390
        %vm392 = vcmask 125952
        %v393 = vsel %vm392, %v367, 0.0
        %v394 = vadd.f32 %v391, %v393
        %v395 = vrot.slane %v394, 4
        %v396 = vadd.f32 %v394, %v395
        %v397 = vrot.slane %v396, 2
        %v398 = vadd.f32 %v396, %v397
        %v399 = vrot.slane %v398, 1
        %v400 = vadd.f32 %v398, %v399
        %v401 = vmax.f32 %v400, 1e-24
        %v402 = vrsqrt.pop %v401
        %v403 = vmul.f32 %v347, %v402
        %v404 = vmul.f32 %v352, %v402
        %v405 = vlaneseq
        %v406 = vand.u32 %v405, 127
        %v407 = vsel %vm368, %v403, -inf
        %408 = vmax.xlane.f32.xlu0 %v407
        %v409 = vpop.xlane.xlu0 %408
        %v410 = vsel %vm368, %v404, -inf
        %411 = vmax.xlane.f32.xlu0 %v410
        %v412 = vpop.xlane.xlu0 %411
        %vm413 = vcmp.ge.f32.partialorder %v403, %v409
        %vm414 = vcmp.ge.f32.partialorder %v404, %v412
        %v415 = vsel %vm413, %v406, 16
        %v416 = vsel %vm414, %v406, 16
        %v417 = vsel %vm368, %v415, 2147483647
        %v418 = vand.u32 %v417, 65535
        %v419 = vshra.s32 %v417, 16
        %v420 = vcvt.s32.f32 %v418
        %v421 = vcvt.s32.f32 %v419
        %422 = vmin.xlane.f32.xlu0 %v421
        %v423 = vpop.xlane.xlu0 %422
        %vm424 = vcmp.eq.f32.partialorder %v421, %v423
        %v425 = vsel %vm424, %v420, inf
        %426 = vmin.xlane.f32.xlu0 %v425
        %v427 = vpop.xlane.xlu0 %426
        %v428 = vcvt.f32.s32 %v427
        %v429 = vcvt.f32.s32 %v423
        %v430 = vshll.u32 %v429, 16
        %v431 = vadd.s32 %v430, %v428
        %v432 = vsel %vm368, %v416, 2147483647
        %v433 = vand.u32 %v432, 65535
        %v434 = vshra.s32 %v432, 16
        %v435 = vcvt.s32.f32 %v433
        %v436 = vcvt.s32.f32 %v434
        %437 = vmin.xlane.f32.xlu0 %v436
        %v438 = vpop.xlane.xlu0 %437
        %vm439 = vcmp.eq.f32.partialorder %v436, %v438
        %v440 = vsel %vm439, %v435, inf
        %441 = vmin.xlane.f32.xlu0 %v440
        %v442 = vpop.xlane.xlu0 %441
        %v443 = vcvt.f32.s32 %v442
        %v444 = vcvt.f32.s32 %v438
        %v445 = vshll.u32 %v444, 16
        %v446 = vadd.s32 %v445, %v443
        %vm447 = vcmp.eq.s32.totalorder %v406, %v431
        %vm448 = vcmp.eq.s32.totalorder %v406, %v446
        %v449 = vsel %vm447, 1, 0
        %v450 = vsel %vm448, 1, 0
        %v451 = vcvt.s32.f32 %v449
        %v452 = vcvt.s32.f32 %v450
        %453 = vst.msk [vmem:[#allocation2] sm:$0xff] %vm368, %v451
        %454 = vst.msk [vmem:[#allocation2 + $0x8] sm:$0xff] %vm368, %v452
      $region36: #{ms_cross_att_fa_pallas.5} parent=31 // pred_fallthru
        _
      %v455 = vld [vmem:[#allocation2] sm:$0xff]
      %v456 = vld [vmem:[#allocation2 + $0x8] sm:$0xff]
      %v457 = vld [vmem:[%s238] sm:$0xff]
      %v458 = vld [vmem:[%s238 + $0x8] sm:$0xff]
      %v459 = vld [vmem:[%s238 + $0x10] sm:$0xff]
      %v460 = vld [vmem:[%s238 + $0x18] sm:$0xff]
      %v461 = vld [vmem:[%s238 + $0x20] sm:$0xff]
      %v462 = vld [vmem:[%s238 + $0x28] sm:$0xff]
      %v463 = vld [vmem:[%s238 + $0x30] sm:$0xff]
      %v464 = vld [vmem:[%s238 + $0x38] sm:$0xff]
      %v465 = vld [vmem:[%s238 + $0x40] sm:$0xff]
      %v466 = vld [vmem:[%s238 + $0x48] sm:$0xff]
      %v467 = vld [vmem:[%s238 + $0x50] sm:$0xff]
      %v468 = vld [vmem:[%s238 + $0x58] sm:$0xff]
      %v469 = vld [vmem:[%s238 + $0x60] sm:$0xff]
      %v470 = vld [vmem:[%s238 + $0x68] sm:$0xff]
      %vm471 = vcmask 130048
      %v473 = vsel %vm471, %v455, 0
      %v476 = vsel %vm471, %v456, 0
      %478 = vmatprep.subr.mxu0 0.0
      %479 = vmatpush1.msra.mxu0 0.0
      %480 = vmatprep.subr.mxu0 0.0
      %481 = vmatpush1.msra.mxu0 0.0
      %482 = vmatprep.subr.mxu0 0.0
      %483 = vmatpush1.msra.mxu0 0.0
      %484 = vmatprep.subr.mxu0 0.0
      %485 = vmatpush1.msra.mxu0 0.0
      %486 = vmatprep.subr.mxu0 0.0
      %487 = vmatpush1.msra.mxu0 0.0
      %488 = vmatprep.subr.mxu0 0.0
      %489 = vmatpush1.msra.mxu0 0.0
      %490 = vmatprep.subr.mxu0 0.0
      %491 = vmatpush1.msra.mxu0 0.0
      %492 = vmatprep.subr.mxu0 0.0
      %493 = vmatpush1.msra.mxu0 0.0
      %494 = vmatprep.subr.mxu0 0.0
      %495 = vmatpush1.msra.mxu0 0.0
      %496 = vmatprep.subr.mxu0 0.0
      %497 = vmatpush1.msra.mxu0 0.0
      %498 = vmatprep.subr.mxu0 0.0
      %499 = vmatpush1.msra.mxu0 0.0
      %500 = vmatprep.subr.mxu0 0.0
      %501 = vmatpush1.msra.mxu0 0.0
      %502 = vmatprep.subr.mxu0 0.0
      %503 = vmatpush1.msra.mxu0 0.0
      %504 = vmatprep.subr.mxu0 0.0
      %505 = vmatpush1.msra.mxu0 0.0
      %506 = vmatprep.subr.mxu0 %v465
      %507 = vmatpush1.msra.mxu0 %v464
      %508 = vmatprep.subr.mxu0 %v458
      %509 = vmatpush1.msra.mxu0 %v457
      %510 = vmatprep.subr.mxu0 0.0
      %511 = vmatpush2.msra.mxu0 0.0
      %512 = vmatprep.subr.mxu0 0.0
      %513 = vmatpush2.msra.mxu0 0.0
      %514 = vmatprep.subr.mxu0 0.0
      %515 = vmatpush2.msra.mxu0 0.0
      %516 = vmatprep.subr.mxu0 0.0
      %517 = vmatpush2.msra.mxu0 0.0
      %518 = vmatprep.subr.mxu0 0.0
      %519 = vmatpush2.msra.mxu0 0.0
      %520 = vmatprep.subr.mxu0 0.0
      %521 = vmatpush2.msra.mxu0 0.0
      %522 = vmatprep.subr.mxu0 0.0
      %523 = vmatpush2.msra.mxu0 0.0
      %524 = vmatprep.subr.mxu0 0.0
      %525 = vmatpush2.msra.mxu0 0.0
      %526 = vmatprep.subr.mxu0 0.0
      %527 = vmatpush2.msra.mxu0 0.0
      %528 = vmatprep.subr.mxu0 0.0
      %529 = vmatpush2.msra.mxu0 0.0
      %530 = vmatprep.subr.mxu0 0.0
      %531 = vmatpush2.msra.mxu0 0.0
      %532 = vmatprep.subr.mxu0 0.0
      %533 = vmatpush2.msra.mxu0 0.0
      %534 = vmatprep.subr.mxu0 0.0
      %535 = vmatpush2.msra.mxu0 0.0
      %536 = vmatprep.subr.mxu0 0.0
      %537 = vmatpush2.msra.mxu0 0.0
      %538 = vmatprep.subr.mxu0 0.0
      %539 = vmatpush2.msra.mxu0 0.0
      %540 = vmatprep.subr.mxu0 0.0
      %541 = vmatpush2.msra.mxu0 0.0
      %542 = vmatprep.mubr.f32.mxu0 0.0
      %543 = vmatmul.mubr.f32.gmra.mxu0 %v473
      %v544 = vpop.f32.mrf.mxu0
      %v545 = vadd.f32 0.0, %v544
      %v546 = vpop.f32.mrf.mxu0
      %v547 = vadd.f32 0.0, %v546
      %548 = vmatprep.mubr.f32.mxu0 0.0
      %549 = vmatmul.mubr.f32.gmra.mxu0 %v476
      %v550 = vpop.f32.mrf.mxu0
      %v551 = vadd.f32 0.0, %v550
      %v552 = vpop.f32.mrf.mxu0
      %v553 = vadd.f32 0.0, %v552
      %554 = vdwg.mxu0
      %555 = vmatprep.subr.mxu0 0.0
      %556 = vmatpush1.msra.mxu0 0.0
      %557 = vmatprep.subr.mxu0 0.0
      %558 = vmatpush1.msra.mxu0 0.0
      %559 = vmatprep.subr.mxu0 0.0
      %560 = vmatpush1.msra.mxu0 0.0
      %561 = vmatprep.subr.mxu0 0.0
      %562 = vmatpush1.msra.mxu0 0.0
      %563 = vmatprep.subr.mxu0 0.0
      %564 = vmatpush1.msra.mxu0 0.0
      %565 = vmatprep.subr.mxu0 0.0
      %566 = vmatpush1.msra.mxu0 0.0
      %567 = vmatprep.subr.mxu0 0.0
      %568 = vmatpush1.msra.mxu0 0.0
      %569 = vmatprep.subr.mxu0 0.0
      %570 = vmatpush1.msra.mxu0 0.0
      %571 = vmatprep.subr.mxu0 0.0
      %572 = vmatpush1.msra.mxu0 0.0
      %573 = vmatprep.subr.mxu0 0.0
      %574 = vmatpush1.msra.mxu0 0.0
      %575 = vmatprep.subr.mxu0 0.0
      %576 = vmatpush1.msra.mxu0 0.0
      %577 = vmatprep.subr.mxu0 0.0
      %578 = vmatpush1.msra.mxu0 0.0
      %579 = vmatprep.subr.mxu0 0.0
      %580 = vmatpush1.msra.mxu0 0.0
      %581 = vmatprep.subr.mxu0 0.0
      %582 = vmatpush1.msra.mxu0 0.0
      %583 = vmatprep.subr.mxu0 %v467
      %584 = vmatpush1.msra.mxu0 %v466
      %585 = vmatprep.subr.mxu0 %v460
      %586 = vmatpush1.msra.mxu0 %v459
      %587 = vmatprep.subr.mxu0 0.0
      %588 = vmatpush2.msra.mxu0 0.0
      %589 = vmatprep.subr.mxu0 0.0
      %590 = vmatpush2.msra.mxu0 0.0
      %591 = vmatprep.subr.mxu0 0.0
      %592 = vmatpush2.msra.mxu0 0.0
      %593 = vmatprep.subr.mxu0 0.0
      %594 = vmatpush2.msra.mxu0 0.0
      %595 = vmatprep.subr.mxu0 0.0
      %596 = vmatpush2.msra.mxu0 0.0
      %597 = vmatprep.subr.mxu0 0.0
      %598 = vmatpush2.msra.mxu0 0.0
      %599 = vmatprep.subr.mxu0 0.0
      %600 = vmatpush2.msra.mxu0 0.0
      %601 = vmatprep.subr.mxu0 0.0
      %602 = vmatpush2.msra.mxu0 0.0
      %603 = vmatprep.subr.mxu0 0.0
      %604 = vmatpush2.msra.mxu0 0.0
      %605 = vmatprep.subr.mxu0 0.0
      %606 = vmatpush2.msra.mxu0 0.0
      %607 = vmatprep.subr.mxu0 0.0
      %608 = vmatpush2.msra.mxu0 0.0
      %609 = vmatprep.subr.mxu0 0.0
      %610 = vmatpush2.msra.mxu0 0.0
      %611 = vmatprep.subr.mxu0 0.0
      %612 = vmatpush2.msra.mxu0 0.0
      %613 = vmatprep.subr.mxu0 0.0
      %614 = vmatpush2.msra.mxu0 0.0
      %615 = vmatprep.subr.mxu0 0.0
      %616 = vmatpush2.msra.mxu0 0.0
      %617 = vmatprep.subr.mxu0 0.0
      %618 = vmatpush2.msra.mxu0 0.0
      %619 = vmatprep.mubr.f32.mxu0 0.0
      %620 = vmatmul.mubr.f32.gmra.mxu0 %v473
      %v621 = vpop.f32.mrf.mxu0
      %v622 = vadd.f32 0.0, %v621
      %v623 = vpop.f32.mrf.mxu0
      %v624 = vadd.f32 0.0, %v623
      %625 = vmatprep.mubr.f32.mxu0 0.0
      %626 = vmatmul.mubr.f32.gmra.mxu0 %v476
      %v627 = vpop.f32.mrf.mxu0
      %v628 = vadd.f32 0.0, %v627
      %v629 = vpop.f32.mrf.mxu0
      %v630 = vadd.f32 0.0, %v629
      %631 = vdwg.mxu0
      %632 = vmatprep.subr.mxu0 0.0
      %633 = vmatpush1.msra.mxu0 0.0
      %634 = vmatprep.subr.mxu0 0.0
      %635 = vmatpush1.msra.mxu0 0.0
      %636 = vmatprep.subr.mxu0 0.0
      %637 = vmatpush1.msra.mxu0 0.0
      %638 = vmatprep.subr.mxu0 0.0
      %639 = vmatpush1.msra.mxu0 0.0
      %640 = vmatprep.subr.mxu0 0.0
      %641 = vmatpush1.msra.mxu0 0.0
      %642 = vmatprep.subr.mxu0 0.0
      %643 = vmatpush1.msra.mxu0 0.0
      %644 = vmatprep.subr.mxu0 0.0
      %645 = vmatpush1.msra.mxu0 0.0
      %646 = vmatprep.subr.mxu0 0.0
      %647 = vmatpush1.msra.mxu0 0.0
      %648 = vmatprep.subr.mxu0 0.0
      %649 = vmatpush1.msra.mxu0 0.0
      %650 = vmatprep.subr.mxu0 0.0
      %651 = vmatpush1.msra.mxu0 0.0
      %652 = vmatprep.subr.mxu0 0.0
      %653 = vmatpush1.msra.mxu0 0.0
      %654 = vmatprep.subr.mxu0 0.0
      %655 = vmatpush1.msra.mxu0 0.0
      %656 = vmatprep.subr.mxu0 0.0
      %657 = vmatpush1.msra.mxu0 0.0
      %658 = vmatprep.subr.mxu0 0.0
      %659 = vmatpush1.msra.mxu0 0.0
      %660 = vmatprep.subr.mxu0 %v469
      %661 = vmatpush1.msra.mxu0 %v468
      %662 = vmatprep.subr.mxu0 %v462
      %663 = vmatpush1.msra.mxu0 %v461
      %664 = vmatprep.subr.mxu0 0.0
      %665 = vmatpush2.msra.mxu0 0.0
      %666 = vmatprep.subr.mxu0 0.0
      %667 = vmatpush2.msra.mxu0 0.0
      %668 = vmatprep.subr.mxu0 0.0
      %669 = vmatpush2.msra.mxu0 0.0
      %670 = vmatprep.subr.mxu0 0.0
      %671 = vmatpush2.msra.mxu0 0.0
      %672 = vmatprep.subr.mxu0 0.0
      %673 = vmatpush2.msra.mxu0 0.0
      %674 = vmatprep.subr.mxu0 0.0
      %675 = vmatpush2.msra.mxu0 0.0
      %676 = vmatprep.subr.mxu0 0.0
      %677 = vmatpush2.msra.mxu0 0.0
      %678 = vmatprep.subr.mxu0 0.0
      %679 = vmatpush2.msra.mxu0 0.0
      %680 = vmatprep.subr.mxu0 0.0
      %681 = vmatpush2.msra.mxu0 0.0
      %682 = vmatprep.subr.mxu0 0.0
      %683 = vmatpush2.msra.mxu0 0.0
      %684 = vmatprep.subr.mxu0 0.0
      %685 = vmatpush2.msra.mxu0 0.0
      %686 = vmatprep.subr.mxu0 0.0
      %687 = vmatpush2.msra.mxu0 0.0
      %688 = vmatprep.subr.mxu0 0.0
      %689 = vmatpush2.msra.mxu0 0.0
      %690 = vmatprep.subr.mxu0 0.0
      %691 = vmatpush2.msra.mxu0 0.0
      %692 = vmatprep.subr.mxu0 0.0
      %693 = vmatpush2.msra.mxu0 0.0
      %694 = vmatprep.subr.mxu0 0.0
      %695 = vmatpush2.msra.mxu0 0.0
      %696 = vmatprep.mubr.f32.mxu0 0.0
      %697 = vmatmul.mubr.f32.gmra.mxu0 %v473
      %v698 = vpop.f32.mrf.mxu0
      %v699 = vadd.f32 0.0, %v698
      %v700 = vpop.f32.mrf.mxu0
      %v701 = vadd.f32 0.0, %v700
      %702 = vmatprep.mubr.f32.mxu0 0.0
      %703 = vmatmul.mubr.f32.gmra.mxu0 %v476
      %v704 = vpop.f32.mrf.mxu0
      %v705 = vadd.f32 0.0, %v704
      %v706 = vpop.f32.mrf.mxu0
      %v707 = vadd.f32 0.0, %v706
      %708 = vdwg.mxu0
      %709 = vmatprep.subr.mxu0 0.0
      %710 = vmatpush1.msra.mxu0 0.0
      %711 = vmatprep.subr.mxu0 0.0
      %712 = vmatpush1.msra.mxu0 0.0
      %713 = vmatprep.subr.mxu0 0.0
      %714 = vmatpush1.msra.mxu0 0.0
      %715 = vmatprep.subr.mxu0 0.0
      %716 = vmatpush1.msra.mxu0 0.0
      %717 = vmatprep.subr.mxu0 0.0
      %718 = vmatpush1.msra.mxu0 0.0
      %719 = vmatprep.subr.mxu0 0.0
      %720 = vmatpush1.msra.mxu0 0.0
      %721 = vmatprep.subr.mxu0 0.0
      %722 = vmatpush1.msra.mxu0 0.0
      %723 = vmatprep.subr.mxu0 0.0
      %724 = vmatpush1.msra.mxu0 0.0
      %725 = vmatprep.subr.mxu0 0.0
      %726 = vmatpush1.msra.mxu0 0.0
      %727 = vmatprep.subr.mxu0 0.0
      %728 = vmatpush1.msra.mxu0 0.0
      %729 = vmatprep.subr.mxu0 0.0
      %730 = vmatpush1.msra.mxu0 0.0
      %731 = vmatprep.subr.mxu0 0.0
      %732 = vmatpush1.msra.mxu0 0.0
      %733 = vmatprep.subr.mxu0 0.0
      %734 = vmatpush1.msra.mxu0 0.0
      %735 = vmatprep.subr.mxu0 0.0
      %736 = vmatpush1.msra.mxu0 0.0
      %737 = vmatprep.subr.mxu0 0.0
      %738 = vmatpush1.msra.mxu0 %v470
      %739 = vmatprep.subr.mxu0 0.0
      %740 = vmatpush1.msra.mxu0 %v463
      %741 = vmatprep.subr.mxu0 0.0
      %742 = vmatpush2.msra.mxu0 0.0
      %743 = vmatprep.subr.mxu0 0.0
      %744 = vmatpush2.msra.mxu0 0.0
      %745 = vmatprep.subr.mxu0 0.0
      %746 = vmatpush2.msra.mxu0 0.0
      %747 = vmatprep.subr.mxu0 0.0
      %748 = vmatpush2.msra.mxu0 0.0
      %749 = vmatprep.subr.mxu0 0.0
      %750 = vmatpush2.msra.mxu0 0.0
      %751 = vmatprep.subr.mxu0 0.0
      %752 = vmatpush2.msra.mxu0 0.0
      %753 = vmatprep.subr.mxu0 0.0
      %754 = vmatpush2.msra.mxu0 0.0
      %755 = vmatprep.subr.mxu0 0.0
      %756 = vmatpush2.msra.mxu0 0.0
      %757 = vmatprep.subr.mxu0 0.0
      %758 = vmatpush2.msra.mxu0 0.0
      %759 = vmatprep.subr.mxu0 0.0
      %760 = vmatpush2.msra.mxu0 0.0
      %761 = vmatprep.subr.mxu0 0.0
      %762 = vmatpush2.msra.mxu0 0.0
      %763 = vmatprep.subr.mxu0 0.0
      %764 = vmatpush2.msra.mxu0 0.0
      %765 = vmatprep.subr.mxu0 0.0
      %766 = vmatpush2.msra.mxu0 0.0
      %767 = vmatprep.subr.mxu0 0.0
      %768 = vmatpush2.msra.mxu0 0.0
      %769 = vmatprep.subr.mxu0 0.0
      %770 = vmatpush2.msra.mxu0 0.0
      %771 = vmatprep.subr.mxu0 0.0
      %772 = vmatpush2.msra.mxu0 0.0
      %773 = vmatprep.mubr.f32.mxu0 0.0
      %774 = vmatmul.mubr.f32.gmra.mxu0 %v473
      %v775 = vpop.f32.mrf.mxu0
      %v776 = vadd.f32 0.0, %v775
      %v777 = vpop.f32.mrf.mxu0
      %778 = vmatprep.mubr.f32.mxu0 0.0
      %779 = vmatmul.mubr.f32.gmra.mxu0 %v476
      %v780 = vpop.f32.mrf.mxu0
      %v781 = vadd.f32 0.0, %v780
      %v782 = vpop.f32.mrf.mxu0
      %783 = vdwg.mxu0
      %784 = vst [vmem:[%s248] sm:$0xff] %v545
      %785 = vst [vmem:[%s248 + $0x8] sm:$0xff] %v547
      %786 = vst [vmem:[%s248 + $0x10] sm:$0xff] %v622
      %787 = vst [vmem:[%s248 + $0x18] sm:$0xff] %v624
      %788 = vst [vmem:[%s248 + $0x20] sm:$0xff] %v699
      %789 = vst [vmem:[%s248 + $0x28] sm:$0xff] %v701
      %vm790 = vcmask 261120
      %791 = vst.msk [vmem:[%s248 + $0x30] sm:$0xff] %vm790, %v776
      %792 = vst [vmem:[%s248 + $0x38] sm:$0xff] %v551
      %793 = vst [vmem:[%s248 + $0x40] sm:$0xff] %v553
      %794 = vst [vmem:[%s248 + $0x48] sm:$0xff] %v628
      %795 = vst [vmem:[%s248 + $0x50] sm:$0xff] %v630
      %796 = vst [vmem:[%s248 + $0x58] sm:$0xff] %v705
      %797 = vst [vmem:[%s248 + $0x60] sm:$0xff] %v707
      %798 = vst.msk [vmem:[%s248 + $0x68] sm:$0xff] %vm790, %v781
      %s799 = smul.u32 7, %s19
      %p800 = scmp.lt.s32.totalorder %s18, 1
      %s801 = scalar_select %p800, %s18, 1
      %p802 = scmp.lt.s32.totalorder %s799, 6
      %s803 = scalar_select %p802, %s799, 6
      %s804 = smul.addr %s801, 14
      %s805 = sadd.s32 %s803, %s804
      %s806 = smul.addr %s805, 8
      %s807 = scalar_lea.vmem %s3, %s806
      // Predicated region
      $region37: #{ms_cross_att_fa_pallas.5} parent=31 // pred_check
        %p808 = pneg %p126
      $region38: #{ms_cross_att_fa_pallas.5} parent=31 // pred_check_branch
        %810 = sbr.rel (%p808) target = $region40
      $region39: #{ms_cross_att_fa_pallas.5} parent=31 // pred_region
        %s811 = smul.u32 7, %s19
      $region40: #{ms_cross_att_fa_pallas.5} parent=31 // pred_fallthru
        _
    $region32: #{ms_cross_att_fa_pallas.5} parent=5 // pred_fallthru
      _
    %p812 = scmp.le.s32.totalorder 2, %s9
    // Predicated region
    $region41: #{ms_cross_att_fa_pallas.5} parent=5 // pred_check
      %p813 = pneg %p812
    $region42: #{ms_cross_att_fa_pallas.5} parent=5 // pred_check_branch
      %815 = sbr.rel (%p813) target = $region44
    $region43: #{ms_cross_att_fa_pallas.5} parent=5 // pred_region
      %s816 = ssub.s32 %s9, 2
      // Predicated region
      $region45: #{ms_cross_att_fa_pallas.5} parent=43 // pred_check
        %p817 = pneg %p132
      $region46: #{ms_cross_att_fa_pallas.5} parent=43 // pred_check_branch
        %819 = sbr.rel (%p817) target = $region48
      $region47: #{ms_cross_att_fa_pallas.5} parent=43 // pred_region
        %s820 = smul.u32 7, %s21
        %p821 = scmp.lt.s32.totalorder %s20, 1
        %s822 = scalar_select %p821, %s20, 1
        %p823 = scmp.lt.s32.totalorder %s820, 6
        %s824 = scalar_select %p823, %s820, 6
        %s825 = smul.addr %s822, 14
        %s826 = sadd.s32 %s824, %s825
        %s827 = smul.addr %s826, 8
        %s828 = scalar_lea.vmem %s3, %s827
      $region48: #{ms_cross_att_fa_pallas.5} parent=43 // pred_fallthru
        _
    $region44: #{ms_cross_att_fa_pallas.5} parent=5 // pred_fallthru
      _
  $region6: #{ms_cross_att_fa_pallas.5} parent=0 // loop_footer
    %s13 = sadd.s32 1, %s9
  $region7: #{ms_cross_att_fa_pallas.5} parent=0 // loop_footer_branch
    %8 = sbr.rel target = $region3
  $region8: #{ms_cross_att_fa_pallas.5} parent=0 // loop_exit
    _

// kernel: ms_cross_att_fa_pallas.7
$region0: #{ms_cross_att_fa_pallas.7}
  #allocation0 [shape = 'u32[]', space=smem, size = 0x4, offset = 0x4, fixed_abs, tag = 'smem constant byte address 0x4 - core index']
  #allocation1 [shape = 'u32[144,128]{1,0:T(1,128)}', space=vmem, size = 0x12000, scoped, tag = 'internal scratch']
  %s0 = inlined_call_operand.vmem [shape: f32[128,128], index: 0, kind: input, shape index: {}]
  %s1 = inlined_call_operand.vmem [shape: f32[128,128], index: 1, kind: input, shape index: {}]
  %s2 = inlined_call_operand.vmem [shape: f32[128,128], index: 2, kind: input, shape index: {}]
  %s3 = inlined_call_operand.vmem [shape: f32[128,384], index: 3, kind: input, shape index: {}]
  %s4 = inlined_call_operand.vmem [shape: f32[128,384], index: 4, kind: input, shape index: {}]
  %s5 = inlined_call_operand.vmem [shape: f32[128,384], index: 5, kind: input, shape index: {}]
  %s6 = inlined_call_operand.vmem [shape: f32[128,128], index: 6, kind: output, shape index: {}]
  %s7 = sld [smem:[#allocation0]]
  $region34: #{ms_cross_att_fa_pallas.7} parent=0
    _
  %s9 = ssub.s32 1, %s7
  %s10 = scalar_select 0, %s9, %s7
  // Predicated region
  $region2: #{ms_cross_att_fa_pallas.7} parent=0 // pred_check
    _
  $region3: #{ms_cross_att_fa_pallas.7} parent=0 // pred_check_branch
    %12 = sbr.rel (0) target = $region5
  $region4: #{ms_cross_att_fa_pallas.7} parent=0 // pred_region
    _
  $region5: #{ms_cross_att_fa_pallas.7} parent=0 // pred_fallthru
    _
  // Predicated region
  $region6: #{ms_cross_att_fa_pallas.7} parent=0 // pred_check
    _
  $region7: #{ms_cross_att_fa_pallas.7} parent=0 // pred_check_branch
    %14 = sbr.rel (0) target = $region9
  $region8: #{ms_cross_att_fa_pallas.7} parent=0 // pred_region
    _
  $region9: #{ms_cross_att_fa_pallas.7} parent=0 // pred_fallthru
    _
  // Predicated region
  $region10: #{ms_cross_att_fa_pallas.7} parent=0 // pred_check
    _
  $region11: #{ms_cross_att_fa_pallas.7} parent=0 // pred_check_branch
    %16 = sbr.rel (0) target = $region13
  $region12: #{ms_cross_att_fa_pallas.7} parent=0 // pred_region
    _
  $region13: #{ms_cross_att_fa_pallas.7} parent=0 // pred_fallthru
    _
  // Predicated region
  $region14: #{ms_cross_att_fa_pallas.7} parent=0 // pred_check
    _
  $region15: #{ms_cross_att_fa_pallas.7} parent=0 // pred_check_branch
    %18 = sbr.rel (0) target = $region17
  $region16: #{ms_cross_att_fa_pallas.7} parent=0 // pred_region
    _
  $region17: #{ms_cross_att_fa_pallas.7} parent=0 // pred_fallthru
    _
  // Predicated region
  $region18: #{ms_cross_att_fa_pallas.7} parent=0 // pred_check
    _
  $region19: #{ms_cross_att_fa_pallas.7} parent=0 // pred_check_branch
    %20 = sbr.rel (0) target = $region21
  $region20: #{ms_cross_att_fa_pallas.7} parent=0 // pred_region
    _
  $region21: #{ms_cross_att_fa_pallas.7} parent=0 // pred_fallthru
    _
  // Predicated region
  $region22: #{ms_cross_att_fa_pallas.7} parent=0 // pred_check
    _
  $region23: #{ms_cross_att_fa_pallas.7} parent=0 // pred_check_branch
    %22 = sbr.rel (0) target = $region25
  $region24: #{ms_cross_att_fa_pallas.7} parent=0 // pred_region
    _
  $region25: #{ms_cross_att_fa_pallas.7} parent=0 // pred_fallthru
    _
  %v23 = vld [vmem:[%s0] sm:$0xff]
  %v24 = vld [vmem:[%s0 + $0x8] sm:$0xff]
  %v25 = vld [vmem:[%s0 + $0x10] sm:$0xff]
  %v26 = vld [vmem:[%s0 + $0x18] sm:$0xff]
  %v27 = vld [vmem:[%s0 + $0x20] sm:$0xff]
  %v28 = vld [vmem:[%s0 + $0x28] sm:$0xff]
  %v29 = vld [vmem:[%s0 + $0x30] sm:$0xff]
  %v30 = vld [vmem:[%s0 + $0x38] sm:$0xff]
  %v31 = vld [vmem:[%s0 + $0x40] sm:$0xff]
  %v32 = vld [vmem:[%s0 + $0x48] sm:$0xff]
  %v33 = vld [vmem:[%s0 + $0x50] sm:$0xff]
  %v34 = vld [vmem:[%s0 + $0x58] sm:$0xff]
  %v35 = vld [vmem:[%s0 + $0x60] sm:$0xff]
  %v36 = vld [vmem:[%s0 + $0x68] sm:$0xff]
  %v37 = vld [vmem:[%s0 + $0x70] sm:$0xff]
  %v38 = vld [vmem:[%s0 + $0x78] sm:$0xff]
  %v39 = vld [vmem:[%s1] sm:$0xff]
  %v40 = vld [vmem:[%s1 + $0x8] sm:$0xff]
  %v41 = vld [vmem:[%s1 + $0x10] sm:$0xff]
  %v42 = vld [vmem:[%s1 + $0x18] sm:$0xff]
  %v43 = vld [vmem:[%s1 + $0x20] sm:$0xff]
  %v44 = vld [vmem:[%s1 + $0x28] sm:$0xff]
  %v45 = vld [vmem:[%s1 + $0x30] sm:$0xff]
  %v46 = vld [vmem:[%s1 + $0x38] sm:$0xff]
  %v47 = vld [vmem:[%s1 + $0x40] sm:$0xff]
  %v48 = vld [vmem:[%s1 + $0x48] sm:$0xff]
  %v49 = vld [vmem:[%s1 + $0x50] sm:$0xff]
  %v50 = vld [vmem:[%s1 + $0x58] sm:$0xff]
  %v51 = vld [vmem:[%s1 + $0x60] sm:$0xff]
  %v52 = vld [vmem:[%s1 + $0x68] sm:$0xff]
  %v53 = vld [vmem:[%s1 + $0x70] sm:$0xff]
  %v54 = vld [vmem:[%s1 + $0x78] sm:$0xff]
  %v55 = vld [vmem:[%s2] sm:$0xff]
  %v56 = vld [vmem:[%s2 + $0x8] sm:$0xff]
  %v57 = vld [vmem:[%s2 + $0x10] sm:$0xff]
  %v58 = vld [vmem:[%s2 + $0x18] sm:$0xff]
  %v59 = vld [vmem:[%s2 + $0x20] sm:$0xff]
  %v60 = vld [vmem:[%s2 + $0x28] sm:$0xff]
  %v61 = vld [vmem:[%s2 + $0x30] sm:$0xff]
  %v62 = vld [vmem:[%s2 + $0x38] sm:$0xff]
  %v63 = vld [vmem:[%s2 + $0x40] sm:$0xff]
  %v64 = vld [vmem:[%s2 + $0x48] sm:$0xff]
  %v65 = vld [vmem:[%s2 + $0x50] sm:$0xff]
  %v66 = vld [vmem:[%s2 + $0x58] sm:$0xff]
  %v67 = vld [vmem:[%s2 + $0x60] sm:$0xff]
  %v68 = vld [vmem:[%s2 + $0x68] sm:$0xff]
  %v69 = vld [vmem:[%s2 + $0x70] sm:$0xff]
  %v70 = vld [vmem:[%s2 + $0x78] sm:$0xff]
  %v71 = vld [vmem:[%s3] sm:$0xff]
  %v72 = vld [vmem:[%s3 + $0x8] sm:$0xff]
  %v73 = vld [vmem:[%s3 + $0x10] sm:$0xff]
  %v74 = vld [vmem:[%s3 + $0x18] sm:$0xff]
  %v75 = vld [vmem:[%s3 + $0x20] sm:$0xff]
  %v76 = vld [vmem:[%s3 + $0x28] sm:$0xff]
  %v77 = vld [vmem:[%s3 + $0x30] sm:$0xff]
  %v78 = vld [vmem:[%s3 + $0x38] sm:$0xff]
  %v79 = vld [vmem:[%s3 + $0x40] sm:$0xff]
  %v80 = vld [vmem:[%s3 + $0x48] sm:$0xff]
  %v81 = vld [vmem:[%s3 + $0x50] sm:$0xff]
  %v82 = vld [vmem:[%s3 + $0x58] sm:$0xff]
  %v83 = vld [vmem:[%s3 + $0x60] sm:$0xff]
  %v84 = vld [vmem:[%s3 + $0x68] sm:$0xff]
  %v85 = vld [vmem:[%s3 + $0x70] sm:$0xff]
  %v86 = vld [vmem:[%s3 + $0x78] sm:$0xff]
  %v87 = vld [vmem:[%s3 + $0x80] sm:$0xff]
  %v88 = vld [vmem:[%s3 + $0x88] sm:$0xff]
  %v89 = vld [vmem:[%s3 + $0x90] sm:$0xff]
  %v90 = vld [vmem:[%s3 + $0x98] sm:$0xff]
  %v91 = vld [vmem:[%s3 + $0xa0] sm:$0xff]
  %v92 = vld [vmem:[%s3 + $0xa8] sm:$0xff]
  %v93 = vld [vmem:[%s3 + $0xb0] sm:$0xff]
  %v94 = vld [vmem:[%s3 + $0xb8] sm:$0xff]
  %v95 = vld [vmem:[%s3 + $0xc0] sm:$0xff]
  %v96 = vld [vmem:[%s3 + $0xc8] sm:$0xff]
  %v97 = vld [vmem:[%s3 + $0xd0] sm:$0xff]
  %v98 = vld [vmem:[%s3 + $0xd8] sm:$0xff]
  %v99 = vld [vmem:[%s3 + $0xe0] sm:$0xff]
  %v100 = vld [vmem:[%s3 + $0xe8] sm:$0xff]
  %v101 = vld [vmem:[%s3 + $0xf0] sm:$0xff]
  %v102 = vld [vmem:[%s3 + $0xf8] sm:$0xff]
  %v103 = vld [vmem:[%s3 + $0x100] sm:$0xff]
  %v104 = vld [vmem:[%s3 + $0x108] sm:$0xff]
  %v105 = vld [vmem:[%s3 + $0x110] sm:$0xff]
  %v106 = vld [vmem:[%s3 + $0x118] sm:$0xff]
  %v107 = vld [vmem:[%s3 + $0x120] sm:$0xff]
  %v108 = vld [vmem:[%s3 + $0x128] sm:$0xff]
  %v109 = vld [vmem:[%s3 + $0x130] sm:$0xff]
  %v110 = vld [vmem:[%s3 + $0x138] sm:$0xff]
  %v111 = vld [vmem:[%s3 + $0x140] sm:$0xff]
  %v112 = vld [vmem:[%s3 + $0x148] sm:$0xff]
  %v113 = vld [vmem:[%s3 + $0x150] sm:$0xff]
  %v114 = vld [vmem:[%s3 + $0x158] sm:$0xff]
  %v115 = vld [vmem:[%s3 + $0x160] sm:$0xff]
  %v116 = vld [vmem:[%s3 + $0x168] sm:$0xff]
  %v117 = vld [vmem:[%s3 + $0x170] sm:$0xff]
  %v118 = vld [vmem:[%s3 + $0x178] sm:$0xff]
  %v119 = vld [vmem:[%s4] sm:$0xff]
  %v120 = vld [vmem:[%s4 + $0x8] sm:$0xff]
  %v121 = vld [vmem:[%s4 + $0x10] sm:$0xff]
  %v122 = vld [vmem:[%s4 + $0x18] sm:$0xff]
  %v123 = vld [vmem:[%s4 + $0x20] sm:$0xff]
  %v124 = vld [vmem:[%s4 + $0x28] sm:$0xff]
  %v125 = vld [vmem:[%s4 + $0x30] sm:$0xff]
  %v126 = vld [vmem:[%s4 + $0x38] sm:$0xff]
  %v127 = vld [vmem:[%s4 + $0x40] sm:$0xff]
  %v128 = vld [vmem:[%s4 + $0x48] sm:$0xff]
  %v129 = vld [vmem:[%s4 + $0x50] sm:$0xff]
  %v130 = vld [vmem:[%s4 + $0x58] sm:$0xff]
  %v131 = vld [vmem:[%s4 + $0x60] sm:$0xff]
  %v132 = vld [vmem:[%s4 + $0x68] sm:$0xff]
  %v133 = vld [vmem:[%s4 + $0x70] sm:$0xff]
  %v134 = vld [vmem:[%s4 + $0x78] sm:$0xff]
  %v135 = vld [vmem:[%s4 + $0x80] sm:$0xff]
  %v136 = vld [vmem:[%s4 + $0x88] sm:$0xff]
  %v137 = vld [vmem:[%s4 + $0x90] sm:$0xff]
  %v138 = vld [vmem:[%s4 + $0x98] sm:$0xff]
  %v139 = vld [vmem:[%s4 + $0xa0] sm:$0xff]
  %v140 = vld [vmem:[%s4 + $0xa8] sm:$0xff]
  %v141 = vld [vmem:[%s4 + $0xb0] sm:$0xff]
  %v142 = vld [vmem:[%s4 + $0xb8] sm:$0xff]
  %v143 = vld [vmem:[%s4 + $0xc0] sm:$0xff]
  %v144 = vld [vmem:[%s4 + $0xc8] sm:$0xff]
  %v145 = vld [vmem:[%s4 + $0xd0] sm:$0xff]
  %v146 = vld [vmem:[%s4 + $0xd8] sm:$0xff]
  %v147 = vld [vmem:[%s4 + $0xe0] sm:$0xff]
  %v148 = vld [vmem:[%s4 + $0xe8] sm:$0xff]
  %v149 = vld [vmem:[%s4 + $0xf0] sm:$0xff]
  %v150 = vld [vmem:[%s4 + $0xf8] sm:$0xff]
  %v151 = vld [vmem:[%s4 + $0x100] sm:$0xff]
  %v152 = vld [vmem:[%s4 + $0x108] sm:$0xff]
  %v153 = vld [vmem:[%s4 + $0x110] sm:$0xff]
  %v154 = vld [vmem:[%s4 + $0x118] sm:$0xff]
  %v155 = vld [vmem:[%s4 + $0x120] sm:$0xff]
  %v156 = vld [vmem:[%s4 + $0x128] sm:$0xff]
  %v157 = vld [vmem:[%s4 + $0x130] sm:$0xff]
  %v158 = vld [vmem:[%s4 + $0x138] sm:$0xff]
  %v159 = vld [vmem:[%s4 + $0x140] sm:$0xff]
  %v160 = vld [vmem:[%s4 + $0x148] sm:$0xff]
  %v161 = vld [vmem:[%s4 + $0x150] sm:$0xff]
  %v162 = vld [vmem:[%s4 + $0x158] sm:$0xff]
  %v163 = vld [vmem:[%s4 + $0x160] sm:$0xff]
  %v164 = vld [vmem:[%s4 + $0x168] sm:$0xff]
  %v165 = vld [vmem:[%s4 + $0x170] sm:$0xff]
  %v166 = vld [vmem:[%s4 + $0x178] sm:$0xff]
  %167 = vmatprep.subr.mxu0 %v165
  %168 = vmatpush1.msra.mxu0 %v164
  %169 = vmatprep.subr.mxu0 %v162
  %170 = vmatpush1.msra.mxu0 %v161
  %171 = vmatprep.subr.mxu0 %v159
  %172 = vmatpush1.msra.mxu0 %v158
  %173 = vmatprep.subr.mxu0 %v156
  %174 = vmatpush1.msra.mxu0 %v155
  %175 = vmatprep.subr.mxu0 %v153
  %176 = vmatpush1.msra.mxu0 %v152
  %177 = vmatprep.subr.mxu0 %v150
  %178 = vmatpush1.msra.mxu0 %v149
  %179 = vmatprep.subr.mxu0 %v147
  %180 = vmatpush1.msra.mxu0 %v146
  %181 = vmatprep.subr.mxu0 %v144
  %182 = vmatpush1.msra.mxu0 %v143
  %183 = vmatprep.subr.mxu0 %v141
  %184 = vmatpush1.msra.mxu0 %v140
  %185 = vmatprep.subr.mxu0 %v138
  %186 = vmatpush1.msra.mxu0 %v137
  %187 = vmatprep.subr.mxu0 %v135
  %188 = vmatpush1.msra.mxu0 %v134
  %189 = vmatprep.subr.mxu0 %v132
  %190 = vmatpush1.msra.mxu0 %v131
  %191 = vmatprep.subr.mxu0 %v129
  %192 = vmatpush1.msra.mxu0 %v128
  %193 = vmatprep.subr.mxu0 %v126
  %194 = vmatpush1.msra.mxu0 %v125
  %195 = vmatprep.subr.mxu0 %v123
  %196 = vmatpush1.msra.mxu0 %v122
  %197 = vmatprep.subr.mxu0 %v120
  %198 = vmatpush1.msra.mxu0 %v119
  %199 = vmatprep.subr.mxu0 0.0
  %200 = vmatpush2.msra.mxu0 0.0
  %201 = vmatprep.subr.mxu0 0.0
  %202 = vmatpush2.msra.mxu0 0.0
  %203 = vmatprep.subr.mxu0 0.0
  %204 = vmatpush2.msra.mxu0 0.0
  %205 = vmatprep.subr.mxu0 0.0
  %206 = vmatpush2.msra.mxu0 0.0
  %207 = vmatprep.subr.mxu0 0.0
  %208 = vmatpush2.msra.mxu0 0.0
  %209 = vmatprep.subr.mxu0 0.0
  %210 = vmatpush2.msra.mxu0 0.0
  %211 = vmatprep.subr.mxu0 0.0
  %212 = vmatpush2.msra.mxu0 0.0
  %213 = vmatprep.subr.mxu0 0.0
  %214 = vmatpush2.msra.mxu0 0.0
  %215 = vmatprep.subr.mxu0 0.0
  %216 = vmatpush2.msra.mxu0 0.0
  %217 = vmatprep.subr.mxu0 0.0
  %218 = vmatpush2.msra.mxu0 0.0
  %219 = vmatprep.subr.mxu0 0.0
  %220 = vmatpush2.msra.mxu0 0.0
  %221 = vmatprep.subr.mxu0 0.0
  %222 = vmatpush2.msra.mxu0 0.0
  %223 = vmatprep.subr.mxu0 0.0
  %224 = vmatpush2.msra.mxu0 0.0
  %225 = vmatprep.subr.mxu0 0.0
  %226 = vmatpush2.msra.mxu0 0.0
  %227 = vmatprep.subr.mxu0 0.0
  %228 = vmatpush2.msra.mxu0 0.0
  %229 = vmatprep.subr.mxu0 0.0
  %230 = vmatpush2.msra.mxu0 0.0
  %231 = vmatprep.mubr.f32.mxu0 0.0
  %232 = vmatmul.mubr.f32.gmra.mxu0 %v39
  %v233 = vpop.f32.mrf.mxu0
  %v234 = vadd.f32 0.0, %v233
  %v235 = vpop.f32.mrf.mxu0
  %v236 = vadd.f32 0.0, %v235
  %237 = vmatprep.mubr.f32.mxu0 0.0
  %238 = vmatmul.mubr.f32.gmra.mxu0 %v40
  %v239 = vpop.f32.mrf.mxu0
  %v240 = vadd.f32 0.0, %v239
  %v241 = vpop.f32.mrf.mxu0
  %v242 = vadd.f32 0.0, %v241
  %243 = vmatprep.mubr.f32.mxu0 0.0
  %244 = vmatmul.mubr.f32.gmra.mxu0 %v41
  %v245 = vpop.f32.mrf.mxu0
  %v246 = vadd.f32 0.0, %v245
  %v247 = vpop.f32.mrf.mxu0
  %v248 = vadd.f32 0.0, %v247
  %249 = vmatprep.mubr.f32.mxu0 0.0
  %250 = vmatmul.mubr.f32.gmra.mxu0 %v42
  %v251 = vpop.f32.mrf.mxu0
  %v252 = vadd.f32 0.0, %v251
  %v253 = vpop.f32.mrf.mxu0
  %v254 = vadd.f32 0.0, %v253
  %255 = vmatprep.mubr.f32.mxu0 0.0
  %256 = vmatmul.mubr.f32.gmra.mxu0 %v43
  %v257 = vpop.f32.mrf.mxu0
  %v258 = vadd.f32 0.0, %v257
  %v259 = vpop.f32.mrf.mxu0
  %v260 = vadd.f32 0.0, %v259
  %261 = vmatprep.mubr.f32.mxu0 0.0
  %262 = vmatmul.mubr.f32.gmra.mxu0 %v44
  %v263 = vpop.f32.mrf.mxu0
  %v264 = vadd.f32 0.0, %v263
  %v265 = vpop.f32.mrf.mxu0
  %v266 = vadd.f32 0.0, %v265
  %267 = vmatprep.mubr.f32.mxu0 0.0
  %268 = vmatmul.mubr.f32.gmra.mxu0 %v45
  %v269 = vpop.f32.mrf.mxu0
  %v270 = vadd.f32 0.0, %v269
  %v271 = vpop.f32.mrf.mxu0
  %v272 = vadd.f32 0.0, %v271
  %273 = vmatprep.mubr.f32.mxu0 0.0
  %274 = vmatmul.mubr.f32.gmra.mxu0 %v46
  %v275 = vpop.f32.mrf.mxu0
  %v276 = vadd.f32 0.0, %v275
  %v277 = vpop.f32.mrf.mxu0
  %v278 = vadd.f32 0.0, %v277
  %279 = vmatprep.mubr.f32.mxu0 0.0
  %280 = vmatmul.mubr.f32.gmra.mxu0 %v47
  %v281 = vpop.f32.mrf.mxu0
  %v282 = vadd.f32 0.0, %v281
  %v283 = vpop.f32.mrf.mxu0
  %v284 = vadd.f32 0.0, %v283
  %285 = vmatprep.mubr.f32.mxu0 0.0
  %286 = vmatmul.mubr.f32.gmra.mxu0 %v48
  %v287 = vpop.f32.mrf.mxu0
  %v288 = vadd.f32 0.0, %v287
  %v289 = vpop.f32.mrf.mxu0
  %v290 = vadd.f32 0.0, %v289
  %291 = vmatprep.mubr.f32.mxu0 0.0
  %292 = vmatmul.mubr.f32.gmra.mxu0 %v49
  %v293 = vpop.f32.mrf.mxu0
  %v294 = vadd.f32 0.0, %v293
  %v295 = vpop.f32.mrf.mxu0
  %v296 = vadd.f32 0.0, %v295
  %297 = vmatprep.mubr.f32.mxu0 0.0
  %298 = vmatmul.mubr.f32.gmra.mxu0 %v50
  %v299 = vpop.f32.mrf.mxu0
  %v300 = vadd.f32 0.0, %v299
  %v301 = vpop.f32.mrf.mxu0
  %v302 = vadd.f32 0.0, %v301
  %303 = vmatprep.mubr.f32.mxu0 0.0
  %304 = vmatmul.mubr.f32.gmra.mxu0 %v51
  %v305 = vpop.f32.mrf.mxu0
  %v306 = vadd.f32 0.0, %v305
  %v307 = vpop.f32.mrf.mxu0
  %v308 = vadd.f32 0.0, %v307
  %309 = vmatprep.mubr.f32.mxu0 0.0
  %310 = vmatmul.mubr.f32.gmra.mxu0 %v52
  %v311 = vpop.f32.mrf.mxu0
  %v312 = vadd.f32 0.0, %v311
  %v313 = vpop.f32.mrf.mxu0
  %v314 = vadd.f32 0.0, %v313
  %315 = vmatprep.mubr.f32.mxu0 0.0
  %316 = vmatmul.mubr.f32.gmra.mxu0 %v53
  %v317 = vpop.f32.mrf.mxu0
  %v318 = vadd.f32 0.0, %v317
  %v319 = vpop.f32.mrf.mxu0
  %v320 = vadd.f32 0.0, %v319
  %321 = vmatprep.mubr.f32.mxu0 0.0
  %322 = vmatmul.mubr.f32.gmra.mxu0 %v54
  %v323 = vpop.f32.mrf.mxu0
  %v324 = vadd.f32 0.0, %v323
  %v325 = vpop.f32.mrf.mxu0
  %v326 = vadd.f32 0.0, %v325
  %327 = vdwg.mxu0
  %328 = vmatprep.subr.mxu0 0.0
  %329 = vmatpush1.msra.mxu0 %v166
  %330 = vmatprep.subr.mxu0 0.0
  %331 = vmatpush1.msra.mxu0 %v163
  %332 = vmatprep.subr.mxu0 0.0
  %333 = vmatpush1.msra.mxu0 %v160
  %334 = vmatprep.subr.mxu0 0.0
  %335 = vmatpush1.msra.mxu0 %v157
  %336 = vmatprep.subr.mxu0 0.0
  %337 = vmatpush1.msra.mxu0 %v154
  %338 = vmatprep.subr.mxu0 0.0
  %339 = vmatpush1.msra.mxu0 %v151
  %340 = vmatprep.subr.mxu0 0.0
  %341 = vmatpush1.msra.mxu0 %v148
  %342 = vmatprep.subr.mxu0 0.0
  %343 = vmatpush1.msra.mxu0 %v145
  %344 = vmatprep.subr.mxu0 0.0
  %345 = vmatpush1.msra.mxu0 %v142
  %346 = vmatprep.subr.mxu0 0.0
  %347 = vmatpush1.msra.mxu0 %v139
  %348 = vmatprep.subr.mxu0 0.0
  %349 = vmatpush1.msra.mxu0 %v136
  %350 = vmatprep.subr.mxu0 0.0
  %351 = vmatpush1.msra.mxu0 %v133
  %352 = vmatprep.subr.mxu0 0.0
  %353 = vmatpush1.msra.mxu0 %v130
  %354 = vmatprep.subr.mxu0 0.0
  %355 = vmatpush1.msra.mxu0 %v127
  %356 = vmatprep.subr.mxu0 0.0
  %357 = vmatpush1.msra.mxu0 %v124
  %358 = vmatprep.subr.mxu0 0.0
  %359 = vmatpush1.msra.mxu0 %v121
  %360 = vmatprep.subr.mxu0 0.0
  %361 = vmatpush2.msra.mxu0 0.0
  %362 = vmatprep.subr.mxu0 0.0
  %363 = vmatpush2.msra.mxu0 0.0
  %364 = vmatprep.subr.mxu0 0.0
  %365 = vmatpush2.msra.mxu0 0.0
  %366 = vmatprep.subr.mxu0 0.0
  %367 = vmatpush2.msra.mxu0 0.0
  %368 = vmatprep.subr.mxu0 0.0
  %369 = vmatpush2.msra.mxu0 0.0
  %370 = vmatprep.subr.mxu0 0.0
  %371 = vmatpush2.msra.mxu0 0.0
  %372 = vmatprep.subr.mxu0 0.0
  %373 = vmatpush2.msra.mxu0 0.0
  %374 = vmatprep.subr.mxu0 0.0
  %375 = vmatpush2.msra.mxu0 0.0
  %376 = vmatprep.subr.mxu0 0.0
  %377 = vmatpush2.msra.mxu0 0.0
  %378 = vmatprep.subr.mxu0 0.0
  %379 = vmatpush2.msra.mxu0 0.0
  %380 = vmatprep.subr.mxu0 0.0
  %381 = vmatpush2.msra.mxu0 0.0
  %382 = vmatprep.subr.mxu0 0.0
  %383 = vmatpush2.msra.mxu0 0.0
  %384 = vmatprep.subr.mxu0 0.0
  %385 = vmatpush2.msra.mxu0 0.0
  %386 = vmatprep.subr.mxu0 0.0
  %387 = vmatpush2.msra.mxu0 0.0
  %388 = vmatprep.subr.mxu0 0.0
  %389 = vmatpush2.msra.mxu0 0.0
  %390 = vmatprep.subr.mxu0 0.0
  %391 = vmatpush2.msra.mxu0 0.0
  %392 = vmatprep.mubr.f32.mxu0 0.0
  %393 = vmatmul.mubr.f32.gmra.mxu0 %v39
  %v394 = vpop.f32.mrf.mxu0
  %v395 = vadd.f32 0.0, %v394
  %v396 = vpop.f32.mrf.mxu0
  %397 = vmatprep.mubr.f32.mxu0 0.0
  %398 = vmatmul.mubr.f32.gmra.mxu0 %v40
  %v399 = vpop.f32.mrf.mxu0
  %v400 = vadd.f32 0.0, %v399
  %v401 = vpop.f32.mrf.mxu0
  %402 = vmatprep.mubr.f32.mxu0 0.0
  %403 = vmatmul.mubr.f32.gmra.mxu0 %v41
  %v404 = vpop.f32.mrf.mxu0
  %v405 = vadd.f32 0.0, %v404
  %v406 = vpop.f32.mrf.mxu0
  %407 = vmatprep.mubr.f32.mxu0 0.0
  %408 = vmatmul.mubr.f32.gmra.mxu0 %v42
  %v409 = vpop.f32.mrf.mxu0
  %v410 = vadd.f32 0.0, %v409
  %v411 = vpop.f32.mrf.mxu0
  %412 = vmatprep.mubr.f32.mxu0 0.0
  %413 = vmatmul.mubr.f32.gmra.mxu0 %v43
  %v414 = vpop.f32.mrf.mxu0
  %v415 = vadd.f32 0.0, %v414
  %v416 = vpop.f32.mrf.mxu0
  %417 = vmatprep.mubr.f32.mxu0 0.0
  %418 = vmatmul.mubr.f32.gmra.mxu0 %v44
  %v419 = vpop.f32.mrf.mxu0
  %v420 = vadd.f32 0.0, %v419
  %v421 = vpop.f32.mrf.mxu0
  %422 = vmatprep.mubr.f32.mxu0 0.0
  %423 = vmatmul.mubr.f32.gmra.mxu0 %v45
  %v424 = vpop.f32.mrf.mxu0
  %v425 = vadd.f32 0.0, %v424
  %v426 = vpop.f32.mrf.mxu0
  %427 = vmatprep.mubr.f32.mxu0 0.0
  %428 = vmatmul.mubr.f32.gmra.mxu0 %v46
  %v429 = vpop.f32.mrf.mxu0
  %v430 = vadd.f32 0.0, %v429
  %v431 = vpop.f32.mrf.mxu0
  %432 = vmatprep.mubr.f32.mxu0 0.0
  %433 = vmatmul.mubr.f32.gmra.mxu0 %v47
  %v434 = vpop.f32.mrf.mxu0
  %v435 = vadd.f32 0.0, %v434
  %v436 = vpop.f32.mrf.mxu0
  %437 = vmatprep.mubr.f32.mxu0 0.0
  %438 = vmatmul.mubr.f32.gmra.mxu0 %v48
  %v439 = vpop.f32.mrf.mxu0
  %v440 = vadd.f32 0.0, %v439
  %v441 = vpop.f32.mrf.mxu0
  %442 = vmatprep.mubr.f32.mxu0 0.0
  %443 = vmatmul.mubr.f32.gmra.mxu0 %v49
  %v444 = vpop.f32.mrf.mxu0
  %v445 = vadd.f32 0.0, %v444
  %v446 = vpop.f32.mrf.mxu0
  %447 = vmatprep.mubr.f32.mxu0 0.0
  %448 = vmatmul.mubr.f32.gmra.mxu0 %v50
  %v449 = vpop.f32.mrf.mxu0
  %v450 = vadd.f32 0.0, %v449
  %v451 = vpop.f32.mrf.mxu0
  %452 = vmatprep.mubr.f32.mxu0 0.0
  %453 = vmatmul.mubr.f32.gmra.mxu0 %v51
  %v454 = vpop.f32.mrf.mxu0
  %v455 = vadd.f32 0.0, %v454
  %v456 = vpop.f32.mrf.mxu0
  %457 = vmatprep.mubr.f32.mxu0 0.0
  %458 = vmatmul.mubr.f32.gmra.mxu0 %v52
  %v459 = vpop.f32.mrf.mxu0
  %v460 = vadd.f32 0.0, %v459
  %v461 = vpop.f32.mrf.mxu0
  %462 = vmatprep.mubr.f32.mxu0 0.0
  %463 = vmatmul.mubr.f32.gmra.mxu0 %v53
  %v464 = vpop.f32.mrf.mxu0
  %v465 = vadd.f32 0.0, %v464
  %v466 = vpop.f32.mrf.mxu0
  %467 = vmatprep.mubr.f32.mxu0 0.0
  %468 = vmatmul.mubr.f32.gmra.mxu0 %v54
  %v469 = vpop.f32.mrf.mxu0
  %v470 = vadd.f32 0.0, %v469
  %v471 = vpop.f32.mrf.mxu0
  %472 = vdwg.mxu0
  %473 = vmatprep.subr.mxu0 %v117
  %474 = vmatpush1.msra.mxu0 %v116
  %475 = vmatprep.subr.mxu0 %v114
  %476 = vmatpush1.msra.mxu0 %v113
  %477 = vmatprep.subr.mxu0 %v111
  %478 = vmatpush1.msra.mxu0 %v110
  %479 = vmatprep.subr.mxu0 %v108
  %480 = vmatpush1.msra.mxu0 %v107
  %481 = vmatprep.subr.mxu0 %v105
  %482 = vmatpush1.msra.mxu0 %v104
  %483 = vmatprep.subr.mxu0 %v102
  %484 = vmatpush1.msra.mxu0 %v101
  %485 = vmatprep.subr.mxu0 %v99
  %486 = vmatpush1.msra.mxu0 %v98
  %487 = vmatprep.subr.mxu0 %v96
  %488 = vmatpush1.msra.mxu0 %v95
  %489 = vmatprep.subr.mxu0 %v93
  %490 = vmatpush1.msra.mxu0 %v92
  %491 = vmatprep.subr.mxu0 %v90
  %492 = vmatpush1.msra.mxu0 %v89
  %493 = vmatprep.subr.mxu0 %v87
  %494 = vmatpush1.msra.mxu0 %v86
  %495 = vmatprep.subr.mxu0 %v84
  %496 = vmatpush1.msra.mxu0 %v83
  %497 = vmatprep.subr.mxu0 %v81
  %498 = vmatpush1.msra.mxu0 %v80
  %499 = vmatprep.subr.mxu0 %v78
  %500 = vmatpush1.msra.mxu0 %v77
  %501 = vmatprep.subr.mxu0 %v75
  %502 = vmatpush1.msra.mxu0 %v74
  %503 = vmatprep.subr.mxu0 %v72
  %504 = vmatpush1.msra.mxu0 %v71
  %505 = vmatprep.subr.mxu0 0.0
  %506 = vmatpush2.msra.mxu0 0.0
  %507 = vmatprep.subr.mxu0 0.0
  %508 = vmatpush2.msra.mxu0 0.0
  %509 = vmatprep.subr.mxu0 0.0
  %510 = vmatpush2.msra.mxu0 0.0
  %511 = vmatprep.subr.mxu0 0.0
  %512 = vmatpush2.msra.mxu0 0.0
  %513 = vmatprep.subr.mxu0 0.0
  %514 = vmatpush2.msra.mxu0 0.0
  %515 = vmatprep.subr.mxu0 0.0
  %516 = vmatpush2.msra.mxu0 0.0
  %517 = vmatprep.subr.mxu0 0.0
  %518 = vmatpush2.msra.mxu0 0.0
  %519 = vmatprep.subr.mxu0 0.0
  %520 = vmatpush2.msra.mxu0 0.0
  %521 = vmatprep.subr.mxu0 0.0
  %522 = vmatpush2.msra.mxu0 0.0
  %523 = vmatprep.subr.mxu0 0.0
  %524 = vmatpush2.msra.mxu0 0.0
  %525 = vmatprep.subr.mxu0 0.0
  %526 = vmatpush2.msra.mxu0 0.0
  %527 = vmatprep.subr.mxu0 0.0
  %528 = vmatpush2.msra.mxu0 0.0
  %529 = vmatprep.subr.mxu0 0.0
  %530 = vmatpush2.msra.mxu0 0.0
  %531 = vmatprep.subr.mxu0 0.0
  %532 = vmatpush2.msra.mxu0 0.0
  %533 = vmatprep.subr.mxu0 0.0
  %534 = vmatpush2.msra.mxu0 0.0
  %535 = vmatprep.subr.mxu0 0.0
  %536 = vmatpush2.msra.mxu0 0.0
  %537 = vmatprep.mubr.f32.mxu0 0.0
  %538 = vmatmul.mubr.f32.gmra.mxu0 %v23
  %v539 = vpop.f32.mrf.mxu0
  %v540 = vadd.f32 %v234, %v539
  %v541 = vpop.f32.mrf.mxu0
  %v542 = vadd.f32 %v236, %v541
  %543 = vmatprep.mubr.f32.mxu0 0.0
  %544 = vmatmul.mubr.f32.gmra.mxu0 %v24
  %v545 = vpop.f32.mrf.mxu0
  %v546 = vadd.f32 %v240, %v545
  %v547 = vpop.f32.mrf.mxu0
  %v548 = vadd.f32 %v242, %v547
  %549 = vmatprep.mubr.f32.mxu0 0.0
  %550 = vmatmul.mubr.f32.gmra.mxu0 %v25
  %v551 = vpop.f32.mrf.mxu0
  %v552 = vadd.f32 %v246, %v551
  %v553 = vpop.f32.mrf.mxu0
  %v554 = vadd.f32 %v248, %v553
  %555 = vmatprep.mubr.f32.mxu0 0.0
  %556 = vmatmul.mubr.f32.gmra.mxu0 %v26
  %v557 = vpop.f32.mrf.mxu0
  %v558 = vadd.f32 %v252, %v557
  %v559 = vpop.f32.mrf.mxu0
  %v560 = vadd.f32 %v254, %v559
  %561 = vmatprep.mubr.f32.mxu0 0.0
  %562 = vmatmul.mubr.f32.gmra.mxu0 %v27
  %v563 = vpop.f32.mrf.mxu0
  %v564 = vadd.f32 %v258, %v563
  %v565 = vpop.f32.mrf.mxu0
  %v566 = vadd.f32 %v260, %v565
  %567 = vmatprep.mubr.f32.mxu0 0.0
  %568 = vmatmul.mubr.f32.gmra.mxu0 %v28
  %v569 = vpop.f32.mrf.mxu0
  %v570 = vadd.f32 %v264, %v569
  %v571 = vpop.f32.mrf.mxu0
  %v572 = vadd.f32 %v266, %v571
  %573 = vmatprep.mubr.f32.mxu0 0.0
  %574 = vmatmul.mubr.f32.gmra.mxu0 %v29
  %v575 = vpop.f32.mrf.mxu0
  %v576 = vadd.f32 %v270, %v575
  %v577 = vpop.f32.mrf.mxu0
  %v578 = vadd.f32 %v272, %v577
  %579 = vmatprep.mubr.f32.mxu0 0.0
  %580 = vmatmul.mubr.f32.gmra.mxu0 %v30
  %v581 = vpop.f32.mrf.mxu0
  %v582 = vadd.f32 %v276, %v581
  %v583 = vpop.f32.mrf.mxu0
  %v584 = vadd.f32 %v278, %v583
  %585 = vmatprep.mubr.f32.mxu0 0.0
  %586 = vmatmul.mubr.f32.gmra.mxu0 %v31
  %v587 = vpop.f32.mrf.mxu0
  %v588 = vadd.f32 %v282, %v587
  %v589 = vpop.f32.mrf.mxu0
  %v590 = vadd.f32 %v284, %v589
  %591 = vmatprep.mubr.f32.mxu0 0.0
  %592 = vmatmul.mubr.f32.gmra.mxu0 %v32
  %v593 = vpop.f32.mrf.mxu0
  %v594 = vadd.f32 %v288, %v593
  %v595 = vpop.f32.mrf.mxu0
  %v596 = vadd.f32 %v290, %v595
  %597 = vmatprep.mubr.f32.mxu0 0.0
  %598 = vmatmul.mubr.f32.gmra.mxu0 %v33
  %v599 = vpop.f32.mrf.mxu0
  %v600 = vadd.f32 %v294, %v599
  %v601 = vpop.f32.mrf.mxu0
  %v602 = vadd.f32 %v296, %v601
  %603 = vmatprep.mubr.f32.mxu0 0.0
  %604 = vmatmul.mubr.f32.gmra.mxu0 %v34
  %v605 = vpop.f32.mrf.mxu0
  %v606 = vadd.f32 %v300, %v605
  %v607 = vpop.f32.mrf.mxu0
  %v608 = vadd.f32 %v302, %v607
  %609 = vmatprep.mubr.f32.mxu0 0.0
  %610 = vmatmul.mubr.f32.gmra.mxu0 %v35
  %v611 = vpop.f32.mrf.mxu0
  %v612 = vadd.f32 %v306, %v611
  %v613 = vpop.f32.mrf.mxu0
  %v614 = vadd.f32 %v308, %v613
  %615 = vmatprep.mubr.f32.mxu0 0.0
  %616 = vmatmul.mubr.f32.gmra.mxu0 %v36
  %v617 = vpop.f32.mrf.mxu0
  %v618 = vadd.f32 %v312, %v617
  %v619 = vpop.f32.mrf.mxu0
  %v620 = vadd.f32 %v314, %v619
  %621 = vmatprep.mubr.f32.mxu0 0.0
  %622 = vmatmul.mubr.f32.gmra.mxu0 %v37
  %v623 = vpop.f32.mrf.mxu0
  %v624 = vadd.f32 %v318, %v623
  %v625 = vpop.f32.mrf.mxu0
  %v626 = vadd.f32 %v320, %v625
  %627 = vmatprep.mubr.f32.mxu0 0.0
  %628 = vmatmul.mubr.f32.gmra.mxu0 %v38
  %v629 = vpop.f32.mrf.mxu0
  %v630 = vadd.f32 %v324, %v629
  %v631 = vpop.f32.mrf.mxu0
  %v632 = vadd.f32 %v326, %v631
  %633 = vdwg.mxu0
  %634 = vmatprep.subr.mxu0 0.0
  %635 = vmatpush1.msra.mxu0 %v118
  %636 = vmatprep.subr.mxu0 0.0
  %637 = vmatpush1.msra.mxu0 %v115
  %638 = vmatprep.subr.mxu0 0.0
  %639 = vmatpush1.msra.mxu0 %v112
  %640 = vmatprep.subr.mxu0 0.0
  %641 = vmatpush1.msra.mxu0 %v109
  %642 = vmatprep.subr.mxu0 0.0
  %643 = vmatpush1.msra.mxu0 %v106
  %644 = vmatprep.subr.mxu0 0.0
  %645 = vmatpush1.msra.mxu0 %v103
  %646 = vmatprep.subr.mxu0 0.0
  %647 = vmatpush1.msra.mxu0 %v100
  %648 = vmatprep.subr.mxu0 0.0
  %649 = vmatpush1.msra.mxu0 %v97
  %650 = vmatprep.subr.mxu0 0.0
  %651 = vmatpush1.msra.mxu0 %v94
  %652 = vmatprep.subr.mxu0 0.0
  %653 = vmatpush1.msra.mxu0 %v91
  %654 = vmatprep.subr.mxu0 0.0
  %655 = vmatpush1.msra.mxu0 %v88
  %656 = vmatprep.subr.mxu0 0.0
  %657 = vmatpush1.msra.mxu0 %v85
  %658 = vmatprep.subr.mxu0 0.0
  %659 = vmatpush1.msra.mxu0 %v82
  %660 = vmatprep.subr.mxu0 0.0
  %661 = vmatpush1.msra.mxu0 %v79
  %662 = vmatprep.subr.mxu0 0.0
  %663 = vmatpush1.msra.mxu0 %v76
  %664 = vmatprep.subr.mxu0 0.0
  %665 = vmatpush1.msra.mxu0 %v73
  %666 = vmatprep.subr.mxu0 0.0
  %667 = vmatpush2.msra.mxu0 0.0
  %668 = vmatprep.subr.mxu0 0.0
  %669 = vmatpush2.msra.mxu0 0.0
  %670 = vmatprep.subr.mxu0 0.0
  %671 = vmatpush2.msra.mxu0 0.0
  %672 = vmatprep.subr.mxu0 0.0
  %673 = vmatpush2.msra.mxu0 0.0
  %674 = vmatprep.subr.mxu0 0.0
  %675 = vmatpush2.msra.mxu0 0.0
  %676 = vmatprep.subr.mxu0 0.0
  %677 = vmatpush2.msra.mxu0 0.0
  %678 = vmatprep.subr.mxu0 0.0
  %679 = vmatpush2.msra.mxu0 0.0
  %680 = vmatprep.subr.mxu0 0.0
  %681 = vmatpush2.msra.mxu0 0.0
  %682 = vmatprep.subr.mxu0 0.0
  %683 = vmatpush2.msra.mxu0 0.0
  %684 = vmatprep.subr.mxu0 0.0
  %685 = vmatpush2.msra.mxu0 0.0
  %686 = vmatprep.subr.mxu0 0.0
  %687 = vmatpush2.msra.mxu0 0.0
  %688 = vmatprep.subr.mxu0 0.0
  %689 = vmatpush2.msra.mxu0 0.0
  %690 = vmatprep.subr.mxu0 0.0
  %691 = vmatpush2.msra.mxu0 0.0
  %692 = vmatprep.subr.mxu0 0.0
  %693 = vmatpush2.msra.mxu0 0.0
  %694 = vmatprep.subr.mxu0 0.0
  %695 = vmatpush2.msra.mxu0 0.0
  %696 = vmatprep.subr.mxu0 0.0
  %697 = vmatpush2.msra.mxu0 0.0
  %698 = vmatprep.mubr.f32.mxu0 0.0
  %699 = vmatmul.mubr.f32.gmra.mxu0 %v23
  %v700 = vpop.f32.mrf.mxu0
  %v701 = vadd.f32 %v395, %v700
  %v702 = vpop.f32.mrf.mxu0
  %703 = vmatprep.mubr.f32.mxu0 0.0
  %704 = vmatmul.mubr.f32.gmra.mxu0 %v24
  %v705 = vpop.f32.mrf.mxu0
  %v706 = vadd.f32 %v400, %v705
  %v707 = vpop.f32.mrf.mxu0
  %708 = vmatprep.mubr.f32.mxu0 0.0
  %709 = vmatmul.mubr.f32.gmra.mxu0 %v25
  %v710 = vpop.f32.mrf.mxu0
  %v711 = vadd.f32 %v405, %v710
  %v712 = vpop.f32.mrf.mxu0
  %713 = vmatprep.mubr.f32.mxu0 0.0
  %714 = vmatmul.mubr.f32.gmra.mxu0 %v26
  %v715 = vpop.f32.mrf.mxu0
  %v716 = vadd.f32 %v410, %v715
  %v717 = vpop.f32.mrf.mxu0
  %718 = vmatprep.mubr.f32.mxu0 0.0
  %719 = vmatmul.mubr.f32.gmra.mxu0 %v27
  %v720 = vpop.f32.mrf.mxu0
  %v721 = vadd.f32 %v415, %v720
  %v722 = vpop.f32.mrf.mxu0
  %723 = vmatprep.mubr.f32.mxu0 0.0
  %724 = vmatmul.mubr.f32.gmra.mxu0 %v28
  %v725 = vpop.f32.mrf.mxu0
  %v726 = vadd.f32 %v420, %v725
  %v727 = vpop.f32.mrf.mxu0
  %728 = vmatprep.mubr.f32.mxu0 0.0
  %729 = vmatmul.mubr.f32.gmra.mxu0 %v29
  %v730 = vpop.f32.mrf.mxu0
  %v731 = vadd.f32 %v425, %v730
  %v732 = vpop.f32.mrf.mxu0
  %733 = vmatprep.mubr.f32.mxu0 0.0
  %734 = vmatmul.mubr.f32.gmra.mxu0 %v30
  %v735 = vpop.f32.mrf.mxu0
  %v736 = vadd.f32 %v430, %v735
  %v737 = vpop.f32.mrf.mxu0
  %738 = vmatprep.mubr.f32.mxu0 0.0
  %739 = vmatmul.mubr.f32.gmra.mxu0 %v31
  %v740 = vpop.f32.mrf.mxu0
  %v741 = vadd.f32 %v435, %v740
  %v742 = vpop.f32.mrf.mxu0
  %743 = vmatprep.mubr.f32.mxu0 0.0
  %744 = vmatmul.mubr.f32.gmra.mxu0 %v32
  %v745 = vpop.f32.mrf.mxu0
  %v746 = vadd.f32 %v440, %v745
  %v747 = vpop.f32.mrf.mxu0
  %748 = vmatprep.mubr.f32.mxu0 0.0
  %749 = vmatmul.mubr.f32.gmra.mxu0 %v33
  %v750 = vpop.f32.mrf.mxu0
  %v751 = vadd.f32 %v445, %v750
  %v752 = vpop.f32.mrf.mxu0
  %753 = vmatprep.mubr.f32.mxu0 0.0
  %754 = vmatmul.mubr.f32.gmra.mxu0 %v34
  %v755 = vpop.f32.mrf.mxu0
  %v756 = vadd.f32 %v450, %v755
  %v757 = vpop.f32.mrf.mxu0
  %758 = vmatprep.mubr.f32.mxu0 0.0
  %759 = vmatmul.mubr.f32.gmra.mxu0 %v35
  %v760 = vpop.f32.mrf.mxu0
  %v761 = vadd.f32 %v455, %v760
  %v762 = vpop.f32.mrf.mxu0
  %763 = vmatprep.mubr.f32.mxu0 0.0
  %764 = vmatmul.mubr.f32.gmra.mxu0 %v36
  %v765 = vpop.f32.mrf.mxu0
  %v766 = vadd.f32 %v460, %v765
  %v767 = vpop.f32.mrf.mxu0
  %768 = vmatprep.mubr.f32.mxu0 0.0
  %769 = vmatmul.mubr.f32.gmra.mxu0 %v37
  %v770 = vpop.f32.mrf.mxu0
  %v771 = vadd.f32 %v465, %v770
  %v772 = vpop.f32.mrf.mxu0
  %773 = vmatprep.mubr.f32.mxu0 0.0
  %774 = vmatmul.mubr.f32.gmra.mxu0 %v38
  %v775 = vpop.f32.mrf.mxu0
  %v776 = vadd.f32 %v470, %v775
  %v777 = vpop.f32.mrf.mxu0
  %778 = vdwg.mxu0
  %v779 = vld [vmem:[%s5] sm:$0xff]
  %v780 = vld [vmem:[%s5 + $0x8] sm:$0xff]
  %v781 = vld [vmem:[%s5 + $0x10] sm:$0xff]
  %v782 = vld [vmem:[%s5 + $0x18] sm:$0xff]
  %v783 = vld [vmem:[%s5 + $0x20] sm:$0xff]
  %v784 = vld [vmem:[%s5 + $0x28] sm:$0xff]
  %v785 = vld [vmem:[%s5 + $0x30] sm:$0xff]
  %v786 = vld [vmem:[%s5 + $0x38] sm:$0xff]
  %v787 = vld [vmem:[%s5 + $0x40] sm:$0xff]
  %v788 = vld [vmem:[%s5 + $0x48] sm:$0xff]
  %v789 = vld [vmem:[%s5 + $0x50] sm:$0xff]
  %v790 = vld [vmem:[%s5 + $0x58] sm:$0xff]
  %v791 = vld [vmem:[%s5 + $0x60] sm:$0xff]
  %v792 = vld [vmem:[%s5 + $0x68] sm:$0xff]
  %v793 = vld [vmem:[%s5 + $0x70] sm:$0xff]
  %v794 = vld [vmem:[%s5 + $0x78] sm:$0xff]
  %v795 = vld [vmem:[%s5 + $0x80] sm:$0xff]
  %v796 = vld [vmem:[%s5 + $0x88] sm:$0xff]
  %v797 = vld [vmem:[%s5 + $0x90] sm:$0xff]
  %v798 = vld [vmem:[%s5 + $0x98] sm:$0xff]
  %v799 = vld [vmem:[%s5 + $0xa0] sm:$0xff]
  %v800 = vld [vmem:[%s5 + $0xa8] sm:$0xff]
  %v801 = vld [vmem:[%s5 + $0xb0] sm:$0xff]
  %v802 = vld [vmem:[%s5 + $0xb8] sm:$0xff]
  %v803 = vld [vmem:[%s5 + $0xc0] sm:$0xff]
  %v804 = vld [vmem:[%s5 + $0xc8] sm:$0xff]
  %v805 = vld [vmem:[%s5 + $0xd0] sm:$0xff]
  %v806 = vld [vmem:[%s5 + $0xd8] sm:$0xff]
  %v807 = vld [vmem:[%s5 + $0xe0] sm:$0xff]
  %v808 = vld [vmem:[%s5 + $0xe8] sm:$0xff]
  %v809 = vld [vmem:[%s5 + $0xf0] sm:$0xff]
  %v810 = vld [vmem:[%s5 + $0xf8] sm:$0xff]
  %v811 = vld [vmem:[%s5 + $0x100] sm:$0xff]
  %v812 = vld [vmem:[%s5 + $0x108] sm:$0xff]
  %v813 = vld [vmem:[%s5 + $0x110] sm:$0xff]
  %v814 = vld [vmem:[%s5 + $0x118] sm:$0xff]
  %v815 = vld [vmem:[%s5 + $0x120] sm:$0xff]
  %v816 = vld [vmem:[%s5 + $0x128] sm:$0xff]
  %v817 = vld [vmem:[%s5 + $0x130] sm:$0xff]
  %v818 = vld [vmem:[%s5 + $0x138] sm:$0xff]
  %v819 = vld [vmem:[%s5 + $0x140] sm:$0xff]
  %v820 = vld [vmem:[%s5 + $0x148] sm:$0xff]
  %v821 = vld [vmem:[%s5 + $0x150] sm:$0xff]
  %v822 = vld [vmem:[%s5 + $0x158] sm:$0xff]
  %v823 = vld [vmem:[%s5 + $0x160] sm:$0xff]
  %v824 = vld [vmem:[%s5 + $0x168] sm:$0xff]
  %v825 = vld [vmem:[%s5 + $0x170] sm:$0xff]
  %v826 = vld [vmem:[%s5 + $0x178] sm:$0xff]
  %827 = vmatprep.subr.mxu0 %v825
  %828 = vmatpush1.msra.mxu0 %v824
  %829 = vmatprep.subr.mxu0 %v822
  %830 = vmatpush1.msra.mxu0 %v821
  %831 = vmatprep.subr.mxu0 %v819
  %832 = vmatpush1.msra.mxu0 %v818
  %833 = vmatprep.subr.mxu0 %v816
  %834 = vmatpush1.msra.mxu0 %v815
  %835 = vmatprep.subr.mxu0 %v813
  %836 = vmatpush1.msra.mxu0 %v812
  %837 = vmatprep.subr.mxu0 %v810
  %838 = vmatpush1.msra.mxu0 %v809
  %839 = vmatprep.subr.mxu0 %v807
  %840 = vmatpush1.msra.mxu0 %v806
  %841 = vmatprep.subr.mxu0 %v804
  %842 = vmatpush1.msra.mxu0 %v803
  %843 = vmatprep.subr.mxu0 %v801
  %844 = vmatpush1.msra.mxu0 %v800
  %845 = vmatprep.subr.mxu0 %v798
  %846 = vmatpush1.msra.mxu0 %v797
  %847 = vmatprep.subr.mxu0 %v795
  %848 = vmatpush1.msra.mxu0 %v794
  %849 = vmatprep.subr.mxu0 %v792
  %850 = vmatpush1.msra.mxu0 %v791
  %851 = vmatprep.subr.mxu0 %v789
  %852 = vmatpush1.msra.mxu0 %v788
  %853 = vmatprep.subr.mxu0 %v786
  %854 = vmatpush1.msra.mxu0 %v785
  %855 = vmatprep.subr.mxu0 %v783
  %856 = vmatpush1.msra.mxu0 %v782
  %857 = vmatprep.subr.mxu0 %v780
  %858 = vmatpush1.msra.mxu0 %v779
  %859 = vmatprep.subr.mxu0 0.0
  %860 = vmatpush2.msra.mxu0 0.0
  %861 = vmatprep.subr.mxu0 0.0
  %862 = vmatpush2.msra.mxu0 0.0
  %863 = vmatprep.subr.mxu0 0.0
  %864 = vmatpush2.msra.mxu0 0.0
  %865 = vmatprep.subr.mxu0 0.0
  %866 = vmatpush2.msra.mxu0 0.0
  %867 = vmatprep.subr.mxu0 0.0
  %868 = vmatpush2.msra.mxu0 0.0
  %869 = vmatprep.subr.mxu0 0.0
  %870 = vmatpush2.msra.mxu0 0.0
  %871 = vmatprep.subr.mxu0 0.0
  %872 = vmatpush2.msra.mxu0 0.0
  %873 = vmatprep.subr.mxu0 0.0
  %874 = vmatpush2.msra.mxu0 0.0
  %875 = vmatprep.subr.mxu0 0.0
  %876 = vmatpush2.msra.mxu0 0.0
  %877 = vmatprep.subr.mxu0 0.0
  %878 = vmatpush2.msra.mxu0 0.0
  %879 = vmatprep.subr.mxu0 0.0
  %880 = vmatpush2.msra.mxu0 0.0
  %881 = vmatprep.subr.mxu0 0.0
  %882 = vmatpush2.msra.mxu0 0.0
  %883 = vmatprep.subr.mxu0 0.0
  %884 = vmatpush2.msra.mxu0 0.0
  %885 = vmatprep.subr.mxu0 0.0
  %886 = vmatpush2.msra.mxu0 0.0
  %887 = vmatprep.subr.mxu0 0.0
  %888 = vmatpush2.msra.mxu0 0.0
  %889 = vmatprep.subr.mxu0 0.0
  %890 = vmatpush2.msra.mxu0 0.0
  %891 = vmatprep.mubr.f32.mxu0 0.0
  %892 = vmatmul.mubr.f32.gmra.mxu0 %v55
  %v893 = vpop.f32.mrf.mxu0
  %v894 = vadd.f32 0.0, %v893
  %v895 = vpop.f32.mrf.mxu0
  %v896 = vadd.f32 0.0, %v895
  %897 = vmatprep.mubr.f32.mxu0 0.0
  %898 = vmatmul.mubr.f32.gmra.mxu0 %v56
  %v899 = vpop.f32.mrf.mxu0
  %v900 = vadd.f32 0.0, %v899
  %v901 = vpop.f32.mrf.mxu0
  %v902 = vadd.f32 0.0, %v901
  %903 = vmatprep.mubr.f32.mxu0 0.0
  %904 = vmatmul.mubr.f32.gmra.mxu0 %v57
  %v905 = vpop.f32.mrf.mxu0
  %v906 = vadd.f32 0.0, %v905
  %v907 = vpop.f32.mrf.mxu0
  %v908 = vadd.f32 0.0, %v907
  %909 = vmatprep.mubr.f32.mxu0 0.0
  %910 = vmatmul.mubr.f32.gmra.mxu0 %v58
  %v911 = vpop.f32.mrf.mxu0
  %v912 = vadd.f32 0.0, %v911
  %v913 = vpop.f32.mrf.mxu0
  %v914 = vadd.f32 0.0, %v913
  %915 = vmatprep.mubr.f32.mxu0 0.0
  %916 = vmatmul.mubr.f32.gmra.mxu0 %v59
  %v917 = vpop.f32.mrf.mxu0
  %v918 = vadd.f32 0.0, %v917
  %v919 = vpop.f32.mrf.mxu0
  %v920 = vadd.f32 0.0, %v919
  %921 = vmatprep.mubr.f32.mxu0 0.0
  %922 = vmatmul.mubr.f32.gmra.mxu0 %v60
  %v923 = vpop.f32.mrf.mxu0
  %v924 = vadd.f32 0.0, %v923
  %v925 = vpop.f32.mrf.mxu0
  %v926 = vadd.f32 0.0, %v925
  %927 = vmatprep.mubr.f32.mxu0 0.0
  %928 = vmatmul.mubr.f32.gmra.mxu0 %v61
  %v929 = vpop.f32.mrf.mxu0
  %v930 = vadd.f32 0.0, %v929
  %v931 = vpop.f32.mrf.mxu0
  %v932 = vadd.f32 0.0, %v931
  %933 = vmatprep.mubr.f32.mxu0 0.0
  %934 = vmatmul.mubr.f32.gmra.mxu0 %v62
  %v935 = vpop.f32.mrf.mxu0
  %v936 = vadd.f32 0.0, %v935
  %v937 = vpop.f32.mrf.mxu0
  %v938 = vadd.f32 0.0, %v937
  %939 = vmatprep.mubr.f32.mxu0 0.0
  %940 = vmatmul.mubr.f32.gmra.mxu0 %v63
  %v941 = vpop.f32.mrf.mxu0
  %v942 = vadd.f32 0.0, %v941
  %v943 = vpop.f32.mrf.mxu0
  %v944 = vadd.f32 0.0, %v943
  %945 = vmatprep.mubr.f32.mxu0 0.0
  %946 = vmatmul.mubr.f32.gmra.mxu0 %v64
  %v947 = vpop.f32.mrf.mxu0
  %v948 = vadd.f32 0.0, %v947
  %v949 = vpop.f32.mrf.mxu0
  %v950 = vadd.f32 0.0, %v949
  %951 = vmatprep.mubr.f32.mxu0 0.0
  %952 = vmatmul.mubr.f32.gmra.mxu0 %v65
  %v953 = vpop.f32.mrf.mxu0
  %v954 = vadd.f32 0.0, %v953
  %v955 = vpop.f32.mrf.mxu0
  %v956 = vadd.f32 0.0, %v955
  %957 = vmatprep.mubr.f32.mxu0 0.0
  %958 = vmatmul.mubr.f32.gmra.mxu0 %v66
  %v959 = vpop.f32.mrf.mxu0
  %v960 = vadd.f32 0.0, %v959
  %v961 = vpop.f32.mrf.mxu0
  %v962 = vadd.f32 0.0, %v961
  %963 = vmatprep.mubr.f32.mxu0 0.0
  %964 = vmatmul.mubr.f32.gmra.mxu0 %v67
  %v965 = vpop.f32.mrf.mxu0
  %v966 = vadd.f32 0.0, %v965
  %v967 = vpop.f32.mrf.mxu0
  %v968 = vadd.f32 0.0, %v967
  %969 = vmatprep.mubr.f32.mxu0 0.0
  %970 = vmatmul.mubr.f32.gmra.mxu0 %v68
  %v971 = vpop.f32.mrf.mxu0
  %v972 = vadd.f32 0.0, %v971
  %v973 = vpop.f32.mrf.mxu0
  %v974 = vadd.f32 0.0, %v973
  %975 = vmatprep.mubr.f32.mxu0 0.0
  %976 = vmatmul.mubr.f32.gmra.mxu0 %v69
  %v977 = vpop.f32.mrf.mxu0
  %v978 = vadd.f32 0.0, %v977
  %v979 = vpop.f32.mrf.mxu0
  %v980 = vadd.f32 0.0, %v979
  %981 = vmatprep.mubr.f32.mxu0 0.0
  %982 = vmatmul.mubr.f32.gmra.mxu0 %v70
  %v983 = vpop.f32.mrf.mxu0
  %v984 = vadd.f32 0.0, %v983
  %v985 = vpop.f32.mrf.mxu0
  %v986 = vadd.f32 0.0, %v985
  %987 = vdwg.mxu0
  %988 = vmatprep.subr.mxu0 0.0
  %989 = vmatpush1.msra.mxu0 %v826
  %990 = vmatprep.subr.mxu0 0.0
  %991 = vmatpush1.msra.mxu0 %v823
  %992 = vmatprep.subr.mxu0 0.0
  %993 = vmatpush1.msra.mxu0 %v820
  %994 = vmatprep.subr.mxu0 0.0
  %995 = vmatpush1.msra.mxu0 %v817
  %996 = vmatprep.subr.mxu0 0.0
  %997 = vmatpush1.msra.mxu0 %v814
  %998 = vmatprep.subr.mxu0 0.0
  %999 = vmatpush1.msra.mxu0 %v811
  %1000 = vmatprep.subr.mxu0 0.0
  %1001 = vmatpush1.msra.mxu0 %v808
  %1002 = vmatprep.subr.mxu0 0.0
  %1003 = vmatpush1.msra.mxu0 %v805
  %1004 = vmatprep.subr.mxu0 0.0
  %1005 = vmatpush1.msra.mxu0 %v802
  %1006 = vmatprep.subr.mxu0 0.0
  %1007 = vmatpush1.msra.mxu0 %v799
  %1008 = vmatprep.subr.mxu0 0.0
  %1009 = vmatpush1.msra.mxu0 %v796
  %1010 = vmatprep.subr.mxu0 0.0
  %1011 = vmatpush1.msra.mxu0 %v793
  %1012 = vmatprep.subr.mxu0 0.0
  %1013 = vmatpush1.msra.mxu0 %v790
  %1014 = vmatprep.subr.mxu0 0.0
  %1015 = vmatpush1.msra.mxu0 %v787
  %1016 = vmatprep.subr.mxu0 0.0
  %1017 = vmatpush1.msra.mxu0 %v784
  %1018 = vmatprep.subr.mxu0 0.0
  %1019 = vmatpush1.msra.mxu0 %v781
  %1020 = vmatprep.subr.mxu0 0.0
  %1021 = vmatpush2.msra.mxu0 0.0
  %1022 = vmatprep.subr.mxu0 0.0
  %1023 = vmatpush2.msra.mxu0 0.0
  %1024 = vmatprep.subr.mxu0 0.0
  %1025 = vmatpush2.msra.mxu0 0.0
  %1026 = vmatprep.subr.mxu0 0.0
  %1027 = vmatpush2.msra.mxu0 0.0
  %1028 = vmatprep.subr.mxu0 0.0
  %1029 = vmatpush2.msra.mxu0 0.0
  %1030 = vmatprep.subr.mxu0 0.0
  %1031 = vmatpush2.msra.mxu0 0.0
  %1032 = vmatprep.subr.mxu0 0.0
  %1033 = vmatpush2.msra.mxu0 0.0
  %1034 = vmatprep.subr.mxu0 0.0
  %1035 = vmatpush2.msra.mxu0 0.0
  %1036 = vmatprep.subr.mxu0 0.0
  %1037 = vmatpush2.msra.mxu0 0.0
  %1038 = vmatprep.subr.mxu0 0.0
  %1039 = vmatpush2.msra.mxu0 0.0
  %1040 = vmatprep.subr.mxu0 0.0
  %1041 = vmatpush2.msra.mxu0 0.0
  %1042 = vmatprep.subr.mxu0 0.0
  %1043 = vmatpush2.msra.mxu0 0.0
  %1044 = vmatprep.subr.mxu0 0.0
  %1045 = vmatpush2.msra.mxu0 0.0
  %1046 = vmatprep.subr.mxu0 0.0
  %1047 = vmatpush2.msra.mxu0 0.0
  %1048 = vmatprep.subr.mxu0 0.0
  %1049 = vmatpush2.msra.mxu0 0.0
  %1050 = vmatprep.subr.mxu0 0.0
  %1051 = vmatpush2.msra.mxu0 0.0
  %1052 = vmatprep.mubr.f32.mxu0 0.0
  %1053 = vmatmul.mubr.f32.gmra.mxu0 %v55
  %v1054 = vpop.f32.mrf.mxu0
  %v1055 = vadd.f32 0.0, %v1054
  %v1056 = vpop.f32.mrf.mxu0
  %1057 = vmatprep.mubr.f32.mxu0 0.0
  %1058 = vmatmul.mubr.f32.gmra.mxu0 %v56
  %v1059 = vpop.f32.mrf.mxu0
  %v1060 = vadd.f32 0.0, %v1059
  %v1061 = vpop.f32.mrf.mxu0
  %1062 = vmatprep.mubr.f32.mxu0 0.0
  %1063 = vmatmul.mubr.f32.gmra.mxu0 %v57
  %v1064 = vpop.f32.mrf.mxu0
  %v1065 = vadd.f32 0.0, %v1064
  %v1066 = vpop.f32.mrf.mxu0
  %1067 = vmatprep.mubr.f32.mxu0 0.0
  %1068 = vmatmul.mubr.f32.gmra.mxu0 %v58
  %v1069 = vpop.f32.mrf.mxu0
  %v1070 = vadd.f32 0.0, %v1069
  %v1071 = vpop.f32.mrf.mxu0
  %1072 = vmatprep.mubr.f32.mxu0 0.0
  %1073 = vmatmul.mubr.f32.gmra.mxu0 %v59
  %v1074 = vpop.f32.mrf.mxu0
  %v1075 = vadd.f32 0.0, %v1074
  %v1076 = vpop.f32.mrf.mxu0
  %1077 = vmatprep.mubr.f32.mxu0 0.0
  %1078 = vmatmul.mubr.f32.gmra.mxu0 %v60
  %v1079 = vpop.f32.mrf.mxu0
  %v1080 = vadd.f32 0.0, %v1079
  %v1081 = vpop.f32.mrf.mxu0
  %1082 = vmatprep.mubr.f32.mxu0 0.0
  %1083 = vmatmul.mubr.f32.gmra.mxu0 %v61
  %v1084 = vpop.f32.mrf.mxu0
  %v1085 = vadd.f32 0.0, %v1084
  %v1086 = vpop.f32.mrf.mxu0
  %1087 = vmatprep.mubr.f32.mxu0 0.0
  %1088 = vmatmul.mubr.f32.gmra.mxu0 %v62
  %v1089 = vpop.f32.mrf.mxu0
  %v1090 = vadd.f32 0.0, %v1089
  %v1091 = vpop.f32.mrf.mxu0
  %1092 = vmatprep.mubr.f32.mxu0 0.0
  %1093 = vmatmul.mubr.f32.gmra.mxu0 %v63
  %v1094 = vpop.f32.mrf.mxu0
  %v1095 = vadd.f32 0.0, %v1094
  %v1096 = vpop.f32.mrf.mxu0
  %1097 = vmatprep.mubr.f32.mxu0 0.0
  %1098 = vmatmul.mubr.f32.gmra.mxu0 %v64
  %v1099 = vpop.f32.mrf.mxu0
  %v1100 = vadd.f32 0.0, %v1099
  %v1101 = vpop.f32.mrf.mxu0
  %1102 = vmatprep.mubr.f32.mxu0 0.0
  %1103 = vmatmul.mubr.f32.gmra.mxu0 %v65
  %v1104 = vpop.f32.mrf.mxu0
  %v1105 = vadd.f32 0.0, %v1104
  %v1106 = vpop.f32.mrf.mxu0
  %1107 = vmatprep.mubr.f32.mxu0 0.0
  %1108 = vmatmul.mubr.f32.gmra.mxu0 %v66
  %v1109 = vpop.f32.mrf.mxu0
  %v1110 = vadd.f32 0.0, %v1109
  %v1111 = vpop.f32.mrf.mxu0
  %1112 = vmatprep.mubr.f32.mxu0 0.0
  %1113 = vmatmul.mubr.f32.gmra.mxu0 %v67
  %v1114 = vpop.f32.mrf.mxu0
  %v1115 = vadd.f32 0.0, %v1114
  %v1116 = vpop.f32.mrf.mxu0
  %1117 = vmatprep.mubr.f32.mxu0 0.0
  %1118 = vmatmul.mubr.f32.gmra.mxu0 %v68
  %v1119 = vpop.f32.mrf.mxu0
  %v1120 = vadd.f32 0.0, %v1119
  %v1121 = vpop.f32.mrf.mxu0
  %1122 = vmatprep.mubr.f32.mxu0 0.0
  %1123 = vmatmul.mubr.f32.gmra.mxu0 %v69
  %v1124 = vpop.f32.mrf.mxu0
  %v1125 = vadd.f32 0.0, %v1124
  %v1126 = vpop.f32.mrf.mxu0
  %1127 = vmatprep.mubr.f32.mxu0 0.0
  %1128 = vmatmul.mubr.f32.gmra.mxu0 %v70
  %v1129 = vpop.f32.mrf.mxu0
  %v1130 = vadd.f32 0.0, %v1129
  %v1131 = vpop.f32.mrf.mxu0
  %1132 = vdwg.mxu0
  %v1133 = vadd.f32 %v540, %v894
  %v1134 = vadd.f32 %v542, %v896
  %v1135 = vadd.f32 %v701, %v1055
  %v1136 = vadd.f32 %v546, %v900
  %v1137 = vadd.f32 %v548, %v902
  %v1138 = vadd.f32 %v706, %v1060
  %v1139 = vadd.f32 %v552, %v906
  %v1140 = vadd.f32 %v554, %v908
  %v1141 = vadd.f32 %v711, %v1065
  %v1142 = vadd.f32 %v558, %v912
  %v1143 = vadd.f32 %v560, %v914
  %v1144 = vadd.f32 %v716, %v1070
  %v1145 = vadd.f32 %v564, %v918
  %v1146 = vadd.f32 %v566, %v920
  %v1147 = vadd.f32 %v721, %v1075
  %v1148 = vadd.f32 %v570, %v924
  %v1149 = vadd.f32 %v572, %v926
  %v1150 = vadd.f32 %v726, %v1080
  %v1151 = vadd.f32 %v576, %v930
  %v1152 = vadd.f32 %v578, %v932
  %v1153 = vadd.f32 %v731, %v1085
  %v1154 = vadd.f32 %v582, %v936
  %v1155 = vadd.f32 %v584, %v938
  %v1156 = vadd.f32 %v736, %v1090
  %v1157 = vadd.f32 %v588, %v942
  %v1158 = vadd.f32 %v590, %v944
  %v1159 = vadd.f32 %v741, %v1095
  %v1160 = vadd.f32 %v594, %v948
  %v1161 = vadd.f32 %v596, %v950
  %v1162 = vadd.f32 %v746, %v1100
  %v1163 = vadd.f32 %v600, %v954
  %v1164 = vadd.f32 %v602, %v956
  %v1165 = vadd.f32 %v751, %v1105
  %v1166 = vadd.f32 %v606, %v960
  %v1167 = vadd.f32 %v608, %v962
  %v1168 = vadd.f32 %v756, %v1110
  %v1169 = vadd.f32 %v612, %v966
  %v1170 = vadd.f32 %v614, %v968
  %v1171 = vadd.f32 %v761, %v1115
  %v1172 = vadd.f32 %v618, %v972
  %v1173 = vadd.f32 %v620, %v974
  %v1174 = vadd.f32 %v766, %v1120
  %v1175 = vadd.f32 %v624, %v978
  %v1176 = vadd.f32 %v626, %v980
  %v1177 = vadd.f32 %v771, %v1125
  %v1178 = vadd.f32 %v630, %v984
  %v1179 = vadd.f32 %v632, %v986
  %v1180 = vadd.f32 %v776, %v1130
  %v1181 = vmax.f32 %v1133, %v1134
  %v1182 = vmax.f32 %v1136, %v1137
  %v1183 = vmax.f32 %v1139, %v1140
  %v1184 = vmax.f32 %v1142, %v1143
  %v1185 = vmax.f32 %v1145, %v1146
  %v1186 = vmax.f32 %v1148, %v1149
  %v1187 = vmax.f32 %v1151, %v1152
  %v1188 = vmax.f32 %v1154, %v1155
  %v1189 = vmax.f32 %v1157, %v1158
  %v1190 = vmax.f32 %v1160, %v1161
  %v1191 = vmax.f32 %v1163, %v1164
  %v1192 = vmax.f32 %v1166, %v1167
  %v1193 = vmax.f32 %v1169, %v1170
  %v1194 = vmax.f32 %v1172, %v1173
  %v1195 = vmax.f32 %v1175, %v1176
  %v1196 = vmax.f32 %v1178, %v1179
  %v1197 = vmax.f32 %v1181, %v1135
  %v1198 = vmax.f32 %v1182, %v1138
  %v1199 = vmax.f32 %v1183, %v1141
  %v1200 = vmax.f32 %v1184, %v1144
  %v1201 = vmax.f32 %v1185, %v1147
  %v1202 = vmax.f32 %v1186, %v1150
  %v1203 = vmax.f32 %v1187, %v1153
  %v1204 = vmax.f32 %v1188, %v1156
  %v1205 = vmax.f32 %v1189, %v1159
  %v1206 = vmax.f32 %v1190, %v1162
  %v1207 = vmax.f32 %v1191, %v1165
  %v1208 = vmax.f32 %v1192, %v1168
  %v1209 = vmax.f32 %v1193, %v1171
  %v1210 = vmax.f32 %v1194, %v1174
  %v1211 = vmax.f32 %v1195, %v1177
  %v1212 = vmax.f32 %v1196, %v1180
  %v1213 = vsub.f32 %v1133, %v1197
  %v1214 = vsub.f32 %v1136, %v1198
  %v1215 = vsub.f32 %v1139, %v1199
  %v1216 = vsub.f32 %v1142, %v1200
  %v1217 = vsub.f32 %v1145, %v1201
  %v1218 = vsub.f32 %v1148, %v1202
  %v1219 = vsub.f32 %v1151, %v1203
  %v1220 = vsub.f32 %v1154, %v1204
  %v1221 = vsub.f32 %v1157, %v1205
  %v1222 = vsub.f32 %v1160, %v1206
  %v1223 = vsub.f32 %v1163, %v1207
  %v1224 = vsub.f32 %v1166, %v1208
  %v1225 = vsub.f32 %v1169, %v1209
  %v1226 = vsub.f32 %v1172, %v1210
  %v1227 = vsub.f32 %v1175, %v1211
  %v1228 = vsub.f32 %v1178, %v1212
  %v1229 = vmul.f32 %v1213, 1.442695
  %v1230 = vpow.pop %v1229
  %v1231 = vmul.f32 %v1214, 1.442695
  %v1232 = vpow.pop %v1231
  %v1233 = vmul.f32 %v1215, 1.442695
  %v1234 = vpow.pop %v1233
  %v1235 = vmul.f32 %v1216, 1.442695
  %v1236 = vpow.pop %v1235
  %v1237 = vmul.f32 %v1217, 1.442695
  %v1238 = vpow.pop %v1237
  %v1239 = vmul.f32 %v1218, 1.442695
  %v1240 = vpow.pop %v1239
  %v1241 = vmul.f32 %v1219, 1.442695
  %v1242 = vpow.pop %v1241
  %v1243 = vmul.f32 %v1220, 1.442695
  %v1244 = vpow.pop %v1243
  %v1245 = vmul.f32 %v1221, 1.442695
  %v1246 = vpow.pop %v1245
  %v1247 = vmul.f32 %v1222, 1.442695
  %v1248 = vpow.pop %v1247
  %v1249 = vmul.f32 %v1223, 1.442695
  %v1250 = vpow.pop %v1249
  %v1251 = vmul.f32 %v1224, 1.442695
  %v1252 = vpow.pop %v1251
  %v1253 = vmul.f32 %v1225, 1.442695
  %v1254 = vpow.pop %v1253
  %v1255 = vmul.f32 %v1226, 1.442695
  %v1256 = vpow.pop %v1255
  %v1257 = vmul.f32 %v1227, 1.442695
  %v1258 = vpow.pop %v1257
  %v1259 = vmul.f32 %v1228, 1.442695
  %v1260 = vpow.pop %v1259
  %v1261 = vsub.f32 %v1134, %v1197
  %v1262 = vsub.f32 %v1137, %v1198
  %v1263 = vsub.f32 %v1140, %v1199
  %v1264 = vsub.f32 %v1143, %v1200
  %v1265 = vsub.f32 %v1146, %v1201
  %v1266 = vsub.f32 %v1149, %v1202
  %v1267 = vsub.f32 %v1152, %v1203
  %v1268 = vsub.f32 %v1155, %v1204
  %v1269 = vsub.f32 %v1158, %v1205
  %v1270 = vsub.f32 %v1161, %v1206
  %v1271 = vsub.f32 %v1164, %v1207
  %v1272 = vsub.f32 %v1167, %v1208
  %v1273 = vsub.f32 %v1170, %v1209
  %v1274 = vsub.f32 %v1173, %v1210
  %v1275 = vsub.f32 %v1176, %v1211
  %v1276 = vsub.f32 %v1179, %v1212
  %v1277 = vmul.f32 %v1261, 1.442695
  %v1278 = vpow.pop %v1277
  %v1279 = vmul.f32 %v1262, 1.442695
  %v1280 = vpow.pop %v1279
  %v1281 = vmul.f32 %v1263, 1.442695
  %v1282 = vpow.pop %v1281
  %v1283 = vmul.f32 %v1264, 1.442695
  %v1284 = vpow.pop %v1283
  %v1285 = vmul.f32 %v1265, 1.442695
  %v1286 = vpow.pop %v1285
  %v1287 = vmul.f32 %v1266, 1.442695
  %v1288 = vpow.pop %v1287
  %v1289 = vmul.f32 %v1267, 1.442695
  %v1290 = vpow.pop %v1289
  %v1291 = vmul.f32 %v1268, 1.442695
  %v1292 = vpow.pop %v1291
  %v1293 = vmul.f32 %v1269, 1.442695
  %v1294 = vpow.pop %v1293
  %v1295 = vmul.f32 %v1270, 1.442695
  %v1296 = vpow.pop %v1295
  %v1297 = vmul.f32 %v1271, 1.442695
  %v1298 = vpow.pop %v1297
  %v1299 = vmul.f32 %v1272, 1.442695
  %v1300 = vpow.pop %v1299
  %v1301 = vmul.f32 %v1273, 1.442695
  %v1302 = vpow.pop %v1301
  %v1303 = vmul.f32 %v1274, 1.442695
  %v1304 = vpow.pop %v1303
  %v1305 = vmul.f32 %v1275, 1.442695
  %v1306 = vpow.pop %v1305
  %v1307 = vmul.f32 %v1276, 1.442695
  %v1308 = vpow.pop %v1307
  %v1309 = vsub.f32 %v1135, %v1197
  %v1310 = vsub.f32 %v1138, %v1198
  %v1311 = vsub.f32 %v1141, %v1199
  %v1312 = vsub.f32 %v1144, %v1200
  %v1313 = vsub.f32 %v1147, %v1201
  %v1314 = vsub.f32 %v1150, %v1202
  %v1315 = vsub.f32 %v1153, %v1203
  %v1316 = vsub.f32 %v1156, %v1204
  %v1317 = vsub.f32 %v1159, %v1205
  %v1318 = vsub.f32 %v1162, %v1206
  %v1319 = vsub.f32 %v1165, %v1207
  %v1320 = vsub.f32 %v1168, %v1208
  %v1321 = vsub.f32 %v1171, %v1209
  %v1322 = vsub.f32 %v1174, %v1210
  %v1323 = vsub.f32 %v1177, %v1211
  %v1324 = vsub.f32 %v1180, %v1212
  %v1325 = vmul.f32 %v1309, 1.442695
  %v1326 = vpow.pop %v1325
  %v1327 = vmul.f32 %v1310, 1.442695
  %v1328 = vpow.pop %v1327
  %v1329 = vmul.f32 %v1311, 1.442695
  %v1330 = vpow.pop %v1329
  %v1331 = vmul.f32 %v1312, 1.442695
  %v1332 = vpow.pop %v1331
  %v1333 = vmul.f32 %v1313, 1.442695
  %v1334 = vpow.pop %v1333
  %v1335 = vmul.f32 %v1314, 1.442695
  %v1336 = vpow.pop %v1335
  %v1337 = vmul.f32 %v1315, 1.442695
  %v1338 = vpow.pop %v1337
  %v1339 = vmul.f32 %v1316, 1.442695
  %v1340 = vpow.pop %v1339
  %v1341 = vmul.f32 %v1317, 1.442695
  %v1342 = vpow.pop %v1341
  %v1343 = vmul.f32 %v1318, 1.442695
  %v1344 = vpow.pop %v1343
  %v1345 = vmul.f32 %v1319, 1.442695
  %v1346 = vpow.pop %v1345
  %v1347 = vmul.f32 %v1320, 1.442695
  %v1348 = vpow.pop %v1347
  %v1349 = vmul.f32 %v1321, 1.442695
  %v1350 = vpow.pop %v1349
  %v1351 = vmul.f32 %v1322, 1.442695
  %v1352 = vpow.pop %v1351
  %v1353 = vmul.f32 %v1323, 1.442695
  %v1354 = vpow.pop %v1353
  %v1355 = vmul.f32 %v1324, 1.442695
  %v1356 = vpow.pop %v1355
  %v1357 = vadd.f32 %v1230, %v1278
  %v1358 = vadd.f32 %v1232, %v1280
  %v1359 = vadd.f32 %v1234, %v1282
  %v1360 = vadd.f32 %v1236, %v1284
  %v1361 = vadd.f32 %v1238, %v1286
  %v1362 = vadd.f32 %v1240, %v1288
  %v1363 = vadd.f32 %v1242, %v1290
  %v1364 = vadd.f32 %v1244, %v1292
  %v1365 = vadd.f32 %v1246, %v1294
  %v1366 = vadd.f32 %v1248, %v1296
  %v1367 = vadd.f32 %v1250, %v1298
  %v1368 = vadd.f32 %v1252, %v1300
  %v1369 = vadd.f32 %v1254, %v1302
  %v1370 = vadd.f32 %v1256, %v1304
  %v1371 = vadd.f32 %v1258, %v1306
  %v1372 = vadd.f32 %v1260, %v1308
  %v1373 = vadd.f32 %v1357, %v1326
  %v1374 = vadd.f32 %v1358, %v1328
  %v1375 = vadd.f32 %v1359, %v1330
  %v1376 = vadd.f32 %v1360, %v1332
  %v1377 = vadd.f32 %v1361, %v1334
  %v1378 = vadd.f32 %v1362, %v1336
  %v1379 = vadd.f32 %v1363, %v1338
  %v1380 = vadd.f32 %v1364, %v1340
  %v1381 = vadd.f32 %v1365, %v1342
  %v1382 = vadd.f32 %v1366, %v1344
  %v1383 = vadd.f32 %v1367, %v1346
  %v1384 = vadd.f32 %v1368, %v1348
  %v1385 = vadd.f32 %v1369, %v1350
  %v1386 = vadd.f32 %v1370, %v1352
  %v1387 = vadd.f32 %v1371, %v1354
  %v1388 = vadd.f32 %v1372, %v1356
  %v1389 = vrcp.pop %v1373
  %v1390 = vmul.f32 1.0, %v1389
  %v1391 = vrcp.pop %v1374
  %v1392 = vmul.f32 1.0, %v1391
  %v1393 = vrcp.pop %v1375
  %v1394 = vmul.f32 1.0, %v1393
  %v1395 = vrcp.pop %v1376
  %v1396 = vmul.f32 1.0, %v1395
  %v1397 = vrcp.pop %v1377
  %v1398 = vmul.f32 1.0, %v1397
  %v1399 = vrcp.pop %v1378
  %v1400 = vmul.f32 1.0, %v1399
  %v1401 = vrcp.pop %v1379
  %v1402 = vmul.f32 1.0, %v1401
  %v1403 = vrcp.pop %v1380
  %v1404 = vmul.f32 1.0, %v1403
  %v1405 = vrcp.pop %v1381
  %v1406 = vmul.f32 1.0, %v1405
  %v1407 = vrcp.pop %v1382
  %v1408 = vmul.f32 1.0, %v1407
  %v1409 = vrcp.pop %v1383
  %v1410 = vmul.f32 1.0, %v1409
  %v1411 = vrcp.pop %v1384
  %v1412 = vmul.f32 1.0, %v1411
  %v1413 = vrcp.pop %v1385
  %v1414 = vmul.f32 1.0, %v1413
  %v1415 = vrcp.pop %v1386
  %v1416 = vmul.f32 1.0, %v1415
  %v1417 = vrcp.pop %v1387
  %v1418 = vmul.f32 1.0, %v1417
  %v1419 = vrcp.pop %v1388
  %v1420 = vmul.f32 1.0, %v1419
  %v1421 = vmul.f32 %v1230, %v1390
  %v1422 = vmul.f32 %v1232, %v1392
  %v1423 = vmul.f32 %v1234, %v1394
  %v1424 = vmul.f32 %v1236, %v1396
  %v1425 = vmul.f32 %v1238, %v1398
  %v1426 = vmul.f32 %v1240, %v1400
  %v1427 = vmul.f32 %v1242, %v1402
  %v1428 = vmul.f32 %v1244, %v1404
  %v1429 = vmul.f32 %v1246, %v1406
  %v1430 = vmul.f32 %v1248, %v1408
  %v1431 = vmul.f32 %v1250, %v1410
  %v1432 = vmul.f32 %v1252, %v1412
  %v1433 = vmul.f32 %v1254, %v1414
  %v1434 = vmul.f32 %v1256, %v1416
  %v1435 = vmul.f32 %v1258, %v1418
  %v1436 = vmul.f32 %v1260, %v1420
  %v1437 = vmul.f32 %v1421, %v23
  %v1438 = vmul.f32 %v1422, %v24
  %v1439 = vmul.f32 %v1423, %v25
  %v1440 = vmul.f32 %v1424, %v26
  %v1441 = vmul.f32 %v1425, %v27
  %v1442 = vmul.f32 %v1426, %v28
  %v1443 = vmul.f32 %v1427, %v29
  %v1444 = vmul.f32 %v1428, %v30
  %v1445 = vmul.f32 %v1429, %v31
  %v1446 = vmul.f32 %v1430, %v32
  %v1447 = vmul.f32 %v1431, %v33
  %v1448 = vmul.f32 %v1432, %v34
  %v1449 = vmul.f32 %v1433, %v35
  %v1450 = vmul.f32 %v1434, %v36
  %v1451 = vmul.f32 %v1435, %v37
  %v1452 = vmul.f32 %v1436, %v38
  %v1453 = vmul.f32 %v1278, %v1390
  %v1454 = vmul.f32 %v1280, %v1392
  %v1455 = vmul.f32 %v1282, %v1394
  %v1456 = vmul.f32 %v1284, %v1396
  %v1457 = vmul.f32 %v1286, %v1398
  %v1458 = vmul.f32 %v1288, %v1400
  %v1459 = vmul.f32 %v1290, %v1402
  %v1460 = vmul.f32 %v1292, %v1404
  %v1461 = vmul.f32 %v1294, %v1406
  %v1462 = vmul.f32 %v1296, %v1408
  %v1463 = vmul.f32 %v1298, %v1410
  %v1464 = vmul.f32 %v1300, %v1412
  %v1465 = vmul.f32 %v1302, %v1414
  %v1466 = vmul.f32 %v1304, %v1416
  %v1467 = vmul.f32 %v1306, %v1418
  %v1468 = vmul.f32 %v1308, %v1420
  %v1469 = vmul.f32 %v1453, %v39
  %v1470 = vmul.f32 %v1454, %v40
  %v1471 = vmul.f32 %v1455, %v41
  %v1472 = vmul.f32 %v1456, %v42
  %v1473 = vmul.f32 %v1457, %v43
  %v1474 = vmul.f32 %v1458, %v44
  %v1475 = vmul.f32 %v1459, %v45
  %v1476 = vmul.f32 %v1460, %v46
  %v1477 = vmul.f32 %v1461, %v47
  %v1478 = vmul.f32 %v1462, %v48
  %v1479 = vmul.f32 %v1463, %v49
  %v1480 = vmul.f32 %v1464, %v50
  %v1481 = vmul.f32 %v1465, %v51
  %v1482 = vmul.f32 %v1466, %v52
  %v1483 = vmul.f32 %v1467, %v53
  %v1484 = vmul.f32 %v1468, %v54
  %v1485 = vadd.f32 %v1437, %v1469
  %v1486 = vadd.f32 %v1438, %v1470
  %v1487 = vadd.f32 %v1439, %v1471
  %v1488 = vadd.f32 %v1440, %v1472
  %v1489 = vadd.f32 %v1441, %v1473
  %v1490 = vadd.f32 %v1442, %v1474
  %v1491 = vadd.f32 %v1443, %v1475
  %v1492 = vadd.f32 %v1444, %v1476
  %v1493 = vadd.f32 %v1445, %v1477
  %v1494 = vadd.f32 %v1446, %v1478
  %v1495 = vadd.f32 %v1447, %v1479
  %v1496 = vadd.f32 %v1448, %v1480
  %v1497 = vadd.f32 %v1449, %v1481
  %v1498 = vadd.f32 %v1450, %v1482
  %v1499 = vadd.f32 %v1451, %v1483
  %v1500 = vadd.f32 %v1452, %v1484
  %v1501 = vmul.f32 %v1326, %v1390
  %v1502 = vmul.f32 %v1328, %v1392
  %v1503 = vmul.f32 %v1330, %v1394
  %v1504 = vmul.f32 %v1332, %v1396
  %v1505 = vmul.f32 %v1334, %v1398
  %v1506 = vmul.f32 %v1336, %v1400
  %v1507 = vmul.f32 %v1338, %v1402
  %v1508 = vmul.f32 %v1340, %v1404
  %v1509 = vmul.f32 %v1342, %v1406
  %v1510 = vmul.f32 %v1344, %v1408
  %v1511 = vmul.f32 %v1346, %v1410
  %v1512 = vmul.f32 %v1348, %v1412
  %v1513 = vmul.f32 %v1350, %v1414
  %v1514 = vmul.f32 %v1352, %v1416
  %v1515 = vmul.f32 %v1354, %v1418
  %v1516 = vmul.f32 %v1356, %v1420
  %v1517 = vmul.f32 %v1501, %v55
  %v1518 = vmul.f32 %v1502, %v56
  %v1519 = vmul.f32 %v1503, %v57
  %v1520 = vmul.f32 %v1504, %v58
  %v1521 = vmul.f32 %v1505, %v59
  %v1522 = vmul.f32 %v1506, %v60
  %v1523 = vmul.f32 %v1507, %v61
  %v1524 = vmul.f32 %v1508, %v62
  %v1525 = vmul.f32 %v1509, %v63
  %v1526 = vmul.f32 %v1510, %v64
  %v1527 = vmul.f32 %v1511, %v65
  %v1528 = vmul.f32 %v1512, %v66
  %v1529 = vmul.f32 %v1513, %v67
  %v1530 = vmul.f32 %v1514, %v68
  %v1531 = vmul.f32 %v1515, %v69
  %v1532 = vmul.f32 %v1516, %v70
  %v1533 = vadd.f32 %v1485, %v1517
  %v1534 = vadd.f32 %v1486, %v1518
  %v1535 = vadd.f32 %v1487, %v1519
  %v1536 = vadd.f32 %v1488, %v1520
  %v1537 = vadd.f32 %v1489, %v1521
  %v1538 = vadd.f32 %v1490, %v1522
  %v1539 = vadd.f32 %v1491, %v1523
  %v1540 = vadd.f32 %v1492, %v1524
  %v1541 = vadd.f32 %v1493, %v1525
  %v1542 = vadd.f32 %v1494, %v1526
  %v1543 = vadd.f32 %v1495, %v1527
  %v1544 = vadd.f32 %v1496, %v1528
  %v1545 = vadd.f32 %v1497, %v1529
  %v1546 = vadd.f32 %v1498, %v1530
  %v1547 = vadd.f32 %v1499, %v1531
  %v1548 = vadd.f32 %v1500, %v1532
  %1549 = vst [vmem:[%s6] sm:$0xff] %v1533
  %1550 = vst [vmem:[%s6 + $0x8] sm:$0xff] %v1534
  %1551 = vst [vmem:[%s6 + $0x10] sm:$0xff] %v1535
  %1552 = vst [vmem:[%s6 + $0x18] sm:$0xff] %v1536
  %1553 = vst [vmem:[%s6 + $0x20] sm:$0xff] %v1537
  %1554 = vst [vmem:[%s6 + $0x28] sm:$0xff] %v1538
  %1555 = vst [vmem:[%s6 + $0x30] sm:$0xff] %v1539
  %1556 = vst [vmem:[%s6 + $0x38] sm:$0xff] %v1540
  %1557 = vst [vmem:[%s6 + $0x40] sm:$0xff] %v1541
  %1558 = vst [vmem:[%s6 + $0x48] sm:$0xff] %v1542
  %1559 = vst [vmem:[%s6 + $0x50] sm:$0xff] %v1543
  %1560 = vst [vmem:[%s6 + $0x58] sm:$0xff] %v1544
  %1561 = vst [vmem:[%s6 + $0x60] sm:$0xff] %v1545
  %1562 = vst [vmem:[%s6 + $0x68] sm:$0xff] %v1546
  %1563 = vst [vmem:[%s6 + $0x70] sm:$0xff] %v1547
  %1564 = vst [vmem:[%s6 + $0x78] sm:$0xff] %v1548
  // Predicated region
  $region26: #{ms_cross_att_fa_pallas.7} parent=0 // pred_check
    _
  $region27: #{ms_cross_att_fa_pallas.7} parent=0 // pred_check_branch
    %1566 = sbr.rel (0) target = $region29
  $region28: #{ms_cross_att_fa_pallas.7} parent=0 // pred_region
    _
  $region29: #{ms_cross_att_fa_pallas.7} parent=0 // pred_fallthru
    _
  // Predicated region
  $region30: #{ms_cross_att_fa_pallas.7} parent=0 // pred_check
    _
  $region31: #{ms_cross_att_fa_pallas.7} parent=0 // pred_check_branch
    %1568 = sbr.rel (0) target = $region33
  $region32: #{ms_cross_att_fa_pallas.7} parent=0 // pred_region
    _
  $region33: #{ms_cross_att_fa_pallas.7} parent=0 // pred_fallthru
    _

</llo_original>
